<compile_context>
chip_gen: v7x
topology: tpu7x:2x2x1
jax: 0.10.0
libtpu: 0.0.40
codegen_flags: <defaults>
</compile_context>

<pallas_src>
import functools
import math

import jax
import jax.numpy as jnp
from jax import lax
from jax.experimental import pallas as pl
from jax.experimental.pallas import tpu as pltpu


_NEG = -1e30  # large finite negative for masking (no inf-inf NaNs)


# ----------------------------------------------------------------------------
# In-kernel helpers
# ----------------------------------------------------------------------------
def _erf(x):
    # Abramowitz & Stegun 7.1.26 (abs err ~1.5e-7) == exact-GELU semantics.
    # The kernel is MXU/DMA-bound at real sizes, so this polynomial (VPU + one
    # EUP exp) sits off the critical path.
    a1, a2, a3, a4, a5 = (0.254829592, -0.284496736, 1.421413741,
                          -1.453152027, 1.061405429)
    p = 0.3275911
    sgn = jnp.where(x >= 0.0, 1.0, -1.0)
    ax = jnp.abs(x)
    t = 1.0 / (1.0 + p * ax)
    poly = ((((a5 * t + a4) * t + a3) * t + a2) * t + a1) * t
    return sgn * (1.0 - poly * jnp.exp(-ax * ax))


def _gelu_exact(x):
    return 0.5 * x * (1.0 + _erf(x * (1.0 / math.sqrt(2.0))))


def _layer_norm(x, gamma, beta, eps=1e-5):
    # x: (rows, D) f32; gamma/beta: (1, D)
    mu = jnp.mean(x, axis=-1, keepdims=True)
    var = jnp.mean((x - mu) ** 2, axis=-1, keepdims=True)
    return (x - mu) * lax.rsqrt(var + eps) * gamma + beta


def _mha_heads(q3, k3, v3, bias3, num_heads, need_weights):
    """Batched (over the batch block) multi-head attention core.

    q3: (bb, Tq, D); k3, v3: (bb, Tk, D); bias3 broadcastable to (bb, Tq, Tk),
    additive (0 / -1e30). Returns (context (bb, Tq, D), head-averaged attention
    weights (bb, Tq, Tk) or None).
    """
    bb, Tq, D = q3.shape
    Tk = k3.shape[1]
    dh = D // num_heads
    scale = 1.0 / math.sqrt(dh)

    ctx_heads = []
    attn_sum = jnp.zeros((bb, Tq, Tk), jnp.float32) if need_weights else None
    for h in range(num_heads):
        sl = slice(h * dh, (h + 1) * dh)
        qh, kh, vh = q3[:, :, sl], k3[:, :, sl], v3[:, :, sl]
        s = jnp.einsum('bqd,bkd->bqk', qh, kh,
                       preferred_element_type=jnp.float32) * scale
        s = s + bias3                                   # one additive mask bias
        s = s - jnp.max(s, axis=-1, keepdims=True)
        p = jnp.exp(s)
        p = p * pl.reciprocal(jnp.sum(p, axis=-1, keepdims=True), approx=True)
        ctx_heads.append(jnp.einsum('bqk,bkd->bqd', p, vh,
                                    preferred_element_type=jnp.float32))
        if need_weights:
            attn_sum = attn_sum + p
    ctx = jnp.concatenate(ctx_heads, axis=-1)           # (bb, Tq, D)
    if need_weights:
        return ctx, attn_sum * (1.0 / num_heads)
    return ctx, None


# ----------------------------------------------------------------------------
# Pallas kernels
# ----------------------------------------------------------------------------
def _decoder_layer_kernel(
        x_ref, enc_ref, kbd_ref, kbe_ref,
        pre_g_ref, pre_b_ref,
        wq1_ref, wk1_ref, wv1_ref, bq1_ref, bk1_ref, bv1_ref, wo1_ref, bo1_ref,
        ln1_g_ref, ln1_b_ref,
        wq2_ref, wk2_ref, wv2_ref, bq2_ref, bk2_ref, bv2_ref, wo2_ref, bo2_ref,
        w1_ref, b1_ref, w2_ref, b2_ref,
        ln3_g_ref, ln3_b_ref,
        out_ref, attn1_ref=None, attn2_ref=None,
        *, num_heads):
    bb, T, D = x_ref.shape
    S = enc_ref.shape[1]
    rows_x = bb * T
    rows_e = bb * S
    bf16 = jnp.bfloat16
    need_w = attn1_ref is not None

    x = x_ref[...].reshape(rows_x, D)        # f32 residual stream
    enc = enc_ref[...].reshape(rows_e, D)

    # Additive biases (0 / -1e30): causal + key padding, built once per tile.
    r_i = lax.broadcasted_iota(jnp.int32, (T, T), 0)
    c_i = lax.broadcasted_iota(jnp.int32, (T, T), 1)
    causal_bias = jnp.where(c_i > r_i, _NEG, 0.0).astype(jnp.float32)   # (T, T)
    self_bias = causal_bias[None, :, :] + kbd_ref[...]                  # (bb, T, T)
    cross_bias = kbe_ref[...]                                           # (bb, 1, S)

    # ---- pre-norm + masked self attention ----
    xn = _layer_norm(x, pre_g_ref[...], pre_b_ref[...])
    xn16 = xn.astype(bf16)
    q = jnp.dot(xn16, wq1_ref[...], preferred_element_type=jnp.float32) + bq1_ref[...]
    k = jnp.dot(xn16, wk1_ref[...], preferred_element_type=jnp.float32) + bk1_ref[...]
    v = jnp.dot(xn16, wv1_ref[...], preferred_element_type=jnp.float32) + bv1_ref[...]
    ctx1, a1w = _mha_heads(q.reshape(bb, T, D), k.reshape(bb, T, D),
                           v.reshape(bb, T, D), self_bias, num_heads, need_w)
    so = jnp.dot(ctx1.reshape(rows_x, D).astype(bf16), wo1_ref[...],
                 preferred_element_type=jnp.float32) + bo1_ref[...]
    x1 = _layer_norm(x + so, ln1_g_ref[...], ln1_b_ref[...])   # dropout1 == identity

    # ---- cross attention over encoder output ----
    x116 = x1.astype(bf16)
    enc16 = enc.astype(bf16)
    q2 = jnp.dot(x116, wq2_ref[...], preferred_element_type=jnp.float32) + bq2_ref[...]
    k2 = jnp.dot(enc16, wk2_ref[...], preferred_element_type=jnp.float32) + bk2_ref[...]
    v2 = jnp.dot(enc16, wv2_ref[...], preferred_element_type=jnp.float32) + bv2_ref[...]
    ctx2, a2w = _mha_heads(q2.reshape(bb, T, D), k2.reshape(bb, S, D),
                           v2.reshape(bb, S, D), cross_bias, num_heads, need_w)
    co = jnp.dot(ctx2.reshape(rows_x, D).astype(bf16), wo2_ref[...],
                 preferred_element_type=jnp.float32) + bo2_ref[...]
    x2 = x1 + co                                                # dropout2 == identity

    # ---- FFN: Linear -> GELU (exact) -> Linear ----
    h = jnp.dot(x2.astype(bf16), w1_ref[...],
                preferred_element_type=jnp.float32) + b1_ref[...]
    h = _gelu_exact(h)
    f = jnp.dot(h.astype(bf16), w2_ref[...],
                preferred_element_type=jnp.float32) + b2_ref[...]
    x3 = x2 + f                                                 # dropout3 == identity

    out_ref[...] = _layer_norm(x3, ln3_g_ref[...], ln3_b_ref[...]).reshape(bb, T, D)
    if need_w:
        attn1_ref[...] = a1w
        attn2_ref[...] = a2w


def _final_linear_kernel(x_ref, w_ref, b_ref, o_ref):
    o_ref[...] = (jnp.dot(x_ref[...].astype(jnp.bfloat16), w_ref[...],
                          preferred_element_type=jnp.float32) + b_ref[...])


# ----------------------------------------------------------------------------
# Wrappers (pallas_call plumbing)
# ----------------------------------------------------------------------------
def _round_up(x, m):
    return ((x + m - 1) // m) * m


def _pick_batch_block(B, T, target_rows=128):
    """Smallest divisor of B with bb*T >= target_rows (keeps grid steps for
    megacore while filling the MXU M dimension). Falls back to B."""
    for d in range(1, B + 1):
        if B % d == 0 and d * T >= target_rows:
            return d
    return B


def _full_spec(shape):
    nd = len(shape)
    return pl.BlockSpec(shape, lambda *_: (0,) * nd)


def decoder_layer_pallas(x, enc, key_bias_dec, key_bias_enc, lp, num_heads,
                         collect_attn=True, vmem_limit_bytes=None):
    B, T, D = x.shape
    S = enc.shape[1]
    bb = _pick_batch_block(B, T)
    bf16 = jnp.bfloat16

    # Split the fused in_proj weights/biases into q/k/v in the wrapper (free)
    # so the kernel never does unaligned column slices of the projections.
    wq1, wk1, wv1 = lp['in1_w'][:, :D], lp['in1_w'][:, D:2 * D], lp['in1_w'][:, 2 * D:]
    bq1, bk1, bv1 = lp['in1_b'][:, :D], lp['in1_b'][:, D:2 * D], lp['in1_b'][:, 2 * D:]
    wq2, wk2, wv2 = lp['in2_w'][:, :D], lp['in2_w'][:, D:2 * D], lp['in2_w'][:, 2 * D:]
    bq2, bk2, bv2 = lp['in2_b'][:, :D], lp['in2_b'][:, D:2 * D], lp['in2_b'][:, 2 * D:]

    weights = [
        lp['pre_g'], lp['pre_b'],
        wq1.astype(bf16), wk1.astype(bf16), wv1.astype(bf16), bq1, bk1, bv1,
        lp['o1_w'].astype(bf16), lp['o1_b'],
        lp['ln1_g'], lp['ln1_b'],
        wq2.astype(bf16), wk2.astype(bf16), wv2.astype(bf16), bq2, bk2, bv2,
        lp['o2_w'].astype(bf16), lp['o2_b'],
        lp['w1'].astype(bf16), lp['b1'], lp['w2'].astype(bf16), lp['b2'],
        lp['ln3_g'], lp['ln3_b'],
    ]

    in_specs = [
        pl.BlockSpec((bb, T, D), lambda ib: (ib, 0, 0)),
        pl.BlockSpec((bb, S, D), lambda ib: (ib, 0, 0)),
        pl.BlockSpec((bb, 1, T), lambda ib: (ib, 0, 0)),
        pl.BlockSpec((bb, 1, S), lambda ib: (ib, 0, 0)),
    ] + [_full_spec(w.shape) for w in weights]

    if collect_attn:
        out_specs = (pl.BlockSpec((bb, T, D), lambda ib: (ib, 0, 0)),
                     pl.BlockSpec((bb, T, T), lambda ib: (ib, 0, 0)),
                     pl.BlockSpec((bb, T, S), lambda ib: (ib, 0, 0)))
        out_shape = (jax.ShapeDtypeStruct((B, T, D), jnp.float32),
                     jax.ShapeDtypeStruct((B, T, T), jnp.float32),
                     jax.ShapeDtypeStruct((B, T, S), jnp.float32))
    else:
        out_specs = pl.BlockSpec((bb, T, D), lambda ib: (ib, 0, 0))
        out_shape = jax.ShapeDtypeStruct((B, T, D), jnp.float32)

    kernel = functools.partial(_decoder_layer_kernel, num_heads=num_heads)
    res = pl.pallas_call(
        kernel,
        grid=(B // bb,),
        in_specs=in_specs,
        out_specs=out_specs,
        out_shape=out_shape,
        compiler_params=pltpu.CompilerParams(
            dimension_semantics=("parallel",),
            # Raise (e.g. 100 << 20) on v5e at real d_model/d_ff; at these test
            # shapes the default scoped limit is more than enough.
            vmem_limit_bytes=vmem_limit_bytes),
    )(x, enc, key_bias_dec, key_bias_enc, *weights)

    if collect_attn:
        return res
    return res, None, None


def final_linear_pallas(x, w, b, vmem_limit_bytes=None):
    """Vocab projection tiled over (row blocks, lane-dense 128-wide V blocks)."""
    B, T, D = x.shape
    V = w.shape[1]
    R = B * T
    x2 = x.reshape(R, D)

    if R > 512:
        r_blk = 256
        Rp = _round_up(R, r_blk)
    else:
        Rp = _round_up(R, 8)
        r_blk = Rp
    v_blk = 128
    Vp = _round_up(V, v_blk)

    if Rp != R:
        x2 = jnp.pad(x2, ((0, Rp - R), (0, 0)))
    wp = w if Vp == V else jnp.pad(w, ((0, 0), (0, Vp - V)))
    bp = b if Vp == V else jnp.pad(b, ((0, 0), (0, Vp - V)))

    out = pl.pallas_call(
        _final_linear_kernel,
        grid=(Rp // r_blk, Vp // v_blk),
        in_specs=[pl.BlockSpec((r_blk, D), lambda i, j: (i, 0)),
                  pl.BlockSpec((D, v_blk), lambda i, j: (0, j)),
                  pl.BlockSpec((1, v_blk), lambda i, j: (0, j))],
        out_specs=pl.BlockSpec((r_blk, v_blk), lambda i, j: (i, j)),
        out_shape=jax.ShapeDtypeStruct((Rp, Vp), jnp.float32),
        compiler_params=pltpu.CompilerParams(
            dimension_semantics=("parallel", "parallel"),
            vmem_limit_bytes=vmem_limit_bytes),
    )(x2, wp.astype(jnp.bfloat16), bp)
    return out[:R, :V].reshape(B, T, V)


def decoder_forward(params, tokens, target_lengths, enc_output, enc_lengths,
                    num_heads, collect_attn=True):
    """Decoder.forward: returns (seq_out logits, dict of attention weights)."""
    B, T = tokens.shape
    S = enc_output.shape[1]

    # Glue: embedding gather + sinusoidal positional encoding (not a hot path).
    x = params['emb'][tokens] + params['pe'][:T]

    # Key-padding masks pre-folded into additive biases (0 / -1e30).
    key_bias_dec = jnp.where(jnp.arange(T)[None, :] >= target_lengths[:, None],
                             _NEG, 0.0).astype(jnp.float32).reshape(B, 1, T)
    key_bias_enc = jnp.where(jnp.arange(S)[None, :] >= enc_lengths[:, None],
                             _NEG, 0.0).astype(jnp.float32).reshape(B, 1, S)

    running_att = {}
    for i, lp in enumerate(params['layers']):
        x, a_self, a_cross = decoder_layer_pallas(
            x, enc_output, key_bias_dec, key_bias_enc, lp, num_heads,
            collect_attn=collect_attn)
        if collect_attn:
            running_att[f'layer{i + 1}_dec_self'] = a_self
            running_att[f'layer{i + 1}_dec_cross'] = a_cross

    seq_out = final_linear_pallas(x, params['final_w'], params['final_b'])
    return seq_out, running_att


# ----------------------------------------------------------------------------
# Deterministic parameter init (shapes from Decoder.__init__)
# ----------------------------------------------------------------------------
def positional_encoding(max_len, d_model):
    pos = jnp.arange(max_len, dtype=jnp.float32)[:, None]
    div = jnp.exp(jnp.arange(0, d_model, 2, dtype=jnp.float32) *
                  (-math.log(10000.0) / d_model))
    pe = jnp.zeros((max_len, d_model), jnp.float32)
    pe = pe.at[:, 0::2].set(jnp.sin(pos * div))
    pe = pe.at[:, 1::2].set(jnp.cos(pos * div))
    return pe


def init_params(key, num_layers, d_model, num_heads, d_ff, vocab, max_len):
    def dense_w(k, out_dim, in_dim):
        # PyTorch Linear weight is (out, in); pre-transpose to (in, out).
        return (0.02 * jax.random.normal(k, (out_dim, in_dim), jnp.float32)).T

    def dense_b(k, out_dim):
        return 0.01 * jax.random.normal(k, (1, out_dim), jnp.float32)

    keys = jax.random.split(key, 3 + num_layers)
    params = {
        'emb': 0.02 * jax.random.normal(keys[0], (vocab, d_model), jnp.float32),
        'pe': positional_encoding(max_len, d_model),
        'final_w': dense_w(keys[1], vocab, d_model),
        'final_b': dense_b(keys[2], vocab),
        'layers': [],
    }
    for i in range(num_layers):
        lk = jax.random.split(keys[3 + i], 12)
        lp = {
            'pre_g': jnp.ones((1, d_model), jnp.float32),
            'pre_b': jnp.zeros((1, d_model), jnp.float32),
            'in1_w': dense_w(lk[0], 3 * d_model, d_model),
            'in1_b': dense_b(lk[1], 3 * d_model),
            'o1_w': dense_w(lk[2], d_model, d_model),
            'o1_b': dense_b(lk[3], d_model),
            'ln1_g': jnp.ones((1, d_model), jnp.float32),
            'ln1_b': jnp.zeros((1, d_model), jnp.float32),
            'in2_w': dense_w(lk[4], 3 * d_model, d_model),
            'in2_b': dense_b(lk[5], 3 * d_model),
            'o2_w': dense_w(lk[6], d_model, d_model),
            'o2_b': dense_b(lk[7], d_model),
            'w1': dense_w(lk[8], d_ff, d_model),
            'b1': dense_b(lk[9], d_ff),
            'w2': dense_w(lk[10], d_model, d_ff),
            'b2': dense_b(lk[11], d_model),
            'ln3_g': jnp.ones((1, d_model), jnp.float32),
            'ln3_b': jnp.zeros((1, d_model), jnp.float32),
        }
        params['layers'].append(lp)
    return params


# ----------------------------------------------------------------------------
# Pure-JAX reference (f32, PyTorch eval-mode semantics) for validation
# ----------------------------------------------------------------------------
def _ln_ref(x, g, b, eps=1e-5):
    mu = x.mean(-1, keepdims=True)
    var = ((x - mu) ** 2).mean(-1, keepdims=True)
    return (x - mu) / jnp.sqrt(var + eps) * g + b


def _mha_ref(xq, xkv, in_w, in_b, out_w, out_b, key_mask, attn_mask, H):
    B, Tq, D = xq.shape
    Tk = xkv.shape[1]
    dh = D // H
    q = xq @ in_w[:, :D] + in_b[0, :D]
    k = xkv @ in_w[:, D:2 * D] + in_b[0, D:2 * D]
    v = xkv @ in_w[:, 2 * D:] + in_b[0, 2 * D:]
    q = q.reshape(B, Tq, H, dh).transpose(0, 2, 1, 3)
    k = k.reshape(B, Tk, H, dh).transpose(0, 2, 1, 3)
    v = v.reshape(B, Tk, H, dh).transpose(0, 2, 1, 3)
    s = jnp.einsum('bhqd,bhkd->bhqk', q, k) / math.sqrt(dh)
    if attn_mask is not None:
        s = jnp.where(attn_mask[None, None], -jnp.inf, s)
    if key_mask is not None:
        s = jnp.where(key_mask[:, None, None, :], -jnp.inf, s)
    p = jax.nn.softmax(s, axis=-1)
    ctx = jnp.einsum('bhqk,bhkd->bhqd', p, v).transpose(0, 2, 1, 3).reshape(B, Tq, D)
    return ctx @ out_w + out_b[0]


def decoder_ref(params, tokens, tgt_lens, enc, enc_lens, H):
    B, T = tokens.shape
    S = enc.shape[1]
    x = params['emb'][tokens] + params['pe'][:T]
    pad_dec = jnp.arange(T)[None, :] >= tgt_lens[:, None]
    pad_enc = jnp.arange(S)[None, :] >= enc_lens[:, None]
    causal = jnp.triu(jnp.ones((T, T), bool), k=1)
    for lp in params['layers']:
        xn = _ln_ref(x, lp['pre_g'], lp['pre_b'])
        a1 = _mha_ref(xn, xn, lp['in1_w'], lp['in1_b'], lp['o1_w'], lp['o1_b'],
                      pad_dec, causal, H)
        x = _ln_ref(x + a1, lp['ln1_g'], lp['ln1_b'])
        a2 = _mha_ref(x, enc, lp['in2_w'], lp['in2_b'], lp['o2_w'], lp['o2_b'],
                      pad_enc, None, H)
        x = x + a2
        h = jax.nn.gelu(x @ lp['w1'] + lp['b1'], approximate=False)
        x = x + (h @ lp['w2'] + lp['b2'])
        x = _ln_ref(x, lp['ln3_g'], lp['ln3_b'])
    return x @ params['final_w'] + params['final_b']


# ----------------------------------------------------------------------------
if __name__ == "__main__":
    # Small shapes consistent with the module: batch=2, target seq=8,
    # encoder seq=16, d_model=32, heads=4, d_ff=64, vocab=40, 2 layers.
    B, T, S = 2, 8, 16
    D, H, DFF, V, L, MAXLEN = 32, 4, 64, 40, 2, 64

    key = jax.random.PRNGKey(0)
    pk, tk, ek = jax.random.split(key, 3)

    params = init_params(pk, L, D, H, DFF, V, MAXLEN)
    tokens = jax.random.randint(tk, (B, T), 0, V)                 # padded_targets
    target_lengths = jnp.array([T, 5], jnp.int32)
    enc_output = 0.1 * jax.random.normal(ek, (B, S, D), jnp.float32)
    enc_input_lengths = jnp.array([S, 11], jnp.int32)

    seq_out, running_att = decoder_forward(params, tokens, target_lengths,
                                           enc_output, enc_input_lengths, H)
    seq_out = jax.block_until_ready(seq_out)
    jax.block_until_ready(running_att)

    ref = decoder_ref(params, tokens, target_lengths, enc_output,
                      enc_input_lengths, H)
    max_err = float(jnp.max(jnp.abs(seq_out - ref)))
    assert seq_out.shape == (B, T, V)
    assert running_att['layer1_dec_self'].shape == (B, T, T)
    assert running_att['layer1_dec_cross'].shape == (B, T, S)
    # bf16 matmul operands + approx softmax reciprocal => slightly looser tol.
    assert max_err < 3e-2, f"mismatch vs reference: {max_err}"

    print("KERNEL_OK")
</pallas_src>

<mosaic_0001>
module attributes {stable_mosaic.version = 11 : i64} {
  func.func @_decoder_layer_kernel(%arg0: i32, %arg1: memref<2x8x32xf32, #tpu.memory_space<vmem>>, %arg2: memref<2x16x32xf32, #tpu.memory_space<vmem>>, %arg3: memref<2x1x8xf32, #tpu.memory_space<vmem>>, %arg4: memref<2x1x16xf32, #tpu.memory_space<vmem>>, %arg5: memref<1x32xf32, #tpu.memory_space<vmem>>, %arg6: memref<1x32xf32, #tpu.memory_space<vmem>>, %arg7: memref<32x32xbf16, #tpu.memory_space<vmem>>, %arg8: memref<32x32xbf16, #tpu.memory_space<vmem>>, %arg9: memref<32x32xbf16, #tpu.memory_space<vmem>>, %arg10: memref<1x32xf32, #tpu.memory_space<vmem>>, %arg11: memref<1x32xf32, #tpu.memory_space<vmem>>, %arg12: memref<1x32xf32, #tpu.memory_space<vmem>>, %arg13: memref<32x32xbf16, #tpu.memory_space<vmem>>, %arg14: memref<1x32xf32, #tpu.memory_space<vmem>>, %arg15: memref<1x32xf32, #tpu.memory_space<vmem>>, %arg16: memref<1x32xf32, #tpu.memory_space<vmem>>, %arg17: memref<32x32xbf16, #tpu.memory_space<vmem>>, %arg18: memref<32x32xbf16, #tpu.memory_space<vmem>>, %arg19: memref<32x32xbf16, #tpu.memory_space<vmem>>, %arg20: memref<1x32xf32, #tpu.memory_space<vmem>>, %arg21: memref<1x32xf32, #tpu.memory_space<vmem>>, %arg22: memref<1x32xf32, #tpu.memory_space<vmem>>, %arg23: memref<32x32xbf16, #tpu.memory_space<vmem>>, %arg24: memref<1x32xf32, #tpu.memory_space<vmem>>, %arg25: memref<32x64xbf16, #tpu.memory_space<vmem>>, %arg26: memref<1x64xf32, #tpu.memory_space<vmem>>, %arg27: memref<64x32xbf16, #tpu.memory_space<vmem>>, %arg28: memref<1x32xf32, #tpu.memory_space<vmem>>, %arg29: memref<1x32xf32, #tpu.memory_space<vmem>>, %arg30: memref<1x32xf32, #tpu.memory_space<vmem>>, %arg31: memref<2x8x32xf32, #tpu.memory_space<vmem>>, %arg32: memref<2x8x8xf32, #tpu.memory_space<vmem>>, %arg33: memref<2x8x16xf32, #tpu.memory_space<vmem>>) attributes {dimension_semantics = [#tpu.dimension_semantics<parallel>], iteration_bounds = array<i64: 1>, scalar_prefetch = 0 : i64, scratch_operands = 0 : i64, tpu.core_type = #tpu.core_type<tc>, window_params = [{transform_indices = @transform_0, window_bounds = array<i64: 2, 8, 32>}, {transform_indices = @transform_1, window_bounds = array<i64: 2, 16, 32>}, {transform_indices = @transform_2, window_bounds = array<i64: 2, 1, 8>}, {transform_indices = @transform_3, window_bounds = array<i64: 2, 1, 16>}, {pipeline_mode = #tpu.pipeline_mode<synchronous>, transform_indices = @transform_4, window_bounds = array<i64: 1, 32>}, {pipeline_mode = #tpu.pipeline_mode<synchronous>, transform_indices = @transform_5, window_bounds = array<i64: 1, 32>}, {pipeline_mode = #tpu.pipeline_mode<synchronous>, transform_indices = @transform_6, window_bounds = array<i64: 32, 32>}, {pipeline_mode = #tpu.pipeline_mode<synchronous>, transform_indices = @transform_7, window_bounds = array<i64: 32, 32>}, {pipeline_mode = #tpu.pipeline_mode<synchronous>, transform_indices = @transform_8, window_bounds = array<i64: 32, 32>}, {pipeline_mode = #tpu.pipeline_mode<synchronous>, transform_indices = @transform_9, window_bounds = array<i64: 1, 32>}, {pipeline_mode = #tpu.pipeline_mode<synchronous>, transform_indices = @transform_10, window_bounds = array<i64: 1, 32>}, {pipeline_mode = #tpu.pipeline_mode<synchronous>, transform_indices = @transform_11, window_bounds = array<i64: 1, 32>}, {pipeline_mode = #tpu.pipeline_mode<synchronous>, transform_indices = @transform_12, window_bounds = array<i64: 32, 32>}, {pipeline_mode = #tpu.pipeline_mode<synchronous>, transform_indices = @transform_13, window_bounds = array<i64: 1, 32>}, {pipeline_mode = #tpu.pipeline_mode<synchronous>, transform_indices = @transform_14, window_bounds = array<i64: 1, 32>}, {pipeline_mode = #tpu.pipeline_mode<synchronous>, transform_indices = @transform_15, window_bounds = array<i64: 1, 32>}, {pipeline_mode = #tpu.pipeline_mode<synchronous>, transform_indices = @transform_16, window_bounds = array<i64: 32, 32>}, {pipeline_mode = #tpu.pipeline_mode<synchronous>, transform_indices = @transform_17, window_bounds = array<i64: 32, 32>}, {pipeline_mode = #tpu.pipeline_mode<synchronous>, transform_indices = @transform_18, window_bounds = array<i64: 32, 32>}, {pipeline_mode = #tpu.pipeline_mode<synchronous>, transform_indices = @transform_19, window_bounds = array<i64: 1, 32>}, {pipeline_mode = #tpu.pipeline_mode<synchronous>, transform_indices = @transform_20, window_bounds = array<i64: 1, 32>}, {pipeline_mode = #tpu.pipeline_mode<synchronous>, transform_indices = @transform_21, window_bounds = array<i64: 1, 32>}, {pipeline_mode = #tpu.pipeline_mode<synchronous>, transform_indices = @transform_22, window_bounds = array<i64: 32, 32>}, {pipeline_mode = #tpu.pipeline_mode<synchronous>, transform_indices = @transform_23, window_bounds = array<i64: 1, 32>}, {pipeline_mode = #tpu.pipeline_mode<synchronous>, transform_indices = @transform_24, window_bounds = array<i64: 32, 64>}, {pipeline_mode = #tpu.pipeline_mode<synchronous>, transform_indices = @transform_25, window_bounds = array<i64: 1, 64>}, {pipeline_mode = #tpu.pipeline_mode<synchronous>, transform_indices = @transform_26, window_bounds = array<i64: 64, 32>}, {pipeline_mode = #tpu.pipeline_mode<synchronous>, transform_indices = @transform_27, window_bounds = array<i64: 1, 32>}, {pipeline_mode = #tpu.pipeline_mode<synchronous>, transform_indices = @transform_28, window_bounds = array<i64: 1, 32>}, {pipeline_mode = #tpu.pipeline_mode<synchronous>, transform_indices = @transform_29, window_bounds = array<i64: 1, 32>}, {transform_indices = @transform_30, window_bounds = array<i64: 2, 8, 32>}, {transform_indices = @transform_31, window_bounds = array<i64: 2, 8, 8>}, {transform_indices = @transform_32, window_bounds = array<i64: 2, 8, 16>}]} {
    %c0 = arith.constant 0 : index
    %c0_0 = arith.constant 0 : index
    %c0_1 = arith.constant 0 : index
    %0 = vector.load %arg1[%c0, %c0_0, %c0_1] : memref<2x8x32xf32, #tpu.memory_space<vmem>>, vector<2x8x32xf32>
    %1 = vector.shape_cast %0 : vector<2x8x32xf32> to vector<16x32xf32>
    %c0_2 = arith.constant 0 : index
    %c0_3 = arith.constant 0 : index
    %c0_4 = arith.constant 0 : index
    %2 = vector.load %arg2[%c0_2, %c0_3, %c0_4] : memref<2x16x32xf32, #tpu.memory_space<vmem>>, vector<2x16x32xf32>
    %3 = vector.shape_cast %2 : vector<2x16x32xf32> to vector<32x32xf32>
    %4 = tpu.iota {dimensions = array<i32: 0>} : vector<8x8xi32>
    %5 = tpu.iota {dimensions = array<i32: 1>} : vector<8x8xi32>
    %6 = arith.cmpi sgt, %5, %4 : vector<8x8xi32>
    %cst = arith.constant -1.000000e+30 : f32
    %cst_5 = arith.constant 0.000000e+00 : f32
    %7 = vector.broadcast %cst : f32 to vector<8x8xf32>
    %8 = vector.broadcast %cst_5 : f32 to vector<8x8xf32>
    %9 = arith.select %6, %7, %8 : vector<8x8xi1>, vector<8x8xf32>
    %10 = vector.shape_cast %9 : vector<8x8xf32> to vector<1x8x8xf32>
    %c0_6 = arith.constant 0 : index
    %c0_7 = arith.constant 0 : index
    %c0_8 = arith.constant 0 : index
    %11 = vector.load %arg3[%c0_6, %c0_7, %c0_8] : memref<2x1x8xf32, #tpu.memory_space<vmem>>, vector<2x1x8xf32>
    %12 = vector.broadcast %10 : vector<1x8x8xf32> to vector<2x8x8xf32>
    %13 = vector.broadcast %11 : vector<2x1x8xf32> to vector<2x8x8xf32>
    %14 = arith.addf %12, %13 : vector<2x8x8xf32>
    %c0_9 = arith.constant 0 : index
    %c0_10 = arith.constant 0 : index
    %c0_11 = arith.constant 0 : index
    %15 = vector.load %arg4[%c0_9, %c0_10, %c0_11] : memref<2x1x16xf32, #tpu.memory_space<vmem>>, vector<2x1x16xf32>
    %c0_12 = arith.constant 0 : index
    %c0_13 = arith.constant 0 : index
    %16 = vector.load %arg5[%c0_12, %c0_13] : memref<1x32xf32, #tpu.memory_space<vmem>>, vector<1x32xf32>
    %c0_14 = arith.constant 0 : index
    %c0_15 = arith.constant 0 : index
    %17 = vector.load %arg6[%c0_14, %c0_15] : memref<1x32xf32, #tpu.memory_space<vmem>>, vector<1x32xf32>
    %cst_16 = arith.constant dense<0.000000e+00> : vector<16xf32>
    %18 = vector.multi_reduction <add>, %1, %cst_16 [1] : vector<16x32xf32> to vector<16xf32>
    %19 = vector.shape_cast %18 : vector<16xf32> to vector<16x1xf32>
    %cst_17 = arith.constant 3.200000e+01 : f32
    %20 = vector.broadcast %cst_17 : f32 to vector<16x1xf32>
    %21 = arith.divf %19, %20 : vector<16x1xf32>
    %22 = vector.broadcast %21 : vector<16x1xf32> to vector<16x32xf32>
    %23 = arith.subf %1, %22 : vector<16x32xf32>
    %24 = arith.mulf %23, %23 : vector<16x32xf32>
    %cst_18 = arith.constant dense<0.000000e+00> : vector<16xf32>
    %25 = vector.multi_reduction <add>, %24, %cst_18 [1] : vector<16x32xf32> to vector<16xf32>
    %26 = vector.shape_cast %25 : vector<16xf32> to vector<16x1xf32>
    %cst_19 = arith.constant 3.200000e+01 : f32
    %27 = vector.broadcast %cst_19 : f32 to vector<16x1xf32>
    %28 = arith.divf %26, %27 : vector<16x1xf32>
    %29 = vector.broadcast %21 : vector<16x1xf32> to vector<16x32xf32>
    %30 = arith.subf %1, %29 : vector<16x32xf32>
    %cst_20 = arith.constant 9.99999974E-6 : f32
    %31 = vector.broadcast %cst_20 : f32 to vector<16x1xf32>
    %32 = arith.addf %28, %31 : vector<16x1xf32>
    %33 = math.rsqrt %32 : vector<16x1xf32>
    %34 = vector.broadcast %33 : vector<16x1xf32> to vector<16x32xf32>
    %35 = arith.mulf %30, %34 : vector<16x32xf32>
    %36 = vector.broadcast %16 : vector<1x32xf32> to vector<16x32xf32>
    %37 = arith.mulf %35, %36 : vector<16x32xf32>
    %38 = vector.broadcast %17 : vector<1x32xf32> to vector<16x32xf32>
    %39 = arith.addf %37, %38 : vector<16x32xf32>
    %40 = arith.truncf %39 : vector<16x32xf32> to vector<16x32xbf16>
    %c0_21 = arith.constant 0 : index
    %c0_22 = arith.constant 0 : index
    %41 = vector.load %arg7[%c0_21, %c0_22] : memref<32x32xbf16, #tpu.memory_space<vmem>>, vector<32x32xbf16>
    %cst_23 = arith.constant dense<0.000000e+00> : vector<16x32xf32>
    %42 = tpu.matmul %40, %41, %cst_23 {dimension_numbers = #tpu.dot_dimension_numbers<[1], [0], [0], [1], [0, 0, 1, 1], [], []>} : vector<16x32xbf16>, vector<32x32xbf16>, vector<16x32xf32> -> vector<16x32xf32>
    %c0_24 = arith.constant 0 : index
    %c0_25 = arith.constant 0 : index
    %43 = vector.load %arg10[%c0_24, %c0_25] : memref<1x32xf32, #tpu.memory_space<vmem>>, vector<1x32xf32>
    %44 = vector.broadcast %43 : vector<1x32xf32> to vector<16x32xf32>
    %45 = arith.addf %42, %44 : vector<16x32xf32>
    %c0_26 = arith.constant 0 : index
    %c0_27 = arith.constant 0 : index
    %46 = vector.load %arg8[%c0_26, %c0_27] : memref<32x32xbf16, #tpu.memory_space<vmem>>, vector<32x32xbf16>
    %cst_28 = arith.constant dense<0.000000e+00> : vector<16x32xf32>
    %47 = tpu.matmul %40, %46, %cst_28 {dimension_numbers = #tpu.dot_dimension_numbers<[1], [0], [0], [1], [0, 0, 1, 1], [], []>} : vector<16x32xbf16>, vector<32x32xbf16>, vector<16x32xf32> -> vector<16x32xf32>
    %c0_29 = arith.constant 0 : index
    %c0_30 = arith.constant 0 : index
    %48 = vector.load %arg11[%c0_29, %c0_30] : memref<1x32xf32, #tpu.memory_space<vmem>>, vector<1x32xf32>
    %49 = vector.broadcast %48 : vector<1x32xf32> to vector<16x32xf32>
    %50 = arith.addf %47, %49 : vector<16x32xf32>
    %c0_31 = arith.constant 0 : index
    %c0_32 = arith.constant 0 : index
    %51 = vector.load %arg9[%c0_31, %c0_32] : memref<32x32xbf16, #tpu.memory_space<vmem>>, vector<32x32xbf16>
    %cst_33 = arith.constant dense<0.000000e+00> : vector<16x32xf32>
    %52 = tpu.matmul %40, %51, %cst_33 {dimension_numbers = #tpu.dot_dimension_numbers<[1], [0], [0], [1], [0, 0, 1, 1], [], []>} : vector<16x32xbf16>, vector<32x32xbf16>, vector<16x32xf32> -> vector<16x32xf32>
    %c0_34 = arith.constant 0 : index
    %c0_35 = arith.constant 0 : index
    %53 = vector.load %arg12[%c0_34, %c0_35] : memref<1x32xf32, #tpu.memory_space<vmem>>, vector<1x32xf32>
    %54 = vector.broadcast %53 : vector<1x32xf32> to vector<16x32xf32>
    %55 = arith.addf %52, %54 : vector<16x32xf32>
    %56 = vector.shape_cast %45 : vector<16x32xf32> to vector<2x8x32xf32>
    %57 = vector.shape_cast %50 : vector<16x32xf32> to vector<2x8x32xf32>
    %58 = vector.shape_cast %55 : vector<16x32xf32> to vector<2x8x32xf32>
    %cst_36 = arith.constant 0.000000e+00 : f32
    %59 = vector.broadcast %cst_36 : f32 to vector<2x8x8xf32>
    %60 = vector.extract_strided_slice %56 {offsets = [0, 0, 0], sizes = [2, 8, 8], strides = [1, 1, 1]} : vector<2x8x32xf32> to vector<2x8x8xf32>
    %61 = vector.extract_strided_slice %57 {offsets = [0, 0, 0], sizes = [2, 8, 8], strides = [1, 1, 1]} : vector<2x8x32xf32> to vector<2x8x8xf32>
    %62 = vector.extract_strided_slice %58 {offsets = [0, 0, 0], sizes = [2, 8, 8], strides = [1, 1, 1]} : vector<2x8x32xf32> to vector<2x8x8xf32>
    "tpu.trace_start"() <{level = 10 : i32, message = "bqd,bkd->bqk"}> : () -> ()
    %cst_37 = arith.constant dense<0.000000e+00> : vector<2x8x8xf32>
    %63 = tpu.matmul %60, %61, %cst_37 {dimension_numbers = #tpu.dot_dimension_numbers<[2], [2], [1], [1], [0, 0, 0, 1, 1, 1], [0], [0]>} : vector<2x8x8xf32>, vector<2x8x8xf32>, vector<2x8x8xf32> -> vector<2x8x8xf32>
    "tpu.trace_stop"() : () -> ()
    %cst_38 = arith.constant 0.353553385 : f32
    %64 = vector.broadcast %cst_38 : f32 to vector<2x8x8xf32>
    %65 = arith.mulf %63, %64 : vector<2x8x8xf32>
    %66 = arith.addf %65, %14 : vector<2x8x8xf32>
    %cst_39 = arith.constant dense<0xFF800000> : vector<2x8xf32>
    %67 = vector.multi_reduction <maximumf>, %66, %cst_39 [2] : vector<2x8x8xf32> to vector<2x8xf32>
    %68 = vector.shape_cast %67 : vector<2x8xf32> to vector<2x8x1xf32>
    %69 = vector.broadcast %68 : vector<2x8x1xf32> to vector<2x8x8xf32>
    %70 = arith.subf %66, %69 : vector<2x8x8xf32>
    %71 = math.exp %70 : vector<2x8x8xf32>
    %cst_40 = arith.constant dense<0.000000e+00> : vector<2x8xf32>
    %72 = vector.multi_reduction <add>, %71, %cst_40 [2] : vector<2x8x8xf32> to vector<2x8xf32>
    %73 = vector.shape_cast %72 : vector<2x8xf32> to vector<2x8x1xf32>
    %74 = tpu.reciprocal %73 {approx = true} : vector<2x8x1xf32> -> vector<2x8x1xf32>
    %75 = vector.broadcast %74 : vector<2x8x1xf32> to vector<2x8x8xf32>
    %76 = arith.mulf %71, %75 : vector<2x8x8xf32>
    "tpu.trace_start"() <{level = 10 : i32, message = "bqk,bkd->bqd"}> : () -> ()
    %cst_41 = arith.constant dense<0.000000e+00> : vector<2x8x8xf32>
    %77 = tpu.matmul %76, %62, %cst_41 {dimension_numbers = #tpu.dot_dimension_numbers<[2], [1], [1], [2], [0, 0, 0, 1, 1, 2], [0], [0]>} : vector<2x8x8xf32>, vector<2x8x8xf32>, vector<2x8x8xf32> -> vector<2x8x8xf32>
    "tpu.trace_stop"() : () -> ()
    %78 = arith.addf %59, %76 : vector<2x8x8xf32>
    %79 = vector.extract_strided_slice %56 {offsets = [0, 0, 8], sizes = [2, 8, 8], strides = [1, 1, 1]} : vector<2x8x32xf32> to vector<2x8x8xf32>
    %80 = vector.extract_strided_slice %57 {offsets = [0, 0, 8], sizes = [2, 8, 8], strides = [1, 1, 1]} : vector<2x8x32xf32> to vector<2x8x8xf32>
    %81 = vector.extract_strided_slice %58 {offsets = [0, 0, 8], sizes = [2, 8, 8], strides = [1, 1, 1]} : vector<2x8x32xf32> to vector<2x8x8xf32>
    "tpu.trace_start"() <{level = 10 : i32, message = "bqd,bkd->bqk"}> : () -> ()
    %cst_42 = arith.constant dense<0.000000e+00> : vector<2x8x8xf32>
    %82 = tpu.matmul %79, %80, %cst_42 {dimension_numbers = #tpu.dot_dimension_numbers<[2], [2], [1], [1], [0, 0, 0, 1, 1, 1], [0], [0]>} : vector<2x8x8xf32>, vector<2x8x8xf32>, vector<2x8x8xf32> -> vector<2x8x8xf32>
    "tpu.trace_stop"() : () -> ()
    %cst_43 = arith.constant 0.353553385 : f32
    %83 = vector.broadcast %cst_43 : f32 to vector<2x8x8xf32>
    %84 = arith.mulf %82, %83 : vector<2x8x8xf32>
    %85 = arith.addf %84, %14 : vector<2x8x8xf32>
    %cst_44 = arith.constant dense<0xFF800000> : vector<2x8xf32>
    %86 = vector.multi_reduction <maximumf>, %85, %cst_44 [2] : vector<2x8x8xf32> to vector<2x8xf32>
    %87 = vector.shape_cast %86 : vector<2x8xf32> to vector<2x8x1xf32>
    %88 = vector.broadcast %87 : vector<2x8x1xf32> to vector<2x8x8xf32>
    %89 = arith.subf %85, %88 : vector<2x8x8xf32>
    %90 = math.exp %89 : vector<2x8x8xf32>
    %cst_45 = arith.constant dense<0.000000e+00> : vector<2x8xf32>
    %91 = vector.multi_reduction <add>, %90, %cst_45 [2] : vector<2x8x8xf32> to vector<2x8xf32>
    %92 = vector.shape_cast %91 : vector<2x8xf32> to vector<2x8x1xf32>
    %93 = tpu.reciprocal %92 {approx = true} : vector<2x8x1xf32> -> vector<2x8x1xf32>
    %94 = vector.broadcast %93 : vector<2x8x1xf32> to vector<2x8x8xf32>
    %95 = arith.mulf %90, %94 : vector<2x8x8xf32>
    "tpu.trace_start"() <{level = 10 : i32, message = "bqk,bkd->bqd"}> : () -> ()
    %cst_46 = arith.constant dense<0.000000e+00> : vector<2x8x8xf32>
    %96 = tpu.matmul %95, %81, %cst_46 {dimension_numbers = #tpu.dot_dimension_numbers<[2], [1], [1], [2], [0, 0, 0, 1, 1, 2], [0], [0]>} : vector<2x8x8xf32>, vector<2x8x8xf32>, vector<2x8x8xf32> -> vector<2x8x8xf32>
    "tpu.trace_stop"() : () -> ()
    %97 = arith.addf %78, %95 : vector<2x8x8xf32>
    %98 = vector.extract_strided_slice %56 {offsets = [0, 0, 16], sizes = [2, 8, 8], strides = [1, 1, 1]} : vector<2x8x32xf32> to vector<2x8x8xf32>
    %99 = vector.extract_strided_slice %57 {offsets = [0, 0, 16], sizes = [2, 8, 8], strides = [1, 1, 1]} : vector<2x8x32xf32> to vector<2x8x8xf32>
    %100 = vector.extract_strided_slice %58 {offsets = [0, 0, 16], sizes = [2, 8, 8], strides = [1, 1, 1]} : vector<2x8x32xf32> to vector<2x8x8xf32>
    "tpu.trace_start"() <{level = 10 : i32, message = "bqd,bkd->bqk"}> : () -> ()
    %cst_47 = arith.constant dense<0.000000e+00> : vector<2x8x8xf32>
    %101 = tpu.matmul %98, %99, %cst_47 {dimension_numbers = #tpu.dot_dimension_numbers<[2], [2], [1], [1], [0, 0, 0, 1, 1, 1], [0], [0]>} : vector<2x8x8xf32>, vector<2x8x8xf32>, vector<2x8x8xf32> -> vector<2x8x8xf32>
    "tpu.trace_stop"() : () -> ()
    %cst_48 = arith.constant 0.353553385 : f32
    %102 = vector.broadcast %cst_48 : f32 to vector<2x8x8xf32>
    %103 = arith.mulf %101, %102 : vector<2x8x8xf32>
    %104 = arith.addf %103, %14 : vector<2x8x8xf32>
    %cst_49 = arith.constant dense<0xFF800000> : vector<2x8xf32>
    %105 = vector.multi_reduction <maximumf>, %104, %cst_49 [2] : vector<2x8x8xf32> to vector<2x8xf32>
    %106 = vector.shape_cast %105 : vector<2x8xf32> to vector<2x8x1xf32>
    %107 = vector.broadcast %106 : vector<2x8x1xf32> to vector<2x8x8xf32>
    %108 = arith.subf %104, %107 : vector<2x8x8xf32>
    %109 = math.exp %108 : vector<2x8x8xf32>
    %cst_50 = arith.constant dense<0.000000e+00> : vector<2x8xf32>
    %110 = vector.multi_reduction <add>, %109, %cst_50 [2] : vector<2x8x8xf32> to vector<2x8xf32>
    %111 = vector.shape_cast %110 : vector<2x8xf32> to vector<2x8x1xf32>
    %112 = tpu.reciprocal %111 {approx = true} : vector<2x8x1xf32> -> vector<2x8x1xf32>
    %113 = vector.broadcast %112 : vector<2x8x1xf32> to vector<2x8x8xf32>
    %114 = arith.mulf %109, %113 : vector<2x8x8xf32>
    "tpu.trace_start"() <{level = 10 : i32, message = "bqk,bkd->bqd"}> : () -> ()
    %cst_51 = arith.constant dense<0.000000e+00> : vector<2x8x8xf32>
    %115 = tpu.matmul %114, %100, %cst_51 {dimension_numbers = #tpu.dot_dimension_numbers<[2], [1], [1], [2], [0, 0, 0, 1, 1, 2], [0], [0]>} : vector<2x8x8xf32>, vector<2x8x8xf32>, vector<2x8x8xf32> -> vector<2x8x8xf32>
    "tpu.trace_stop"() : () -> ()
    %116 = arith.addf %97, %114 : vector<2x8x8xf32>
    %117 = vector.extract_strided_slice %56 {offsets = [0, 0, 24], sizes = [2, 8, 8], strides = [1, 1, 1]} : vector<2x8x32xf32> to vector<2x8x8xf32>
    %118 = vector.extract_strided_slice %57 {offsets = [0, 0, 24], sizes = [2, 8, 8], strides = [1, 1, 1]} : vector<2x8x32xf32> to vector<2x8x8xf32>
    %119 = vector.extract_strided_slice %58 {offsets = [0, 0, 24], sizes = [2, 8, 8], strides = [1, 1, 1]} : vector<2x8x32xf32> to vector<2x8x8xf32>
    "tpu.trace_start"() <{level = 10 : i32, message = "bqd,bkd->bqk"}> : () -> ()
    %cst_52 = arith.constant dense<0.000000e+00> : vector<2x8x8xf32>
    %120 = tpu.matmul %117, %118, %cst_52 {dimension_numbers = #tpu.dot_dimension_numbers<[2], [2], [1], [1], [0, 0, 0, 1, 1, 1], [0], [0]>} : vector<2x8x8xf32>, vector<2x8x8xf32>, vector<2x8x8xf32> -> vector<2x8x8xf32>
    "tpu.trace_stop"() : () -> ()
    %cst_53 = arith.constant 0.353553385 : f32
    %121 = vector.broadcast %cst_53 : f32 to vector<2x8x8xf32>
    %122 = arith.mulf %120, %121 : vector<2x8x8xf32>
    %123 = arith.addf %122, %14 : vector<2x8x8xf32>
    %cst_54 = arith.constant dense<0xFF800000> : vector<2x8xf32>
    %124 = vector.multi_reduction <maximumf>, %123, %cst_54 [2] : vector<2x8x8xf32> to vector<2x8xf32>
    %125 = vector.shape_cast %124 : vector<2x8xf32> to vector<2x8x1xf32>
    %126 = vector.broadcast %125 : vector<2x8x1xf32> to vector<2x8x8xf32>
    %127 = arith.subf %123, %126 : vector<2x8x8xf32>
    %128 = math.exp %127 : vector<2x8x8xf32>
    %cst_55 = arith.constant dense<0.000000e+00> : vector<2x8xf32>
    %129 = vector.multi_reduction <add>, %128, %cst_55 [2] : vector<2x8x8xf32> to vector<2x8xf32>
    %130 = vector.shape_cast %129 : vector<2x8xf32> to vector<2x8x1xf32>
    %131 = tpu.reciprocal %130 {approx = true} : vector<2x8x1xf32> -> vector<2x8x1xf32>
    %132 = vector.broadcast %131 : vector<2x8x1xf32> to vector<2x8x8xf32>
    %133 = arith.mulf %128, %132 : vector<2x8x8xf32>
    "tpu.trace_start"() <{level = 10 : i32, message = "bqk,bkd->bqd"}> : () -> ()
    %cst_56 = arith.constant dense<0.000000e+00> : vector<2x8x8xf32>
    %134 = tpu.matmul %133, %119, %cst_56 {dimension_numbers = #tpu.dot_dimension_numbers<[2], [1], [1], [2], [0, 0, 0, 1, 1, 2], [0], [0]>} : vector<2x8x8xf32>, vector<2x8x8xf32>, vector<2x8x8xf32> -> vector<2x8x8xf32>
    "tpu.trace_stop"() : () -> ()
    %135 = arith.addf %116, %133 : vector<2x8x8xf32>
    %136 = tpu.concatenate %77, %96, %115, %134 in 2 : vector<2x8x8xf32>, vector<2x8x8xf32>, vector<2x8x8xf32>, vector<2x8x8xf32> -> vector<2x8x32xf32>
    %cst_57 = arith.constant 2.500000e-01 : f32
    %137 = vector.broadcast %cst_57 : f32 to vector<2x8x8xf32>
    %138 = arith.mulf %135, %137 : vector<2x8x8xf32>
    %139 = vector.shape_cast %136 : vector<2x8x32xf32> to vector<16x32xf32>
    %140 = arith.truncf %139 : vector<16x32xf32> to vector<16x32xbf16>
    %c0_58 = arith.constant 0 : index
    %c0_59 = arith.constant 0 : index
    %141 = vector.load %arg13[%c0_58, %c0_59] : memref<32x32xbf16, #tpu.memory_space<vmem>>, vector<32x32xbf16>
    %cst_60 = arith.constant dense<0.000000e+00> : vector<16x32xf32>
    %142 = tpu.matmul %140, %141, %cst_60 {dimension_numbers = #tpu.dot_dimension_numbers<[1], [0], [0], [1], [0, 0, 1, 1], [], []>} : vector<16x32xbf16>, vector<32x32xbf16>, vector<16x32xf32> -> vector<16x32xf32>
    %c0_61 = arith.constant 0 : index
    %c0_62 = arith.constant 0 : index
    %143 = vector.load %arg14[%c0_61, %c0_62] : memref<1x32xf32, #tpu.memory_space<vmem>>, vector<1x32xf32>
    %144 = vector.broadcast %143 : vector<1x32xf32> to vector<16x32xf32>
    %145 = arith.addf %142, %144 : vector<16x32xf32>
    %146 = arith.addf %1, %145 : vector<16x32xf32>
    %c0_63 = arith.constant 0 : index
    %c0_64 = arith.constant 0 : index
    %147 = vector.load %arg15[%c0_63, %c0_64] : memref<1x32xf32, #tpu.memory_space<vmem>>, vector<1x32xf32>
    %c0_65 = arith.constant 0 : index
    %c0_66 = arith.constant 0 : index
    %148 = vector.load %arg16[%c0_65, %c0_66] : memref<1x32xf32, #tpu.memory_space<vmem>>, vector<1x32xf32>
    %cst_67 = arith.constant dense<0.000000e+00> : vector<16xf32>
    %149 = vector.multi_reduction <add>, %146, %cst_67 [1] : vector<16x32xf32> to vector<16xf32>
    %150 = vector.shape_cast %149 : vector<16xf32> to vector<16x1xf32>
    %cst_68 = arith.constant 3.200000e+01 : f32
    %151 = vector.broadcast %cst_68 : f32 to vector<16x1xf32>
    %152 = arith.divf %150, %151 : vector<16x1xf32>
    %153 = vector.broadcast %152 : vector<16x1xf32> to vector<16x32xf32>
    %154 = arith.subf %146, %153 : vector<16x32xf32>
    %155 = arith.mulf %154, %154 : vector<16x32xf32>
    %cst_69 = arith.constant dense<0.000000e+00> : vector<16xf32>
    %156 = vector.multi_reduction <add>, %155, %cst_69 [1] : vector<16x32xf32> to vector<16xf32>
    %157 = vector.shape_cast %156 : vector<16xf32> to vector<16x1xf32>
    %cst_70 = arith.constant 3.200000e+01 : f32
    %158 = vector.broadcast %cst_70 : f32 to vector<16x1xf32>
    %159 = arith.divf %157, %158 : vector<16x1xf32>
    %160 = vector.broadcast %152 : vector<16x1xf32> to vector<16x32xf32>
    %161 = arith.subf %146, %160 : vector<16x32xf32>
    %cst_71 = arith.constant 9.99999974E-6 : f32
    %162 = vector.broadcast %cst_71 : f32 to vector<16x1xf32>
    %163 = arith.addf %159, %162 : vector<16x1xf32>
    %164 = math.rsqrt %163 : vector<16x1xf32>
    %165 = vector.broadcast %164 : vector<16x1xf32> to vector<16x32xf32>
    %166 = arith.mulf %161, %165 : vector<16x32xf32>
    %167 = vector.broadcast %147 : vector<1x32xf32> to vector<16x32xf32>
    %168 = arith.mulf %166, %167 : vector<16x32xf32>
    %169 = vector.broadcast %148 : vector<1x32xf32> to vector<16x32xf32>
    %170 = arith.addf %168, %169 : vector<16x32xf32>
    %171 = arith.truncf %170 : vector<16x32xf32> to vector<16x32xbf16>
    %172 = arith.truncf %3 : vector<32x32xf32> to vector<32x32xbf16>
    %c0_72 = arith.constant 0 : index
    %c0_73 = arith.constant 0 : index
    %173 = vector.load %arg17[%c0_72, %c0_73] : memref<32x32xbf16, #tpu.memory_space<vmem>>, vector<32x32xbf16>
    %cst_74 = arith.constant dense<0.000000e+00> : vector<16x32xf32>
    %174 = tpu.matmul %171, %173, %cst_74 {dimension_numbers = #tpu.dot_dimension_numbers<[1], [0], [0], [1], [0, 0, 1, 1], [], []>} : vector<16x32xbf16>, vector<32x32xbf16>, vector<16x32xf32> -> vector<16x32xf32>
    %c0_75 = arith.constant 0 : index
    %c0_76 = arith.constant 0 : index
    %175 = vector.load %arg20[%c0_75, %c0_76] : memref<1x32xf32, #tpu.memory_space<vmem>>, vector<1x32xf32>
    %176 = vector.broadcast %175 : vector<1x32xf32> to vector<16x32xf32>
    %177 = arith.addf %174, %176 : vector<16x32xf32>
    %c0_77 = arith.constant 0 : index
    %c0_78 = arith.constant 0 : index
    %178 = vector.load %arg18[%c0_77, %c0_78] : memref<32x32xbf16, #tpu.memory_space<vmem>>, vector<32x32xbf16>
    %cst_79 = arith.constant dense<0.000000e+00> : vector<32x32xf32>
    %179 = tpu.matmul %172, %178, %cst_79 {dimension_numbers = #tpu.dot_dimension_numbers<[1], [0], [0], [1], [0, 0, 1, 1], [], []>} : vector<32x32xbf16>, vector<32x32xbf16>, vector<32x32xf32> -> vector<32x32xf32>
    %c0_80 = arith.constant 0 : index
    %c0_81 = arith.constant 0 : index
    %180 = vector.load %arg21[%c0_80, %c0_81] : memref<1x32xf32, #tpu.memory_space<vmem>>, vector<1x32xf32>
    %181 = vector.broadcast %180 : vector<1x32xf32> to vector<32x32xf32>
    %182 = arith.addf %179, %181 : vector<32x32xf32>
    %c0_82 = arith.constant 0 : index
    %c0_83 = arith.constant 0 : index
    %183 = vector.load %arg19[%c0_82, %c0_83] : memref<32x32xbf16, #tpu.memory_space<vmem>>, vector<32x32xbf16>
    %cst_84 = arith.constant dense<0.000000e+00> : vector<32x32xf32>
    %184 = tpu.matmul %172, %183, %cst_84 {dimension_numbers = #tpu.dot_dimension_numbers<[1], [0], [0], [1], [0, 0, 1, 1], [], []>} : vector<32x32xbf16>, vector<32x32xbf16>, vector<32x32xf32> -> vector<32x32xf32>
    %c0_85 = arith.constant 0 : index
    %c0_86 = arith.constant 0 : index
    %185 = vector.load %arg22[%c0_85, %c0_86] : memref<1x32xf32, #tpu.memory_space<vmem>>, vector<1x32xf32>
    %186 = vector.broadcast %185 : vector<1x32xf32> to vector<32x32xf32>
    %187 = arith.addf %184, %186 : vector<32x32xf32>
    %188 = vector.shape_cast %177 : vector<16x32xf32> to vector<2x8x32xf32>
    %189 = vector.shape_cast %182 : vector<32x32xf32> to vector<2x16x32xf32>
    %190 = vector.shape_cast %187 : vector<32x32xf32> to vector<2x16x32xf32>
    %cst_87 = arith.constant 0.000000e+00 : f32
    %191 = vector.broadcast %cst_87 : f32 to vector<2x8x16xf32>
    %192 = vector.extract_strided_slice %188 {offsets = [0, 0, 0], sizes = [2, 8, 8], strides = [1, 1, 1]} : vector<2x8x32xf32> to vector<2x8x8xf32>
    %193 = vector.extract_strided_slice %189 {offsets = [0, 0, 0], sizes = [2, 16, 8], strides = [1, 1, 1]} : vector<2x16x32xf32> to vector<2x16x8xf32>
    %194 = vector.extract_strided_slice %190 {offsets = [0, 0, 0], sizes = [2, 16, 8], strides = [1, 1, 1]} : vector<2x16x32xf32> to vector<2x16x8xf32>
    "tpu.trace_start"() <{level = 10 : i32, message = "bqd,bkd->bqk"}> : () -> ()
    %cst_88 = arith.constant dense<0.000000e+00> : vector<2x8x16xf32>
    %195 = tpu.matmul %192, %193, %cst_88 {dimension_numbers = #tpu.dot_dimension_numbers<[2], [2], [1], [1], [0, 0, 0, 1, 1, 1], [0], [0]>} : vector<2x8x8xf32>, vector<2x16x8xf32>, vector<2x8x16xf32> -> vector<2x8x16xf32>
    "tpu.trace_stop"() : () -> ()
    %cst_89 = arith.constant 0.353553385 : f32
    %196 = vector.broadcast %cst_89 : f32 to vector<2x8x16xf32>
    %197 = arith.mulf %195, %196 : vector<2x8x16xf32>
    %198 = vector.broadcast %15 : vector<2x1x16xf32> to vector<2x8x16xf32>
    %199 = arith.addf %197, %198 : vector<2x8x16xf32>
    %cst_90 = arith.constant dense<0xFF800000> : vector<2x8xf32>
    %200 = vector.multi_reduction <maximumf>, %199, %cst_90 [2] : vector<2x8x16xf32> to vector<2x8xf32>
    %201 = vector.shape_cast %200 : vector<2x8xf32> to vector<2x8x1xf32>
    %202 = vector.broadcast %201 : vector<2x8x1xf32> to vector<2x8x16xf32>
    %203 = arith.subf %199, %202 : vector<2x8x16xf32>
    %204 = math.exp %203 : vector<2x8x16xf32>
    %cst_91 = arith.constant dense<0.000000e+00> : vector<2x8xf32>
    %205 = vector.multi_reduction <add>, %204, %cst_91 [2] : vector<2x8x16xf32> to vector<2x8xf32>
    %206 = vector.shape_cast %205 : vector<2x8xf32> to vector<2x8x1xf32>
    %207 = tpu.reciprocal %206 {approx = true} : vector<2x8x1xf32> -> vector<2x8x1xf32>
    %208 = vector.broadcast %207 : vector<2x8x1xf32> to vector<2x8x16xf32>
    %209 = arith.mulf %204, %208 : vector<2x8x16xf32>
    "tpu.trace_start"() <{level = 10 : i32, message = "bqk,bkd->bqd"}> : () -> ()
    %cst_92 = arith.constant dense<0.000000e+00> : vector<2x8x8xf32>
    %210 = tpu.matmul %209, %194, %cst_92 {dimension_numbers = #tpu.dot_dimension_numbers<[2], [1], [1], [2], [0, 0, 0, 1, 1, 2], [0], [0]>} : vector<2x8x16xf32>, vector<2x16x8xf32>, vector<2x8x8xf32> -> vector<2x8x8xf32>
    "tpu.trace_stop"() : () -> ()
    %211 = arith.addf %191, %209 : vector<2x8x16xf32>
    %212 = vector.extract_strided_slice %188 {offsets = [0, 0, 8], sizes = [2, 8, 8], strides = [1, 1, 1]} : vector<2x8x32xf32> to vector<2x8x8xf32>
    %213 = vector.extract_strided_slice %189 {offsets = [0, 0, 8], sizes = [2, 16, 8], strides = [1, 1, 1]} : vector<2x16x32xf32> to vector<2x16x8xf32>
    %214 = vector.extract_strided_slice %190 {offsets = [0, 0, 8], sizes = [2, 16, 8], strides = [1, 1, 1]} : vector<2x16x32xf32> to vector<2x16x8xf32>
    "tpu.trace_start"() <{level = 10 : i32, message = "bqd,bkd->bqk"}> : () -> ()
    %cst_93 = arith.constant dense<0.000000e+00> : vector<2x8x16xf32>
    %215 = tpu.matmul %212, %213, %cst_93 {dimension_numbers = #tpu.dot_dimension_numbers<[2], [2], [1], [1], [0, 0, 0, 1, 1, 1], [0], [0]>} : vector<2x8x8xf32>, vector<2x16x8xf32>, vector<2x8x16xf32> -> vector<2x8x16xf32>
    "tpu.trace_stop"() : () -> ()
    %cst_94 = arith.constant 0.353553385 : f32
    %216 = vector.broadcast %cst_94 : f32 to vector<2x8x16xf32>
    %217 = arith.mulf %215, %216 : vector<2x8x16xf32>
    %218 = vector.broadcast %15 : vector<2x1x16xf32> to vector<2x8x16xf32>
    %219 = arith.addf %217, %218 : vector<2x8x16xf32>
    %cst_95 = arith.constant dense<0xFF800000> : vector<2x8xf32>
    %220 = vector.multi_reduction <maximumf>, %219, %cst_95 [2] : vector<2x8x16xf32> to vector<2x8xf32>
    %221 = vector.shape_cast %220 : vector<2x8xf32> to vector<2x8x1xf32>
    %222 = vector.broadcast %221 : vector<2x8x1xf32> to vector<2x8x16xf32>
    %223 = arith.subf %219, %222 : vector<2x8x16xf32>
    %224 = math.exp %223 : vector<2x8x16xf32>
    %cst_96 = arith.constant dense<0.000000e+00> : vector<2x8xf32>
    %225 = vector.multi_reduction <add>, %224, %cst_96 [2] : vector<2x8x16xf32> to vector<2x8xf32>
    %226 = vector.shape_cast %225 : vector<2x8xf32> to vector<2x8x1xf32>
    %227 = tpu.reciprocal %226 {approx = true} : vector<2x8x1xf32> -> vector<2x8x1xf32>
    %228 = vector.broadcast %227 : vector<2x8x1xf32> to vector<2x8x16xf32>
    %229 = arith.mulf %224, %228 : vector<2x8x16xf32>
    "tpu.trace_start"() <{level = 10 : i32, message = "bqk,bkd->bqd"}> : () -> ()
    %cst_97 = arith.constant dense<0.000000e+00> : vector<2x8x8xf32>
    %230 = tpu.matmul %229, %214, %cst_97 {dimension_numbers = #tpu.dot_dimension_numbers<[2], [1], [1], [2], [0, 0, 0, 1, 1, 2], [0], [0]>} : vector<2x8x16xf32>, vector<2x16x8xf32>, vector<2x8x8xf32> -> vector<2x8x8xf32>
    "tpu.trace_stop"() : () -> ()
    %231 = arith.addf %211, %229 : vector<2x8x16xf32>
    %232 = vector.extract_strided_slice %188 {offsets = [0, 0, 16], sizes = [2, 8, 8], strides = [1, 1, 1]} : vector<2x8x32xf32> to vector<2x8x8xf32>
    %233 = vector.extract_strided_slice %189 {offsets = [0, 0, 16], sizes = [2, 16, 8], strides = [1, 1, 1]} : vector<2x16x32xf32> to vector<2x16x8xf32>
    %234 = vector.extract_strided_slice %190 {offsets = [0, 0, 16], sizes = [2, 16, 8], strides = [1, 1, 1]} : vector<2x16x32xf32> to vector<2x16x8xf32>
    "tpu.trace_start"() <{level = 10 : i32, message = "bqd,bkd->bqk"}> : () -> ()
    %cst_98 = arith.constant dense<0.000000e+00> : vector<2x8x16xf32>
    %235 = tpu.matmul %232, %233, %cst_98 {dimension_numbers = #tpu.dot_dimension_numbers<[2], [2], [1], [1], [0, 0, 0, 1, 1, 1], [0], [0]>} : vector<2x8x8xf32>, vector<2x16x8xf32>, vector<2x8x16xf32> -> vector<2x8x16xf32>
    "tpu.trace_stop"() : () -> ()
    %cst_99 = arith.constant 0.353553385 : f32
    %236 = vector.broadcast %cst_99 : f32 to vector<2x8x16xf32>
    %237 = arith.mulf %235, %236 : vector<2x8x16xf32>
    %238 = vector.broadcast %15 : vector<2x1x16xf32> to vector<2x8x16xf32>
    %239 = arith.addf %237, %238 : vector<2x8x16xf32>
    %cst_100 = arith.constant dense<0xFF800000> : vector<2x8xf32>
    %240 = vector.multi_reduction <maximumf>, %239, %cst_100 [2] : vector<2x8x16xf32> to vector<2x8xf32>
    %241 = vector.shape_cast %240 : vector<2x8xf32> to vector<2x8x1xf32>
    %242 = vector.broadcast %241 : vector<2x8x1xf32> to vector<2x8x16xf32>
    %243 = arith.subf %239, %242 : vector<2x8x16xf32>
    %244 = math.exp %243 : vector<2x8x16xf32>
    %cst_101 = arith.constant dense<0.000000e+00> : vector<2x8xf32>
    %245 = vector.multi_reduction <add>, %244, %cst_101 [2] : vector<2x8x16xf32> to vector<2x8xf32>
    %246 = vector.shape_cast %245 : vector<2x8xf32> to vector<2x8x1xf32>
    %247 = tpu.reciprocal %246 {approx = true} : vector<2x8x1xf32> -> vector<2x8x1xf32>
    %248 = vector.broadcast %247 : vector<2x8x1xf32> to vector<2x8x16xf32>
    %249 = arith.mulf %244, %248 : vector<2x8x16xf32>
    "tpu.trace_start"() <{level = 10 : i32, message = "bqk,bkd->bqd"}> : () -> ()
    %cst_102 = arith.constant dense<0.000000e+00> : vector<2x8x8xf32>
    %250 = tpu.matmul %249, %234, %cst_102 {dimension_numbers = #tpu.dot_dimension_numbers<[2], [1], [1], [2], [0, 0, 0, 1, 1, 2], [0], [0]>} : vector<2x8x16xf32>, vector<2x16x8xf32>, vector<2x8x8xf32> -> vector<2x8x8xf32>
    "tpu.trace_stop"() : () -> ()
    %251 = arith.addf %231, %249 : vector<2x8x16xf32>
    %252 = vector.extract_strided_slice %188 {offsets = [0, 0, 24], sizes = [2, 8, 8], strides = [1, 1, 1]} : vector<2x8x32xf32> to vector<2x8x8xf32>
    %253 = vector.extract_strided_slice %189 {offsets = [0, 0, 24], sizes = [2, 16, 8], strides = [1, 1, 1]} : vector<2x16x32xf32> to vector<2x16x8xf32>
    %254 = vector.extract_strided_slice %190 {offsets = [0, 0, 24], sizes = [2, 16, 8], strides = [1, 1, 1]} : vector<2x16x32xf32> to vector<2x16x8xf32>
    "tpu.trace_start"() <{level = 10 : i32, message = "bqd,bkd->bqk"}> : () -> ()
    %cst_103 = arith.constant dense<0.000000e+00> : vector<2x8x16xf32>
    %255 = tpu.matmul %252, %253, %cst_103 {dimension_numbers = #tpu.dot_dimension_numbers<[2], [2], [1], [1], [0, 0, 0, 1, 1, 1], [0], [0]>} : vector<2x8x8xf32>, vector<2x16x8xf32>, vector<2x8x16xf32> -> vector<2x8x16xf32>
    "tpu.trace_stop"() : () -> ()
    %cst_104 = arith.constant 0.353553385 : f32
    %256 = vector.broadcast %cst_104 : f32 to vector<2x8x16xf32>
    %257 = arith.mulf %255, %256 : vector<2x8x16xf32>
    %258 = vector.broadcast %15 : vector<2x1x16xf32> to vector<2x8x16xf32>
    %259 = arith.addf %257, %258 : vector<2x8x16xf32>
    %cst_105 = arith.constant dense<0xFF800000> : vector<2x8xf32>
    %260 = vector.multi_reduction <maximumf>, %259, %cst_105 [2] : vector<2x8x16xf32> to vector<2x8xf32>
    %261 = vector.shape_cast %260 : vector<2x8xf32> to vector<2x8x1xf32>
    %262 = vector.broadcast %261 : vector<2x8x1xf32> to vector<2x8x16xf32>
    %263 = arith.subf %259, %262 : vector<2x8x16xf32>
    %264 = math.exp %263 : vector<2x8x16xf32>
    %cst_106 = arith.constant dense<0.000000e+00> : vector<2x8xf32>
    %265 = vector.multi_reduction <add>, %264, %cst_106 [2] : vector<2x8x16xf32> to vector<2x8xf32>
    %266 = vector.shape_cast %265 : vector<2x8xf32> to vector<2x8x1xf32>
    %267 = tpu.reciprocal %266 {approx = true} : vector<2x8x1xf32> -> vector<2x8x1xf32>
    %268 = vector.broadcast %267 : vector<2x8x1xf32> to vector<2x8x16xf32>
    %269 = arith.mulf %264, %268 : vector<2x8x16xf32>
    "tpu.trace_start"() <{level = 10 : i32, message = "bqk,bkd->bqd"}> : () -> ()
    %cst_107 = arith.constant dense<0.000000e+00> : vector<2x8x8xf32>
    %270 = tpu.matmul %269, %254, %cst_107 {dimension_numbers = #tpu.dot_dimension_numbers<[2], [1], [1], [2], [0, 0, 0, 1, 1, 2], [0], [0]>} : vector<2x8x16xf32>, vector<2x16x8xf32>, vector<2x8x8xf32> -> vector<2x8x8xf32>
    "tpu.trace_stop"() : () -> ()
    %271 = arith.addf %251, %269 : vector<2x8x16xf32>
    %272 = tpu.concatenate %210, %230, %250, %270 in 2 : vector<2x8x8xf32>, vector<2x8x8xf32>, vector<2x8x8xf32>, vector<2x8x8xf32> -> vector<2x8x32xf32>
    %cst_108 = arith.constant 2.500000e-01 : f32
    %273 = vector.broadcast %cst_108 : f32 to vector<2x8x16xf32>
    %274 = arith.mulf %271, %273 : vector<2x8x16xf32>
    %275 = vector.shape_cast %272 : vector<2x8x32xf32> to vector<16x32xf32>
    %276 = arith.truncf %275 : vector<16x32xf32> to vector<16x32xbf16>
    %c0_109 = arith.constant 0 : index
    %c0_110 = arith.constant 0 : index
    %277 = vector.load %arg23[%c0_109, %c0_110] : memref<32x32xbf16, #tpu.memory_space<vmem>>, vector<32x32xbf16>
    %cst_111 = arith.constant dense<0.000000e+00> : vector<16x32xf32>
    %278 = tpu.matmul %276, %277, %cst_111 {dimension_numbers = #tpu.dot_dimension_numbers<[1], [0], [0], [1], [0, 0, 1, 1], [], []>} : vector<16x32xbf16>, vector<32x32xbf16>, vector<16x32xf32> -> vector<16x32xf32>
    %c0_112 = arith.constant 0 : index
    %c0_113 = arith.constant 0 : index
    %279 = vector.load %arg24[%c0_112, %c0_113] : memref<1x32xf32, #tpu.memory_space<vmem>>, vector<1x32xf32>
    %280 = vector.broadcast %279 : vector<1x32xf32> to vector<16x32xf32>
    %281 = arith.addf %278, %280 : vector<16x32xf32>
    %282 = arith.addf %170, %281 : vector<16x32xf32>
    %283 = arith.truncf %282 : vector<16x32xf32> to vector<16x32xbf16>
    %c0_114 = arith.constant 0 : index
    %c0_115 = arith.constant 0 : index
    %284 = vector.load %arg25[%c0_114, %c0_115] : memref<32x64xbf16, #tpu.memory_space<vmem>>, vector<32x64xbf16>
    %cst_116 = arith.constant dense<0.000000e+00> : vector<16x64xf32>
    %285 = tpu.matmul %283, %284, %cst_116 {dimension_numbers = #tpu.dot_dimension_numbers<[1], [0], [0], [1], [0, 0, 1, 1], [], []>} : vector<16x32xbf16>, vector<32x64xbf16>, vector<16x64xf32> -> vector<16x64xf32>
    %c0_117 = arith.constant 0 : index
    %c0_118 = arith.constant 0 : index
    %286 = vector.load %arg26[%c0_117, %c0_118] : memref<1x64xf32, #tpu.memory_space<vmem>>, vector<1x64xf32>
    %287 = vector.broadcast %286 : vector<1x64xf32> to vector<16x64xf32>
    %288 = arith.addf %285, %287 : vector<16x64xf32>
    %cst_119 = arith.constant 5.000000e-01 : f32
    %289 = vector.broadcast %cst_119 : f32 to vector<16x64xf32>
    %290 = arith.mulf %289, %288 : vector<16x64xf32>
    %cst_120 = arith.constant 0.707106769 : f32
    %291 = vector.broadcast %cst_120 : f32 to vector<16x64xf32>
    %292 = arith.mulf %288, %291 : vector<16x64xf32>
    %cst_121 = arith.constant 0.000000e+00 : f32
    %293 = vector.broadcast %cst_121 : f32 to vector<16x64xf32>
    %294 = arith.cmpf oge, %292, %293 : vector<16x64xf32>
    %cst_122 = arith.constant 1.000000e+00 : f32
    %cst_123 = arith.constant -1.000000e+00 : f32
    %295 = vector.broadcast %cst_122 : f32 to vector<16x64xf32>
    %296 = vector.broadcast %cst_123 : f32 to vector<16x64xf32>
    %297 = arith.select %294, %295, %296 : vector<16x64xi1>, vector<16x64xf32>
    %298 = math.absf %292 : vector<16x64xf32>
    %cst_124 = arith.constant 0.327591091 : f32
    %299 = vector.broadcast %cst_124 : f32 to vector<16x64xf32>
    %300 = arith.mulf %299, %298 : vector<16x64xf32>
    %cst_125 = arith.constant 1.000000e+00 : f32
    %301 = vector.broadcast %cst_125 : f32 to vector<16x64xf32>
    %302 = arith.addf %301, %300 : vector<16x64xf32>
    %cst_126 = arith.constant 1.000000e+00 : f32
    %303 = vector.broadcast %cst_126 : f32 to vector<16x64xf32>
    %304 = arith.divf %303, %302 : vector<16x64xf32>
    %cst_127 = arith.constant 1.06140542 : f32
    %305 = vector.broadcast %cst_127 : f32 to vector<16x64xf32>
    %306 = arith.mulf %305, %304 : vector<16x64xf32>
    %cst_128 = arith.constant -1.45315206 : f32
    %307 = vector.broadcast %cst_128 : f32 to vector<16x64xf32>
    %308 = arith.addf %306, %307 : vector<16x64xf32>
    %309 = arith.mulf %308, %304 : vector<16x64xf32>
    %cst_129 = arith.constant 1.42141378 : f32
    %310 = vector.broadcast %cst_129 : f32 to vector<16x64xf32>
    %311 = arith.addf %309, %310 : vector<16x64xf32>
    %312 = arith.mulf %311, %304 : vector<16x64xf32>
    %cst_130 = arith.constant -0.284496725 : f32
    %313 = vector.broadcast %cst_130 : f32 to vector<16x64xf32>
    %314 = arith.addf %312, %313 : vector<16x64xf32>
    %315 = arith.mulf %314, %304 : vector<16x64xf32>
    %cst_131 = arith.constant 0.254829586 : f32
    %316 = vector.broadcast %cst_131 : f32 to vector<16x64xf32>
    %317 = arith.addf %315, %316 : vector<16x64xf32>
    %318 = arith.mulf %317, %304 : vector<16x64xf32>
    %cst_132 = arith.constant 0.000000e+00 : f32
    %319 = vector.broadcast %cst_132 : f32 to vector<16x64xf32>
    %320 = arith.subf %319, %298 : vector<16x64xf32>
    %321 = arith.mulf %320, %298 : vector<16x64xf32>
    %322 = math.exp %321 : vector<16x64xf32>
    %323 = arith.mulf %318, %322 : vector<16x64xf32>
    %cst_133 = arith.constant 1.000000e+00 : f32
    %324 = vector.broadcast %cst_133 : f32 to vector<16x64xf32>
    %325 = arith.subf %324, %323 : vector<16x64xf32>
    %326 = arith.mulf %297, %325 : vector<16x64xf32>
    %cst_134 = arith.constant 1.000000e+00 : f32
    %327 = vector.broadcast %cst_134 : f32 to vector<16x64xf32>
    %328 = arith.addf %327, %326 : vector<16x64xf32>
    %329 = arith.mulf %290, %328 : vector<16x64xf32>
    %330 = arith.truncf %329 : vector<16x64xf32> to vector<16x64xbf16>
    %c0_135 = arith.constant 0 : index
    %c0_136 = arith.constant 0 : index
    %331 = vector.load %arg27[%c0_135, %c0_136] : memref<64x32xbf16, #tpu.memory_space<vmem>>, vector<64x32xbf16>
    %cst_137 = arith.constant dense<0.000000e+00> : vector<16x32xf32>
    %332 = tpu.matmul %330, %331, %cst_137 {dimension_numbers = #tpu.dot_dimension_numbers<[1], [0], [0], [1], [0, 0, 1, 1], [], []>} : vector<16x64xbf16>, vector<64x32xbf16>, vector<16x32xf32> -> vector<16x32xf32>
    %c0_138 = arith.constant 0 : index
    %c0_139 = arith.constant 0 : index
    %333 = vector.load %arg28[%c0_138, %c0_139] : memref<1x32xf32, #tpu.memory_space<vmem>>, vector<1x32xf32>
    %334 = vector.broadcast %333 : vector<1x32xf32> to vector<16x32xf32>
    %335 = arith.addf %332, %334 : vector<16x32xf32>
    %336 = arith.addf %282, %335 : vector<16x32xf32>
    %c0_140 = arith.constant 0 : index
    %c0_141 = arith.constant 0 : index
    %337 = vector.load %arg29[%c0_140, %c0_141] : memref<1x32xf32, #tpu.memory_space<vmem>>, vector<1x32xf32>
    %c0_142 = arith.constant 0 : index
    %c0_143 = arith.constant 0 : index
    %338 = vector.load %arg30[%c0_142, %c0_143] : memref<1x32xf32, #tpu.memory_space<vmem>>, vector<1x32xf32>
    %cst_144 = arith.constant dense<0.000000e+00> : vector<16xf32>
    %339 = vector.multi_reduction <add>, %336, %cst_144 [1] : vector<16x32xf32> to vector<16xf32>
    %340 = vector.shape_cast %339 : vector<16xf32> to vector<16x1xf32>
    %cst_145 = arith.constant 3.200000e+01 : f32
    %341 = vector.broadcast %cst_145 : f32 to vector<16x1xf32>
    %342 = arith.divf %340, %341 : vector<16x1xf32>
    %343 = vector.broadcast %342 : vector<16x1xf32> to vector<16x32xf32>
    %344 = arith.subf %336, %343 : vector<16x32xf32>
    %345 = arith.mulf %344, %344 : vector<16x32xf32>
    %cst_146 = arith.constant dense<0.000000e+00> : vector<16xf32>
    %346 = vector.multi_reduction <add>, %345, %cst_146 [1] : vector<16x32xf32> to vector<16xf32>
    %347 = vector.shape_cast %346 : vector<16xf32> to vector<16x1xf32>
    %cst_147 = arith.constant 3.200000e+01 : f32
    %348 = vector.broadcast %cst_147 : f32 to vector<16x1xf32>
    %349 = arith.divf %347, %348 : vector<16x1xf32>
    %350 = vector.broadcast %342 : vector<16x1xf32> to vector<16x32xf32>
    %351 = arith.subf %336, %350 : vector<16x32xf32>
    %cst_148 = arith.constant 9.99999974E-6 : f32
    %352 = vector.broadcast %cst_148 : f32 to vector<16x1xf32>
    %353 = arith.addf %349, %352 : vector<16x1xf32>
    %354 = math.rsqrt %353 : vector<16x1xf32>
    %355 = vector.broadcast %354 : vector<16x1xf32> to vector<16x32xf32>
    %356 = arith.mulf %351, %355 : vector<16x32xf32>
    %357 = vector.broadcast %337 : vector<1x32xf32> to vector<16x32xf32>
    %358 = arith.mulf %356, %357 : vector<16x32xf32>
    %359 = vector.broadcast %338 : vector<1x32xf32> to vector<16x32xf32>
    %360 = arith.addf %358, %359 : vector<16x32xf32>
    %361 = vector.shape_cast %360 : vector<16x32xf32> to vector<2x8x32xf32>
    %c0_149 = arith.constant 0 : index
    %c0_150 = arith.constant 0 : index
    %c0_151 = arith.constant 0 : index
    %362 = vector.load %arg31[%c0_149, %c0_150, %c0_151] : memref<2x8x32xf32, #tpu.memory_space<vmem>>, vector<2x8x32xf32>
    tpu.vector_store %arg31[%c0_149, %c0_150, %c0_151], %361 {strides = array<i32>} : memref<2x8x32xf32, #tpu.memory_space<vmem>>, vector<2x8x32xf32>,
    %c0_152 = arith.constant 0 : index
    %c0_153 = arith.constant 0 : index
    %c0_154 = arith.constant 0 : index
    %363 = vector.load %arg32[%c0_152, %c0_153, %c0_154] : memref<2x8x8xf32, #tpu.memory_space<vmem>>, vector<2x8x8xf32>
    tpu.vector_store %arg32[%c0_152, %c0_153, %c0_154], %138 {strides = array<i32>} : memref<2x8x8xf32, #tpu.memory_space<vmem>>, vector<2x8x8xf32>,
    %c0_155 = arith.constant 0 : index
    %c0_156 = arith.constant 0 : index
    %c0_157 = arith.constant 0 : index
    %364 = vector.load %arg33[%c0_155, %c0_156, %c0_157] : memref<2x8x16xf32, #tpu.memory_space<vmem>>, vector<2x8x16xf32>
    tpu.vector_store %arg33[%c0_155, %c0_156, %c0_157], %274 {strides = array<i32>} : memref<2x8x16xf32, #tpu.memory_space<vmem>>, vector<2x8x16xf32>,
    return
  }
  func.func @transform_0(%arg0: i32) -> (i32, i32, i32) {
    %c0_i32 = arith.constant 0 : i32
    %c0_i32_0 = arith.constant 0 : i32
    %c0_i32_1 = arith.constant 0 : i32
    return %arg0, %c0_i32, %c0_i32_0 : i32, i32, i32
  }
  func.func @transform_1(%arg0: i32) -> (i32, i32, i32) {
    %c0_i32 = arith.constant 0 : i32
    %c0_i32_0 = arith.constant 0 : i32
    %c0_i32_1 = arith.constant 0 : i32
    return %arg0, %c0_i32, %c0_i32_0 : i32, i32, i32
  }
  func.func @transform_2(%arg0: i32) -> (i32, i32, i32) {
    %c0_i32 = arith.constant 0 : i32
    %c0_i32_0 = arith.constant 0 : i32
    %c0_i32_1 = arith.constant 0 : i32
    return %arg0, %c0_i32, %c0_i32_0 : i32, i32, i32
  }
  func.func @transform_3(%arg0: i32) -> (i32, i32, i32) {
    %c0_i32 = arith.constant 0 : i32
    %c0_i32_0 = arith.constant 0 : i32
    %c0_i32_1 = arith.constant 0 : i32
    return %arg0, %c0_i32, %c0_i32_0 : i32, i32, i32
  }
  func.func @transform_4(%arg0: i32) -> (i32, i32) {
    %c0_i32 = arith.constant 0 : i32
    %c0_i32_0 = arith.constant 0 : i32
    %c0_i32_1 = arith.constant 0 : i32
    return %c0_i32, %c0_i32_0 : i32, i32
  }
  func.func @transform_5(%arg0: i32) -> (i32, i32) {
    %c0_i32 = arith.constant 0 : i32
    %c0_i32_0 = arith.constant 0 : i32
    %c0_i32_1 = arith.constant 0 : i32
    return %c0_i32, %c0_i32_0 : i32, i32
  }
  func.func @transform_6(%arg0: i32) -> (i32, i32) {
    %c0_i32 = arith.constant 0 : i32
    %c0_i32_0 = arith.constant 0 : i32
    %c0_i32_1 = arith.constant 0 : i32
    return %c0_i32, %c0_i32_0 : i32, i32
  }
  func.func @transform_7(%arg0: i32) -> (i32, i32) {
    %c0_i32 = arith.constant 0 : i32
    %c0_i32_0 = arith.constant 0 : i32
    %c0_i32_1 = arith.constant 0 : i32
    return %c0_i32, %c0_i32_0 : i32, i32
  }
  func.func @transform_8(%arg0: i32) -> (i32, i32) {
    %c0_i32 = arith.constant 0 : i32
    %c0_i32_0 = arith.constant 0 : i32
    %c0_i32_1 = arith.constant 0 : i32
    return %c0_i32, %c0_i32_0 : i32, i32
  }
  func.func @transform_9(%arg0: i32) -> (i32, i32) {
    %c0_i32 = arith.constant 0 : i32
    %c0_i32_0 = arith.constant 0 : i32
    %c0_i32_1 = arith.constant 0 : i32
    return %c0_i32, %c0_i32_0 : i32, i32
  }
  func.func @transform_10(%arg0: i32) -> (i32, i32) {
    %c0_i32 = arith.constant 0 : i32
    %c0_i32_0 = arith.constant 0 : i32
    %c0_i32_1 = arith.constant 0 : i32
    return %c0_i32, %c0_i32_0 : i32, i32
  }
  func.func @transform_11(%arg0: i32) -> (i32, i32) {
    %c0_i32 = arith.constant 0 : i32
    %c0_i32_0 = arith.constant 0 : i32
    %c0_i32_1 = arith.constant 0 : i32
    return %c0_i32, %c0_i32_0 : i32, i32
  }
  func.func @transform_12(%arg0: i32) -> (i32, i32) {
    %c0_i32 = arith.constant 0 : i32
    %c0_i32_0 = arith.constant 0 : i32
    %c0_i32_1 = arith.constant 0 : i32
    return %c0_i32, %c0_i32_0 : i32, i32
  }
  func.func @transform_13(%arg0: i32) -> (i32, i32) {
    %c0_i32 = arith.constant 0 : i32
    %c0_i32_0 = arith.constant 0 : i32
    %c0_i32_1 = arith.constant 0 : i32
    return %c0_i32, %c0_i32_0 : i32, i32
  }
  func.func @transform_14(%arg0: i32) -> (i32, i32) {
    %c0_i32 = arith.constant 0 : i32
    %c0_i32_0 = arith.constant 0 : i32
    %c0_i32_1 = arith.constant 0 : i32
    return %c0_i32, %c0_i32_0 : i32, i32
  }
  func.func @transform_15(%arg0: i32) -> (i32, i32) {
    %c0_i32 = arith.constant 0 : i32
    %c0_i32_0 = arith.constant 0 : i32
    %c0_i32_1 = arith.constant 0 : i32
    return %c0_i32, %c0_i32_0 : i32, i32
  }
  func.func @transform_16(%arg0: i32) -> (i32, i32) {
    %c0_i32 = arith.constant 0 : i32
    %c0_i32_0 = arith.constant 0 : i32
    %c0_i32_1 = arith.constant 0 : i32
    return %c0_i32, %c0_i32_0 : i32, i32
  }
  func.func @transform_17(%arg0: i32) -> (i32, i32) {
    %c0_i32 = arith.constant 0 : i32
    %c0_i32_0 = arith.constant 0 : i32
    %c0_i32_1 = arith.constant 0 : i32
    return %c0_i32, %c0_i32_0 : i32, i32
  }
  func.func @transform_18(%arg0: i32) -> (i32, i32) {
    %c0_i32 = arith.constant 0 : i32
    %c0_i32_0 = arith.constant 0 : i32
    %c0_i32_1 = arith.constant 0 : i32
    return %c0_i32, %c0_i32_0 : i32, i32
  }
  func.func @transform_19(%arg0: i32) -> (i32, i32) {
    %c0_i32 = arith.constant 0 : i32
    %c0_i32_0 = arith.constant 0 : i32
    %c0_i32_1 = arith.constant 0 : i32
    return %c0_i32, %c0_i32_0 : i32, i32
  }
  func.func @transform_20(%arg0: i32) -> (i32, i32) {
    %c0_i32 = arith.constant 0 : i32
    %c0_i32_0 = arith.constant 0 : i32
    %c0_i32_1 = arith.constant 0 : i32
    return %c0_i32, %c0_i32_0 : i32, i32
  }
  func.func @transform_21(%arg0: i32) -> (i32, i32) {
    %c0_i32 = arith.constant 0 : i32
    %c0_i32_0 = arith.constant 0 : i32
    %c0_i32_1 = arith.constant 0 : i32
    return %c0_i32, %c0_i32_0 : i32, i32
  }
  func.func @transform_22(%arg0: i32) -> (i32, i32) {
    %c0_i32 = arith.constant 0 : i32
    %c0_i32_0 = arith.constant 0 : i32
    %c0_i32_1 = arith.constant 0 : i32
    return %c0_i32, %c0_i32_0 : i32, i32
  }
  func.func @transform_23(%arg0: i32) -> (i32, i32) {
    %c0_i32 = arith.constant 0 : i32
    %c0_i32_0 = arith.constant 0 : i32
    %c0_i32_1 = arith.constant 0 : i32
    return %c0_i32, %c0_i32_0 : i32, i32
  }
  func.func @transform_24(%arg0: i32) -> (i32, i32) {
    %c0_i32 = arith.constant 0 : i32
    %c0_i32_0 = arith.constant 0 : i32
    %c0_i32_1 = arith.constant 0 : i32
    return %c0_i32, %c0_i32_0 : i32, i32
  }
  func.func @transform_25(%arg0: i32) -> (i32, i32) {
    %c0_i32 = arith.constant 0 : i32
    %c0_i32_0 = arith.constant 0 : i32
    %c0_i32_1 = arith.constant 0 : i32
    return %c0_i32, %c0_i32_0 : i32, i32
  }
  func.func @transform_26(%arg0: i32) -> (i32, i32) {
    %c0_i32 = arith.constant 0 : i32
    %c0_i32_0 = arith.constant 0 : i32
    %c0_i32_1 = arith.constant 0 : i32
    return %c0_i32, %c0_i32_0 : i32, i32
  }
  func.func @transform_27(%arg0: i32) -> (i32, i32) {
    %c0_i32 = arith.constant 0 : i32
    %c0_i32_0 = arith.constant 0 : i32
    %c0_i32_1 = arith.constant 0 : i32
    return %c0_i32, %c0_i32_0 : i32, i32
  }
  func.func @transform_28(%arg0: i32) -> (i32, i32) {
    %c0_i32 = arith.constant 0 : i32
    %c0_i32_0 = arith.constant 0 : i32
    %c0_i32_1 = arith.constant 0 : i32
    return %c0_i32, %c0_i32_0 : i32, i32
  }
  func.func @transform_29(%arg0: i32) -> (i32, i32) {
    %c0_i32 = arith.constant 0 : i32
    %c0_i32_0 = arith.constant 0 : i32
    %c0_i32_1 = arith.constant 0 : i32
    return %c0_i32, %c0_i32_0 : i32, i32
  }
  func.func @transform_30(%arg0: i32) -> (i32, i32, i32) {
    %c0_i32 = arith.constant 0 : i32
    %c0_i32_0 = arith.constant 0 : i32
    %c0_i32_1 = arith.constant 0 : i32
    return %arg0, %c0_i32, %c0_i32_0 : i32, i32, i32
  }
  func.func @transform_31(%arg0: i32) -> (i32, i32, i32) {
    %c0_i32 = arith.constant 0 : i32
    %c0_i32_0 = arith.constant 0 : i32
    %c0_i32_1 = arith.constant 0 : i32
    return %arg0, %c0_i32, %c0_i32_0 : i32, i32, i32
  }
  func.func @transform_32(%arg0: i32) -> (i32, i32, i32) {
    %c0_i32 = arith.constant 0 : i32
    %c0_i32_0 = arith.constant 0 : i32
    %c0_i32_1 = arith.constant 0 : i32
    return %arg0, %c0_i32, %c0_i32_0 : i32, i32, i32
  }
}

</mosaic_0001>

<llo_original>
// kernel: tpu_custom_call.1
$region0: #{tpu_custom_call.1}
  #allocation0 [shape = 'u32[]', space=smem, size = 0x4, offset = 0x4, fixed_abs, tag = 'smem constant byte address 0x4 - core index']
  #allocation1 [shape = 'u32[144,128]{1,0:T(1,128)}', space=vmem, size = 0x12000, scoped, tag = 'internal scratch']
  %s0 = inlined_call_operand.smem [shape: u32[33], index: -1, kind: input, shape index: {}]
  %s1 = sld [smem:[%s0]]
  %s2 = scalar_lea.smem %s0, 1
  %s3 = sld [smem:[%s2]]
  %s4 = scalar_lea.smem %s0, 2
  %s5 = sld [smem:[%s4]]
  %s6 = scalar_lea.smem %s0, 3
  %s7 = sld [smem:[%s6]]
  %s8 = scalar_lea.smem %s0, 4
  %s9 = sld [smem:[%s8]]
  %s10 = scalar_lea.smem %s0, 5
  %s11 = sld [smem:[%s10]]
  %s12 = scalar_lea.smem %s0, 6
  %s13 = sld [smem:[%s12]]
  %s14 = scalar_lea.smem %s0, 7
  %s15 = sld [smem:[%s14]]
  %s16 = scalar_lea.smem %s0, 8
  %s17 = sld [smem:[%s16]]
  %s18 = scalar_lea.smem %s0, 9
  %s19 = sld [smem:[%s18]]
  %s20 = scalar_lea.smem %s0, 10
  %s21 = sld [smem:[%s20]]
  %s22 = scalar_lea.smem %s0, 11
  %s23 = sld [smem:[%s22]]
  %s24 = scalar_lea.smem %s0, 12
  %s25 = sld [smem:[%s24]]
  %s26 = scalar_lea.smem %s0, 13
  %s27 = sld [smem:[%s26]]
  %s28 = scalar_lea.smem %s0, 14
  %s29 = sld [smem:[%s28]]
  %s30 = scalar_lea.smem %s0, 15
  %s31 = sld [smem:[%s30]]
  %s32 = scalar_lea.smem %s0, 16
  %s33 = sld [smem:[%s32]]
  %s34 = scalar_lea.smem %s0, 17
  %s35 = sld [smem:[%s34]]
  %s36 = scalar_lea.smem %s0, 18
  %s37 = sld [smem:[%s36]]
  %s38 = scalar_lea.smem %s0, 19
  %s39 = sld [smem:[%s38]]
  %s40 = scalar_lea.smem %s0, 20
  %s41 = sld [smem:[%s40]]
  %s42 = scalar_lea.smem %s0, 21
  %s43 = sld [smem:[%s42]]
  %s44 = scalar_lea.smem %s0, 22
  %s45 = sld [smem:[%s44]]
  %s46 = scalar_lea.smem %s0, 23
  %s47 = sld [smem:[%s46]]
  %s48 = scalar_lea.smem %s0, 24
  %s49 = sld [smem:[%s48]]
  %s50 = scalar_lea.smem %s0, 25
  %s51 = sld [smem:[%s50]]
  %s52 = scalar_lea.smem %s0, 26
  %s53 = sld [smem:[%s52]]
  %s54 = scalar_lea.smem %s0, 27
  %s55 = sld [smem:[%s54]]
  %s56 = scalar_lea.smem %s0, 28
  %s57 = sld [smem:[%s56]]
  %s58 = scalar_lea.smem %s0, 29
  %s59 = sld [smem:[%s58]]
  %s60 = scalar_lea.smem %s0, 30
  %s61 = sld [smem:[%s60]]
  %s62 = scalar_lea.smem %s0, 31
  %s63 = sld [smem:[%s62]]
  %s64 = scalar_lea.smem %s0, 32
  %s65 = sld [smem:[%s64]]
  %66 = xla_tuple %s61, %s63, %s65
  %s67 = sld [smem:[#allocation0]]
  $region206: #{tpu_custom_call.1} parent=0
    _
  %s69 = ssub.s32 1, %s67
  %s70 = scalar_select 0, %s69, %s67
  $region1: #{tpu_custom_call.1} parent=0
    #allocation2 [shape = 'u8[1024]{0}', space=vmem, size = 0x400, scoped, tag = 'input window, operand 2, single buffered']
    #allocation3 [shape = 's32[1]{0}', space=sflag, size = 0x4, scoped, tag = 'scoped memory for tpu_custom_call.1']
    #allocation4 [shape = 's32[1]{0}', space=sflag, size = 0x4, scoped, tag = 'scoped memory for tpu_custom_call.1']
    #allocation5 [shape = 'u8[1024]{0}', space=vmem, size = 0x400, scoped, tag = 'input window, operand 3, single buffered']
    #allocation6 [shape = 's32[1]{0}', space=sflag, size = 0x4, scoped, tag = 'scoped memory for tpu_custom_call.1']
    #allocation7 [shape = 'u8[512]{0}', space=vmem, size = 0x400, scoped, tag = 'input window, operand 4, single buffered']
    #allocation8 [shape = 'u8[512]{0}', space=vmem, size = 0x400, scoped, tag = 'input window, operand 5, single buffered']
    #allocation9 [shape = 's32[1]{0}', space=sflag, size = 0x4, scoped, tag = 'scoped memory for tpu_custom_call.1']
    #allocation10 [shape = 'u8[8192]{0}', space=vmem, size = 0x2000, scoped, tag = 'input window, operand 6, single buffered']
    #allocation11 [shape = 'u8[8192]{0}', space=vmem, size = 0x2000, scoped, tag = 'input window, operand 7, single buffered']
    #allocation12 [shape = 's32[1]{0}', space=sflag, size = 0x4, scoped, tag = 'scoped memory for tpu_custom_call.1']
    #allocation13 [shape = 'u8[8192]{0}', space=vmem, size = 0x2000, scoped, tag = 'input window, operand 8, single buffered']
    #allocation14 [shape = 'u8[512]{0}', space=vmem, size = 0x400, scoped, tag = 'input window, operand 9, single buffered']
    #allocation15 [shape = 's32[1]{0}', space=sflag, size = 0x4, scoped, tag = 'scoped memory for tpu_custom_call.1']
    #allocation16 [shape = 'u8[512]{0}', space=vmem, size = 0x400, scoped, tag = 'input window, operand 10, single buffered']
    #allocation17 [shape = 'u8[512]{0}', space=vmem, size = 0x400, scoped, tag = 'input window, operand 11, single buffered']
    #allocation18 [shape = 's32[1]{0}', space=sflag, size = 0x4, scoped, tag = 'scoped memory for tpu_custom_call.1']
    #allocation19 [shape = 'u8[512]{0}', space=vmem, size = 0x400, scoped, tag = 'input window, operand 13, single buffered']
    #allocation20 [shape = 'u8[512]{0}', space=vmem, size = 0x400, scoped, tag = 'input window, operand 14, single buffered']
    #allocation21 [shape = 's32[1]{0}', space=sflag, size = 0x4, scoped, tag = 'scoped memory for tpu_custom_call.1']
    #allocation22 [shape = 'u8[512]{0}', space=vmem, size = 0x400, scoped, tag = 'input window, operand 15, single buffered']
    #allocation23 [shape = 'u8[8192]{0}', space=vmem, size = 0x2000, scoped, tag = 'input window, operand 18, single buffered']
    #allocation24 [shape = 's32[1]{0}', space=sflag, size = 0x4, scoped, tag = 'scoped memory for tpu_custom_call.1']
    #allocation25 [shape = 'u8[8192]{0}', space=vmem, size = 0x2000, scoped, tag = 'input window, operand 24, single buffered']
    #allocation26 [shape = 'u8[8192]{0}', space=vmem, size = 0x2000, scoped, tag = 'output window, operand 0, single buffered']
    #allocation27 [shape = 'u8[8192]{0}', space=vmem, size = 0x2000, scoped, tag = 'output window, operand 1, single buffered']
    #allocation28 [shape = 's32[1]{0}', space=sflag, size = 0x4, scoped, tag = 'scoped memory for tpu_custom_call.1']
    #allocation29 [shape = 'u8[8192]{0}', space=vmem, size = 0x2000, scoped, tag = 'output window, operand 2, single buffered']
    %71 = vsyncpa [#allocation3], 0
    %72 = vsyncpa [#allocation6], 0
    %73 = vsyncpa [#allocation9], 0
    %74 = vsyncpa [#allocation12], 0
    %75 = vsyncpa [#allocation15], 0
    %76 = vsyncpa [#allocation18], 0
    %77 = vsyncpa [#allocation21], 0
    %78 = vsyncpa [#allocation24], 0
    %79 = vsyncpa [#allocation4], 0
    %80 = vsyncpa [#allocation28], 0
    // Predicated region
    $region2: #{tpu_custom_call.1} parent=1 // pred_check
      _
    $region3: #{tpu_custom_call.1} parent=1 // pred_check_branch
      %82 = sbr.rel (0) target = $region5
    $region4: #{tpu_custom_call.1} parent=1 // pred_region
      _
    $region5: #{tpu_custom_call.1} parent=1 // pred_fallthru
      _
    // Predicated region
    $region6: #{tpu_custom_call.1} parent=1 // pred_check
      _
    $region7: #{tpu_custom_call.1} parent=1 // pred_check_branch
      %84 = sbr.rel (0) target = $region9
    $region8: #{tpu_custom_call.1} parent=1 // pred_region
      _
    $region9: #{tpu_custom_call.1} parent=1 // pred_fallthru
      _
    // Predicated region
    $region10: #{tpu_custom_call.1} parent=1 // pred_check
      _
    $region11: #{tpu_custom_call.1} parent=1 // pred_check_branch
      %86 = sbr.rel (0) target = $region13
    $region12: #{tpu_custom_call.1} parent=1 // pred_region
      %s88 = ssub.s32 32, 32
      %89 = vsyncadd [#allocation3], %s88
      %s90 = sshll.u32 [#allocation2], 4
      %s91 = int_to_ptr.vmem [resolvable:$true] %s90
      %96 = dma.hbm_to_vmem [thread:$0]  %s5, 32, %s91, [#allocation3], 16, 16, 1
    $region13: #{tpu_custom_call.1} parent=1 // pred_fallthru
      _
    // Predicated region
    $region14: #{tpu_custom_call.1} parent=1 // pred_check
      _
    $region15: #{tpu_custom_call.1} parent=1 // pred_check_branch
      %98 = sbr.rel (0) target = $region17
    $region16: #{tpu_custom_call.1} parent=1 // pred_region
      %s100 = ssub.s32 32, 32
      %101 = vsyncadd [#allocation6], %s100
      %s102 = sshll.u32 [#allocation5], 4
      %s103 = int_to_ptr.vmem [resolvable:$true] %s102
      %108 = dma.hbm_to_vmem [thread:$0]  %s7, 32, %s103, [#allocation6], 16, 16, 1
    $region17: #{tpu_custom_call.1} parent=1 // pred_fallthru
      _
    // Predicated region
    $region18: #{tpu_custom_call.1} parent=1 // pred_check
      _
    $region19: #{tpu_custom_call.1} parent=1 // pred_check_branch
      %110 = sbr.rel (0) target = $region21
    $region20: #{tpu_custom_call.1} parent=1 // pred_region
      %s112 = ssub.s32 16, 16
      %113 = vsyncadd [#allocation6], %s112
      %s115 = sshll.u32 [#allocation7], 4
      %s116 = int_to_ptr.vmem [resolvable:$true] %s115
      %118 = dma.hbm_to_vmem [thread:$0]  %s9, 16, %s116, [#allocation6]
    $region21: #{tpu_custom_call.1} parent=1 // pred_fallthru
      _
    // Predicated region
    $region22: #{tpu_custom_call.1} parent=1 // pred_check
      _
    $region23: #{tpu_custom_call.1} parent=1 // pred_check_branch
      %120 = sbr.rel (0) target = $region25
    $region24: #{tpu_custom_call.1} parent=1 // pred_region
      %s122 = ssub.s32 16, 16
      %123 = vsyncadd [#allocation9], %s122
      %s125 = sshll.u32 [#allocation8], 4
      %s126 = int_to_ptr.vmem [resolvable:$true] %s125
      %128 = dma.hbm_to_vmem [thread:$0]  %s11, 16, %s126, [#allocation9]
    $region25: #{tpu_custom_call.1} parent=1 // pred_fallthru
      _
    // Predicated region
    $region26: #{tpu_custom_call.1} parent=1 // pred_check
      _
    $region27: #{tpu_custom_call.1} parent=1 // pred_check_branch
      %130 = sbr.rel (0) target = $region29
    $region28: #{tpu_custom_call.1} parent=1 // pred_region
      %s132 = ssub.s32 256, 256
      %133 = vsyncadd [#allocation9], %s132
      %s134 = sshll.u32 [#allocation10], 4
      %s135 = int_to_ptr.vmem [resolvable:$true] %s134
      %140 = dma.hbm_to_vmem [thread:$0]  %s13, 256, %s135, [#allocation9], 64, 64, 4
    $region29: #{tpu_custom_call.1} parent=1 // pred_fallthru
      _
    // Predicated region
    $region30: #{tpu_custom_call.1} parent=1 // pred_check
      _
    $region31: #{tpu_custom_call.1} parent=1 // pred_check_branch
      %142 = sbr.rel (0) target = $region33
    $region32: #{tpu_custom_call.1} parent=1 // pred_region
      %s144 = ssub.s32 256, 256
      %145 = vsyncadd [#allocation12], %s144
      %s146 = sshll.u32 [#allocation11], 4
      %s147 = int_to_ptr.vmem [resolvable:$true] %s146
      %152 = dma.hbm_to_vmem [thread:$0]  %s15, 256, %s147, [#allocation12], 64, 64, 4
    $region33: #{tpu_custom_call.1} parent=1 // pred_fallthru
      _
    // Predicated region
    $region34: #{tpu_custom_call.1} parent=1 // pred_check
      _
    $region35: #{tpu_custom_call.1} parent=1 // pred_check_branch
      %154 = sbr.rel (0) target = $region37
    $region36: #{tpu_custom_call.1} parent=1 // pred_region
      %s156 = ssub.s32 256, 256
      %157 = vsyncadd [#allocation12], %s156
      %s158 = sshll.u32 [#allocation13], 4
      %s159 = int_to_ptr.vmem [resolvable:$true] %s158
      %164 = dma.hbm_to_vmem [thread:$0]  %s17, 256, %s159, [#allocation12], 64, 64, 4
    $region37: #{tpu_custom_call.1} parent=1 // pred_fallthru
      _
    // Predicated region
    $region38: #{tpu_custom_call.1} parent=1 // pred_check
      _
    $region39: #{tpu_custom_call.1} parent=1 // pred_check_branch
      %166 = sbr.rel (0) target = $region41
    $region40: #{tpu_custom_call.1} parent=1 // pred_region
      %s168 = ssub.s32 16, 16
      %169 = vsyncadd [#allocation15], %s168
      %s171 = sshll.u32 [#allocation14], 4
      %s172 = int_to_ptr.vmem [resolvable:$true] %s171
      %174 = dma.hbm_to_vmem [thread:$0]  %s19, 16, %s172, [#allocation15]
    $region41: #{tpu_custom_call.1} parent=1 // pred_fallthru
      _
    // Predicated region
    $region42: #{tpu_custom_call.1} parent=1 // pred_check
      _
    $region43: #{tpu_custom_call.1} parent=1 // pred_check_branch
      %176 = sbr.rel (0) target = $region45
    $region44: #{tpu_custom_call.1} parent=1 // pred_region
      %s178 = ssub.s32 16, 16
      %179 = vsyncadd [#allocation15], %s178
      %s181 = sshll.u32 [#allocation16], 4
      %s182 = int_to_ptr.vmem [resolvable:$true] %s181
      %184 = dma.hbm_to_vmem [thread:$0]  %s21, 16, %s182, [#allocation15]
    $region45: #{tpu_custom_call.1} parent=1 // pred_fallthru
      _
    // Predicated region
    $region46: #{tpu_custom_call.1} parent=1 // pred_check
      _
    $region47: #{tpu_custom_call.1} parent=1 // pred_check_branch
      %186 = sbr.rel (0) target = $region49
    $region48: #{tpu_custom_call.1} parent=1 // pred_region
      %s188 = ssub.s32 16, 16
      %189 = vsyncadd [#allocation18], %s188
      %s191 = sshll.u32 [#allocation17], 4
      %s192 = int_to_ptr.vmem [resolvable:$true] %s191
      %194 = dma.hbm_to_vmem [thread:$0]  %s23, 16, %s192, [#allocation18]
    $region49: #{tpu_custom_call.1} parent=1 // pred_fallthru
      _
    // Predicated region
    $region50: #{tpu_custom_call.1} parent=1 // pred_check
      _
    $region51: #{tpu_custom_call.1} parent=1 // pred_check_branch
      %196 = sbr.rel (0) target = $region53
    $region52: #{tpu_custom_call.1} parent=1 // pred_region
      _
    $region53: #{tpu_custom_call.1} parent=1 // pred_fallthru
      _
    // Predicated region
    $region54: #{tpu_custom_call.1} parent=1 // pred_check
      _
    $region55: #{tpu_custom_call.1} parent=1 // pred_check_branch
      %198 = sbr.rel (0) target = $region57
    $region56: #{tpu_custom_call.1} parent=1 // pred_region
      %s200 = ssub.s32 16, 16
      %201 = vsyncadd [#allocation18], %s200
      %s203 = sshll.u32 [#allocation19], 4
      %s204 = int_to_ptr.vmem [resolvable:$true] %s203
      %206 = dma.hbm_to_vmem [thread:$0]  %s27, 16, %s204, [#allocation18]
    $region57: #{tpu_custom_call.1} parent=1 // pred_fallthru
      _
    // Predicated region
    $region58: #{tpu_custom_call.1} parent=1 // pred_check
      _
    $region59: #{tpu_custom_call.1} parent=1 // pred_check_branch
      %208 = sbr.rel (0) target = $region61
    $region60: #{tpu_custom_call.1} parent=1 // pred_region
      %s210 = ssub.s32 16, 16
      %211 = vsyncadd [#allocation21], %s210
      %s213 = sshll.u32 [#allocation20], 4
      %s214 = int_to_ptr.vmem [resolvable:$true] %s213
      %216 = dma.hbm_to_vmem [thread:$0]  %s29, 16, %s214, [#allocation21]
    $region61: #{tpu_custom_call.1} parent=1 // pred_fallthru
      _
    // Predicated region
    $region62: #{tpu_custom_call.1} parent=1 // pred_check
      _
    $region63: #{tpu_custom_call.1} parent=1 // pred_check_branch
      %218 = sbr.rel (0) target = $region65
    $region64: #{tpu_custom_call.1} parent=1 // pred_region
      %s220 = ssub.s32 16, 16
      %221 = vsyncadd [#allocation21], %s220
      %s223 = sshll.u32 [#allocation22], 4
      %s224 = int_to_ptr.vmem [resolvable:$true] %s223
      %226 = dma.hbm_to_vmem [thread:$0]  %s31, 16, %s224, [#allocation21]
    $region65: #{tpu_custom_call.1} parent=1 // pred_fallthru
      _
    // Predicated region
    $region66: #{tpu_custom_call.1} parent=1 // pred_check
      _
    $region67: #{tpu_custom_call.1} parent=1 // pred_check_branch
      %228 = sbr.rel (0) target = $region69
    $region68: #{tpu_custom_call.1} parent=1 // pred_region
      _
    $region69: #{tpu_custom_call.1} parent=1 // pred_fallthru
      _
    // Predicated region
    $region70: #{tpu_custom_call.1} parent=1 // pred_check
      _
    $region71: #{tpu_custom_call.1} parent=1 // pred_check_branch
      %230 = sbr.rel (0) target = $region73
    $region72: #{tpu_custom_call.1} parent=1 // pred_region
      _
    $region73: #{tpu_custom_call.1} parent=1 // pred_fallthru
      _
    // Predicated region
    $region74: #{tpu_custom_call.1} parent=1 // pred_check
      _
    $region75: #{tpu_custom_call.1} parent=1 // pred_check_branch
      %232 = sbr.rel (0) target = $region77
    $region76: #{tpu_custom_call.1} parent=1 // pred_region
      %s234 = ssub.s32 256, 256
      %235 = vsyncadd [#allocation24], %s234
      %s236 = sshll.u32 [#allocation23], 4
      %s237 = int_to_ptr.vmem [resolvable:$true] %s236
      %242 = dma.hbm_to_vmem [thread:$0]  %s37, 256, %s237, [#allocation24], 64, 64, 4
    $region77: #{tpu_custom_call.1} parent=1 // pred_fallthru
      _
    // Predicated region
    $region78: #{tpu_custom_call.1} parent=1 // pred_check
      _
    $region79: #{tpu_custom_call.1} parent=1 // pred_check_branch
      %244 = sbr.rel (0) target = $region81
    $region80: #{tpu_custom_call.1} parent=1 // pred_region
      _
    $region81: #{tpu_custom_call.1} parent=1 // pred_fallthru
      _
    // Predicated region
    $region82: #{tpu_custom_call.1} parent=1 // pred_check
      _
    $region83: #{tpu_custom_call.1} parent=1 // pred_check_branch
      %246 = sbr.rel (0) target = $region85
    $region84: #{tpu_custom_call.1} parent=1 // pred_region
      _
    $region85: #{tpu_custom_call.1} parent=1 // pred_fallthru
      _
    // Predicated region
    $region86: #{tpu_custom_call.1} parent=1 // pred_check
      _
    $region87: #{tpu_custom_call.1} parent=1 // pred_check_branch
      %248 = sbr.rel (0) target = $region89
    $region88: #{tpu_custom_call.1} parent=1 // pred_region
      _
    $region89: #{tpu_custom_call.1} parent=1 // pred_fallthru
      _
    // Predicated region
    $region90: #{tpu_custom_call.1} parent=1 // pred_check
      _
    $region91: #{tpu_custom_call.1} parent=1 // pred_check_branch
      %250 = sbr.rel (0) target = $region93
    $region92: #{tpu_custom_call.1} parent=1 // pred_region
      _
    $region93: #{tpu_custom_call.1} parent=1 // pred_fallthru
      _
    // Predicated region
    $region94: #{tpu_custom_call.1} parent=1 // pred_check
      _
    $region95: #{tpu_custom_call.1} parent=1 // pred_check_branch
      %252 = sbr.rel (0) target = $region97
    $region96: #{tpu_custom_call.1} parent=1 // pred_region
      _
    $region97: #{tpu_custom_call.1} parent=1 // pred_fallthru
      _
    // Predicated region
    $region98: #{tpu_custom_call.1} parent=1 // pred_check
      _
    $region99: #{tpu_custom_call.1} parent=1 // pred_check_branch
      %254 = sbr.rel (0) target = $region101
    $region100: #{tpu_custom_call.1} parent=1 // pred_region
      %s256 = ssub.s32 256, 256
      %257 = vsyncadd [#allocation24], %s256
      %s258 = sshll.u32 [#allocation25], 4
      %s259 = int_to_ptr.vmem [resolvable:$true] %s258
      %264 = dma.hbm_to_vmem [thread:$0]  %s49, 256, %s259, [#allocation24], 64, 64, 4
    $region101: #{tpu_custom_call.1} parent=1 // pred_fallthru
      _
    // Predicated region
    $region102: #{tpu_custom_call.1} parent=1 // pred_check
      _
    $region103: #{tpu_custom_call.1} parent=1 // pred_check_branch
      %266 = sbr.rel (0) target = $region105
    $region104: #{tpu_custom_call.1} parent=1 // pred_region
      _
    $region105: #{tpu_custom_call.1} parent=1 // pred_fallthru
      _
    // Predicated region
    $region106: #{tpu_custom_call.1} parent=1 // pred_check
      _
    $region107: #{tpu_custom_call.1} parent=1 // pred_check_branch
      %268 = sbr.rel (0) target = $region109
    $region108: #{tpu_custom_call.1} parent=1 // pred_region
      _
    $region109: #{tpu_custom_call.1} parent=1 // pred_fallthru
      _
    // Predicated region
    $region110: #{tpu_custom_call.1} parent=1 // pred_check
      _
    $region111: #{tpu_custom_call.1} parent=1 // pred_check_branch
      %270 = sbr.rel (0) target = $region113
    $region112: #{tpu_custom_call.1} parent=1 // pred_region
      _
    $region113: #{tpu_custom_call.1} parent=1 // pred_fallthru
      _
    // Predicated region
    $region114: #{tpu_custom_call.1} parent=1 // pred_check
      _
    $region115: #{tpu_custom_call.1} parent=1 // pred_check_branch
      %272 = sbr.rel (0) target = $region117
    $region116: #{tpu_custom_call.1} parent=1 // pred_region
      _
    $region117: #{tpu_custom_call.1} parent=1 // pred_fallthru
      _
    // Predicated region
    $region118: #{tpu_custom_call.1} parent=1 // pred_check
      _
    $region119: #{tpu_custom_call.1} parent=1 // pred_check_branch
      %274 = sbr.rel (0) target = $region121
    $region120: #{tpu_custom_call.1} parent=1 // pred_region
      _
    $region121: #{tpu_custom_call.1} parent=1 // pred_fallthru
      _
    // Predicated region
    $region122: #{tpu_custom_call.1} parent=1 // pred_check
      _
    $region123: #{tpu_custom_call.1} parent=1 // pred_check_branch
      %276 = sbr.rel (0) target = $region125
    $region124: #{tpu_custom_call.1} parent=1 // pred_region
      %277 = dma.done [#allocation3], 32
    $region125: #{tpu_custom_call.1} parent=1 // pred_fallthru
      _
    // Predicated region
    $region126: #{tpu_custom_call.1} parent=1 // pred_check
      _
    $region127: #{tpu_custom_call.1} parent=1 // pred_check_branch
      %279 = sbr.rel (0) target = $region129
    $region128: #{tpu_custom_call.1} parent=1 // pred_region
      %280 = dma.done [#allocation6], 32
    $region129: #{tpu_custom_call.1} parent=1 // pred_fallthru
      _
    // Predicated region
    $region130: #{tpu_custom_call.1} parent=1 // pred_check
      _
    $region131: #{tpu_custom_call.1} parent=1 // pred_check_branch
      %282 = sbr.rel (0) target = $region133
    $region132: #{tpu_custom_call.1} parent=1 // pred_region
      %283 = dma.done [#allocation6], 16
    $region133: #{tpu_custom_call.1} parent=1 // pred_fallthru
      _
    // Predicated region
    $region134: #{tpu_custom_call.1} parent=1 // pred_check
      _
    $region135: #{tpu_custom_call.1} parent=1 // pred_check_branch
      %285 = sbr.rel (0) target = $region137
    $region136: #{tpu_custom_call.1} parent=1 // pred_region
      %286 = dma.done [#allocation9], 16
    $region137: #{tpu_custom_call.1} parent=1 // pred_fallthru
      _
    // Predicated region
    $region138: #{tpu_custom_call.1} parent=1 // pred_check
      _
    $region139: #{tpu_custom_call.1} parent=1 // pred_check_branch
      %288 = sbr.rel (0) target = $region141
    $region140: #{tpu_custom_call.1} parent=1 // pred_region
      %289 = dma.done [#allocation9], 256
    $region141: #{tpu_custom_call.1} parent=1 // pred_fallthru
      _
    // Predicated region
    $region142: #{tpu_custom_call.1} parent=1 // pred_check
      _
    $region143: #{tpu_custom_call.1} parent=1 // pred_check_branch
      %291 = sbr.rel (0) target = $region145
    $region144: #{tpu_custom_call.1} parent=1 // pred_region
      %292 = dma.done [#allocation12], 256
    $region145: #{tpu_custom_call.1} parent=1 // pred_fallthru
      _
    // Predicated region
    $region146: #{tpu_custom_call.1} parent=1 // pred_check
      _
    $region147: #{tpu_custom_call.1} parent=1 // pred_check_branch
      %294 = sbr.rel (0) target = $region149
    $region148: #{tpu_custom_call.1} parent=1 // pred_region
      %295 = dma.done [#allocation12], 256
    $region149: #{tpu_custom_call.1} parent=1 // pred_fallthru
      _
    // Predicated region
    $region150: #{tpu_custom_call.1} parent=1 // pred_check
      _
    $region151: #{tpu_custom_call.1} parent=1 // pred_check_branch
      %297 = sbr.rel (0) target = $region153
    $region152: #{tpu_custom_call.1} parent=1 // pred_region
      %298 = dma.done [#allocation15], 16
    $region153: #{tpu_custom_call.1} parent=1 // pred_fallthru
      _
    // Predicated region
    $region154: #{tpu_custom_call.1} parent=1 // pred_check
      _
    $region155: #{tpu_custom_call.1} parent=1 // pred_check_branch
      %300 = sbr.rel (0) target = $region157
    $region156: #{tpu_custom_call.1} parent=1 // pred_region
      %301 = dma.done [#allocation15], 16
    $region157: #{tpu_custom_call.1} parent=1 // pred_fallthru
      _
    // Predicated region
    $region158: #{tpu_custom_call.1} parent=1 // pred_check
      _
    $region159: #{tpu_custom_call.1} parent=1 // pred_check_branch
      %303 = sbr.rel (0) target = $region161
    $region160: #{tpu_custom_call.1} parent=1 // pred_region
      %304 = dma.done [#allocation18], 16
    $region161: #{tpu_custom_call.1} parent=1 // pred_fallthru
      _
    // Predicated region
    $region162: #{tpu_custom_call.1} parent=1 // pred_check
      _
    $region163: #{tpu_custom_call.1} parent=1 // pred_check_branch
      %306 = sbr.rel (0) target = $region165
    $region164: #{tpu_custom_call.1} parent=1 // pred_region
      %307 = dma.done [#allocation18], 16
    $region165: #{tpu_custom_call.1} parent=1 // pred_fallthru
      _
    // Predicated region
    $region166: #{tpu_custom_call.1} parent=1 // pred_check
      _
    $region167: #{tpu_custom_call.1} parent=1 // pred_check_branch
      %309 = sbr.rel (0) target = $region169
    $region168: #{tpu_custom_call.1} parent=1 // pred_region
      %310 = dma.done [#allocation21], 16
    $region169: #{tpu_custom_call.1} parent=1 // pred_fallthru
      _
    // Predicated region
    $region170: #{tpu_custom_call.1} parent=1 // pred_check
      _
    $region171: #{tpu_custom_call.1} parent=1 // pred_check_branch
      %312 = sbr.rel (0) target = $region173
    $region172: #{tpu_custom_call.1} parent=1 // pred_region
      %313 = dma.done [#allocation21], 16
    $region173: #{tpu_custom_call.1} parent=1 // pred_fallthru
      _
    // Predicated region
    $region174: #{tpu_custom_call.1} parent=1 // pred_check
      _
    $region175: #{tpu_custom_call.1} parent=1 // pred_check_branch
      %315 = sbr.rel (0) target = $region177
    $region176: #{tpu_custom_call.1} parent=1 // pred_region
      %316 = dma.done [#allocation24], 256
    $region177: #{tpu_custom_call.1} parent=1 // pred_fallthru
      _
    // Predicated region
    $region178: #{tpu_custom_call.1} parent=1 // pred_check
      _
    $region179: #{tpu_custom_call.1} parent=1 // pred_check_branch
      %318 = sbr.rel (0) target = $region181
    $region180: #{tpu_custom_call.1} parent=1 // pred_region
      %319 = dma.done [#allocation24], 256
    $region181: #{tpu_custom_call.1} parent=1 // pred_fallthru
      _
    %v321 = vld [vmem:[%s1] sm:$0xff]
    %v322 = vld [vmem:[%s1 + $0x8] sm:$0xff]
    %v323 = vld [vmem:[%s3] sm:$0xff]
    %v324 = vld [vmem:[%s3 + $0x8] sm:$0xff]
    %v325 = vld [vmem:[%s3 + $0x10] sm:$0xff]
    %v326 = vld [vmem:[%s3 + $0x18] sm:$0xff]
    %v327 = vlaneseq
    %v328 = vshrl.u32 %v327, 7
    %v329 = vlaneseq
    %v330 = vand.u32 %v329, 127
    %vm331 = vcmp.gt.s32.totalorder %v330, %v328
    %v332 = vsel %vm331, -1e+30, 0.0
    %v333 = vld [vmem:[#allocation2] sm:$0x1]
    %v334 = vld [vmem:[#allocation2 + $0x1] sm:$0x1]
    %v337 = vlaneseq
    %v338 = vshrl.u32 %v337, 7
    %v339 = vsub.s32 0, %v338
    %v340 = vrot.slane %v333, %v339
    %v341 = vlaneseq
    %v342 = vshrl.u32 %v341, 7
    %v343 = vsub.s32 0, %v342
    %v344 = vrot.slane %v334, %v343
    %v347 = vadd.f32 %v332, %v340
    %v348 = vadd.f32 %v332, %v344
    %v349 = vld [vmem:[#allocation5] sm:$0x1]
    %v350 = vld [vmem:[#allocation5 + $0x1] sm:$0x1]
    %v351 = vld [vmem:[#allocation7] sm:$0x1]
    %v352 = vld [vmem:[#allocation8] sm:$0x1]
    %vm353 = vcmask 261120
    %v354 = vsel %vm353, %v321, 0.0
    %355 = vadd.xlane.f32.xlu0 %v354
    %v356 = vpop.xlane.xlu0 %355
    %v357 = vsel %vm353, %v322, 0.0
    %358 = vadd.xlane.f32.xlu0 %v357
    %v359 = vpop.xlane.xlu0 %358
    %v360 = vrcp.pop 32.0
    %v361 = vmul.f32 %v356, %v360
    %v362 = vmul.f32 %v359, %v360
    %v363 = vsub.f32 %v321, %v361
    %v364 = vsub.f32 %v322, %v362
    %v365 = vmul.f32 %v363, %v363
    %v366 = vmul.f32 %v364, %v364
    %v367 = vsel %vm353, %v365, 0.0
    %368 = vadd.xlane.f32.xlu0 %v367
    %v369 = vpop.xlane.xlu0 %368
    %v370 = vsel %vm353, %v366, 0.0
    %371 = vadd.xlane.f32.xlu0 %v370
    %v372 = vpop.xlane.xlu0 %371
    %v373 = vmul.f32 %v369, %v360
    %v374 = vmul.f32 %v372, %v360
    %v375 = vadd.f32 %v373, 1e-05
    %v376 = vadd.f32 %v374, 1e-05
    %v377 = vrsqrt.pop %v375
    %v378 = vrsqrt.pop %v376
    %v379 = vmul.f32 %v363, %v377
    %v380 = vmul.f32 %v364, %v378
    %v382 = vlaneseq
    %v383 = vshrl.u32 %v382, 7
    %v384 = vsub.s32 0, %v383
    %v385 = vrot.slane %v351, %v384
    %v387 = vmul.f32 %v379, %v385
    %v388 = vmul.f32 %v380, %v385
    %v390 = vlaneseq
    %v391 = vshrl.u32 %v390, 7
    %v392 = vsub.s32 0, %v391
    %v393 = vrot.slane %v352, %v392
    %v395 = vadd.f32 %v387, %v393
    %v396 = vadd.f32 %v388, %v393
    %v397 = vpack.c.bf16 %v396, %v395
    %v398 = vld [vmem:[#allocation10] sm:$0xf]
    %v399 = vld [vmem:[#allocation10 + $0x4] sm:$0xf]
    %v400 = vld [vmem:[#allocation10 + $0x8] sm:$0xf]
    %v401 = vld [vmem:[#allocation10 + $0xc] sm:$0xf]
    %v402 = vld [vmem:[#allocation14] sm:$0x1]
    %v404 = vlaneseq
    %v405 = vshrl.u32 %v404, 7
    %v406 = vsub.s32 0, %v405
    %v407 = vrot.slane %v402, %v406
    %v413 = vunpack.c.l.b16 %v398
    %v414 = vunpack.c.l.b16 %v399
    %v415 = vunpack.c.l.b16 %v400
    %v416 = vunpack.c.l.b16 %v401
    %v417 = vpack.c.b16 %v414, %v413
    %v418 = vpack.c.b16 %v416, %v415
    %v422 = vsel %vm353, %v397, 0
    %424 = vmatprep.subr.bf16.mxu0 0
    %425 = vmatpush1.bf16.msra.mxu0 %v417
    %426 = vmatprep.subr.bf16.mxu0 0
    %427 = vmatpush1.bf16.msra.mxu0 %v418
    %428 = vmatprep.subr.bf16.mxu0 0
    %429 = vmatpush1.bf16.msra.mxu0 0
    %430 = vmatprep.subr.bf16.mxu0 0
    %431 = vmatpush1.bf16.msra.mxu0 0
    %432 = vmatprep.subr.bf16.mxu0 0
    %433 = vmatpush1.bf16.msra.mxu0 0
    %434 = vmatprep.subr.bf16.mxu0 0
    %435 = vmatpush1.bf16.msra.mxu0 0
    %436 = vmatprep.subr.bf16.mxu0 0
    %437 = vmatpush1.bf16.msra.mxu0 0
    %438 = vmatprep.subr.bf16.mxu0 0
    %439 = vmatpush1.bf16.msra.mxu0 0
    %440 = vmatprep.subr.bf16.mxu0 0
    %441 = vmatpush1.bf16.msra.mxu0 0
    %442 = vmatprep.subr.bf16.mxu0 0
    %443 = vmatpush1.bf16.msra.mxu0 0
    %444 = vmatprep.subr.bf16.mxu0 0
    %445 = vmatpush1.bf16.msra.mxu0 0
    %446 = vmatprep.subr.bf16.mxu0 0
    %447 = vmatpush1.bf16.msra.mxu0 0
    %448 = vmatprep.subr.bf16.mxu0 0
    %449 = vmatpush1.bf16.msra.mxu0 0
    %450 = vmatprep.subr.bf16.mxu0 0
    %451 = vmatpush1.bf16.msra.mxu0 0
    %452 = vmatprep.subr.bf16.mxu0 0
    %453 = vmatpush1.bf16.msra.mxu0 0
    %454 = vmatprep.subr.bf16.mxu0 0
    %455 = vmatpush1.bf16.msra.mxu0 0
    %456 = vmatprep.mubr.bf16.mxu0 0
    %457 = vmatmul.mubr.bf16.gmra.mrb[0].mxu0 %v422
    %v458 = vpop.f32.mrb[0].mxu0
    %v459 = vadd.f32 %v407, %v458
    %v460 = vpop.f32.mrb[0].mxu0
    %v461 = vpop.f32.mrb[0].mxu0
    %v462 = vadd.f32 %v407, %v461
    %v463 = vpop.f32.mrb[0].mxu0
    %464 = vdwg.mxu0
    %v465 = vld [vmem:[#allocation11] sm:$0xf]
    %v466 = vld [vmem:[#allocation11 + $0x4] sm:$0xf]
    %v467 = vld [vmem:[#allocation11 + $0x8] sm:$0xf]
    %v468 = vld [vmem:[#allocation11 + $0xc] sm:$0xf]
    %v469 = vld [vmem:[#allocation16] sm:$0x1]
    %v471 = vlaneseq
    %v472 = vshrl.u32 %v471, 7
    %v473 = vsub.s32 0, %v472
    %v474 = vrot.slane %v469, %v473
    %v480 = vunpack.c.l.b16 %v465
    %v481 = vunpack.c.l.b16 %v466
    %v482 = vunpack.c.l.b16 %v467
    %v483 = vunpack.c.l.b16 %v468
    %v484 = vpack.c.b16 %v481, %v480
    %v485 = vpack.c.b16 %v483, %v482
    %488 = vmatprep.subr.bf16.mxu0 0
    %489 = vmatpush1.bf16.msra.mxu0 %v484
    %490 = vmatprep.subr.bf16.mxu0 0
    %491 = vmatpush1.bf16.msra.mxu0 %v485
    %492 = vmatprep.subr.bf16.mxu0 0
    %493 = vmatpush1.bf16.msra.mxu0 0
    %494 = vmatprep.subr.bf16.mxu0 0
    %495 = vmatpush1.bf16.msra.mxu0 0
    %496 = vmatprep.subr.bf16.mxu0 0
    %497 = vmatpush1.bf16.msra.mxu0 0
    %498 = vmatprep.subr.bf16.mxu0 0
    %499 = vmatpush1.bf16.msra.mxu0 0
    %500 = vmatprep.subr.bf16.mxu0 0
    %501 = vmatpush1.bf16.msra.mxu0 0
    %502 = vmatprep.subr.bf16.mxu0 0
    %503 = vmatpush1.bf16.msra.mxu0 0
    %504 = vmatprep.subr.bf16.mxu0 0
    %505 = vmatpush1.bf16.msra.mxu0 0
    %506 = vmatprep.subr.bf16.mxu0 0
    %507 = vmatpush1.bf16.msra.mxu0 0
    %508 = vmatprep.subr.bf16.mxu0 0
    %509 = vmatpush1.bf16.msra.mxu0 0
    %510 = vmatprep.subr.bf16.mxu0 0
    %511 = vmatpush1.bf16.msra.mxu0 0
    %512 = vmatprep.subr.bf16.mxu0 0
    %513 = vmatpush1.bf16.msra.mxu0 0
    %514 = vmatprep.subr.bf16.mxu0 0
    %515 = vmatpush1.bf16.msra.mxu0 0
    %516 = vmatprep.subr.bf16.mxu0 0
    %517 = vmatpush1.bf16.msra.mxu0 0
    %518 = vmatprep.subr.bf16.mxu0 0
    %519 = vmatpush1.bf16.msra.mxu0 0
    %520 = vmatprep.mubr.bf16.mxu0 0
    %521 = vmatmul.mubr.bf16.gmra.mrb[0].mxu0 %v422
    %v522 = vpop.f32.mrb[0].mxu0
    %v523 = vadd.f32 %v474, %v522
    %v524 = vpop.f32.mrb[0].mxu0
    %v525 = vpop.f32.mrb[0].mxu0
    %v526 = vadd.f32 %v474, %v525
    %v527 = vpop.f32.mrb[0].mxu0
    %528 = vdwg.mxu0
    %v529 = vld [vmem:[#allocation13] sm:$0xf]
    %v530 = vld [vmem:[#allocation13 + $0x4] sm:$0xf]
    %v531 = vld [vmem:[#allocation13 + $0x8] sm:$0xf]
    %v532 = vld [vmem:[#allocation13 + $0xc] sm:$0xf]
    %v533 = vld [vmem:[#allocation17] sm:$0x1]
    %v535 = vlaneseq
    %v536 = vshrl.u32 %v535, 7
    %v537 = vsub.s32 0, %v536
    %v538 = vrot.slane %v533, %v537
    %v544 = vunpack.c.l.b16 %v529
    %v545 = vunpack.c.l.b16 %v530
    %v546 = vunpack.c.l.b16 %v531
    %v547 = vunpack.c.l.b16 %v532
    %v548 = vpack.c.b16 %v545, %v544
    %v549 = vpack.c.b16 %v547, %v546
    %552 = vmatprep.subr.bf16.mxu0 0
    %553 = vmatpush1.bf16.msra.mxu0 %v548
    %554 = vmatprep.subr.bf16.mxu0 0
    %555 = vmatpush1.bf16.msra.mxu0 %v549
    %556 = vmatprep.subr.bf16.mxu0 0
    %557 = vmatpush1.bf16.msra.mxu0 0
    %558 = vmatprep.subr.bf16.mxu0 0
    %559 = vmatpush1.bf16.msra.mxu0 0
    %560 = vmatprep.subr.bf16.mxu0 0
    %561 = vmatpush1.bf16.msra.mxu0 0
    %562 = vmatprep.subr.bf16.mxu0 0
    %563 = vmatpush1.bf16.msra.mxu0 0
    %564 = vmatprep.subr.bf16.mxu0 0
    %565 = vmatpush1.bf16.msra.mxu0 0
    %566 = vmatprep.subr.bf16.mxu0 0
    %567 = vmatpush1.bf16.msra.mxu0 0
    %568 = vmatprep.subr.bf16.mxu0 0
    %569 = vmatpush1.bf16.msra.mxu0 0
    %570 = vmatprep.subr.bf16.mxu0 0
    %571 = vmatpush1.bf16.msra.mxu0 0
    %572 = vmatprep.subr.bf16.mxu0 0
    %573 = vmatpush1.bf16.msra.mxu0 0
    %574 = vmatprep.subr.bf16.mxu0 0
    %575 = vmatpush1.bf16.msra.mxu0 0
    %576 = vmatprep.subr.bf16.mxu0 0
    %577 = vmatpush1.bf16.msra.mxu0 0
    %578 = vmatprep.subr.bf16.mxu0 0
    %579 = vmatpush1.bf16.msra.mxu0 0
    %580 = vmatprep.subr.bf16.mxu0 0
    %581 = vmatpush1.bf16.msra.mxu0 0
    %582 = vmatprep.subr.bf16.mxu0 0
    %583 = vmatpush1.bf16.msra.mxu0 0
    %584 = vmatprep.mubr.bf16.mxu0 0
    %585 = vmatmul.mubr.bf16.gmra.mrb[0].mxu0 %v422
    %v586 = vpop.f32.mrb[0].mxu0
    %v587 = vadd.f32 %v538, %v586
    %v588 = vpop.f32.mrb[0].mxu0
    %v589 = vpop.f32.mrb[0].mxu0
    %v590 = vadd.f32 %v538, %v589
    %v591 = vpop.f32.mrb[0].mxu0
    %592 = vdwg.mxu0
    %vm593 = vcmask 64512
    %v595 = vsel %vm593, %v459, 0
    %v598 = vsel %vm593, %v523, 0
    %600 = vmatprep.subr.mxu0 0.0
    %601 = vmatpush1.xpose.msra.mxu0 %v598
    %602 = vmatprep.subr.mxu0 0.0
    %603 = vmatpush1.xpose.msra.mxu0 0.0
    %604 = vmatprep.subr.mxu0 0.0
    %605 = vmatpush1.xpose.msra.mxu0 0.0
    %606 = vmatprep.subr.mxu0 0.0
    %607 = vmatpush1.xpose.msra.mxu0 0.0
    %608 = vmatprep.subr.mxu0 0.0
    %609 = vmatpush1.xpose.msra.mxu0 0.0
    %610 = vmatprep.subr.mxu0 0.0
    %611 = vmatpush1.xpose.msra.mxu0 0.0
    %612 = vmatprep.subr.mxu0 0.0
    %613 = vmatpush1.xpose.msra.mxu0 0.0
    %614 = vmatprep.subr.mxu0 0.0
    %615 = vmatpush1.xpose.msra.mxu0 0.0
    %616 = vmatprep.subr.mxu0 0.0
    %617 = vmatpush1.xpose.msra.mxu0 0.0
    %618 = vmatprep.subr.mxu0 0.0
    %619 = vmatpush1.xpose.msra.mxu0 0.0
    %620 = vmatprep.subr.mxu0 0.0
    %621 = vmatpush1.xpose.msra.mxu0 0.0
    %622 = vmatprep.subr.mxu0 0.0
    %623 = vmatpush1.xpose.msra.mxu0 0.0
    %624 = vmatprep.subr.mxu0 0.0
    %625 = vmatpush1.xpose.msra.mxu0 0.0
    %626 = vmatprep.subr.mxu0 0.0
    %627 = vmatpush1.xpose.msra.mxu0 0.0
    %628 = vmatprep.subr.mxu0 0.0
    %629 = vmatpush1.xpose.msra.mxu0 0.0
    %630 = vmatprep.subr.mxu0 0.0
    %631 = vmatpush1.xpose.msra.mxu0 0.0
    %632 = vmatprep.subr.mxu0 0.0
    %633 = vmatpush1.xpose.msra.mxu0 0.0
    %634 = vmatprep.subr.mxu0 0.0
    %635 = vmatpush1.xpose.msra.mxu0 0.0
    %636 = vmatprep.subr.mxu0 0.0
    %637 = vmatpush1.xpose.msra.mxu0 0.0
    %638 = vmatprep.subr.mxu0 0.0
    %639 = vmatpush1.xpose.msra.mxu0 0.0
    %640 = vmatprep.subr.mxu0 0.0
    %641 = vmatpush1.xpose.msra.mxu0 0.0
    %642 = vmatprep.subr.mxu0 0.0
    %643 = vmatpush1.xpose.msra.mxu0 0.0
    %644 = vmatprep.subr.mxu0 0.0
    %645 = vmatpush1.xpose.msra.mxu0 0.0
    %646 = vmatprep.subr.mxu0 0.0
    %647 = vmatpush1.xpose.msra.mxu0 0.0
    %648 = vmatprep.subr.mxu0 0.0
    %649 = vmatpush1.xpose.msra.mxu0 0.0
    %650 = vmatprep.subr.mxu0 0.0
    %651 = vmatpush1.xpose.msra.mxu0 0.0
    %652 = vmatprep.subr.mxu0 0.0
    %653 = vmatpush1.xpose.msra.mxu0 0.0
    %654 = vmatprep.subr.mxu0 0.0
    %655 = vmatpush1.xpose.msra.mxu0 0.0
    %656 = vmatprep.subr.mxu0 0.0
    %657 = vmatpush1.xpose.msra.mxu0 0.0
    %658 = vmatprep.subr.mxu0 0.0
    %659 = vmatpush1.xpose.msra.mxu0 0.0
    %660 = vmatprep.subr.mxu0 0.0
    %661 = vmatpush1.xpose.msra.mxu0 0.0
    %662 = vmatprep.subr.mxu0 0.0
    %663 = vmatpush1.xpose.msra.mxu0 0.0
    %664 = vmatprep.mubr.f32.mxu0 0.0
    %665 = vmatmul.mubr.f32.gmra.mrb[0].mxu0 %v595
    %v666 = vpop.f32.mrb[0].mxu0
    %v667 = vadd.f32 0.0, %v666
    %v668 = vpop.f32.mrb[0].mxu0
    %669 = vdwg.mxu0
    %v671 = vsel %vm593, %v462, 0
    %v674 = vsel %vm593, %v526, 0
    %676 = vmatprep.subr.mxu0 0.0
    %677 = vmatpush1.xpose.msra.mxu0 %v674
    %678 = vmatprep.subr.mxu0 0.0
    %679 = vmatpush1.xpose.msra.mxu0 0.0
    %680 = vmatprep.subr.mxu0 0.0
    %681 = vmatpush1.xpose.msra.mxu0 0.0
    %682 = vmatprep.subr.mxu0 0.0
    %683 = vmatpush1.xpose.msra.mxu0 0.0
    %684 = vmatprep.subr.mxu0 0.0
    %685 = vmatpush1.xpose.msra.mxu0 0.0
    %686 = vmatprep.subr.mxu0 0.0
    %687 = vmatpush1.xpose.msra.mxu0 0.0
    %688 = vmatprep.subr.mxu0 0.0
    %689 = vmatpush1.xpose.msra.mxu0 0.0
    %690 = vmatprep.subr.mxu0 0.0
    %691 = vmatpush1.xpose.msra.mxu0 0.0
    %692 = vmatprep.subr.mxu0 0.0
    %693 = vmatpush1.xpose.msra.mxu0 0.0
    %694 = vmatprep.subr.mxu0 0.0
    %695 = vmatpush1.xpose.msra.mxu0 0.0
    %696 = vmatprep.subr.mxu0 0.0
    %697 = vmatpush1.xpose.msra.mxu0 0.0
    %698 = vmatprep.subr.mxu0 0.0
    %699 = vmatpush1.xpose.msra.mxu0 0.0
    %700 = vmatprep.subr.mxu0 0.0
    %701 = vmatpush1.xpose.msra.mxu0 0.0
    %702 = vmatprep.subr.mxu0 0.0
    %703 = vmatpush1.xpose.msra.mxu0 0.0
    %704 = vmatprep.subr.mxu0 0.0
    %705 = vmatpush1.xpose.msra.mxu0 0.0
    %706 = vmatprep.subr.mxu0 0.0
    %707 = vmatpush1.xpose.msra.mxu0 0.0
    %708 = vmatprep.subr.mxu0 0.0
    %709 = vmatpush1.xpose.msra.mxu0 0.0
    %710 = vmatprep.subr.mxu0 0.0
    %711 = vmatpush1.xpose.msra.mxu0 0.0
    %712 = vmatprep.subr.mxu0 0.0
    %713 = vmatpush1.xpose.msra.mxu0 0.0
    %714 = vmatprep.subr.mxu0 0.0
    %715 = vmatpush1.xpose.msra.mxu0 0.0
    %716 = vmatprep.subr.mxu0 0.0
    %717 = vmatpush1.xpose.msra.mxu0 0.0
    %718 = vmatprep.subr.mxu0 0.0
    %719 = vmatpush1.xpose.msra.mxu0 0.0
    %720 = vmatprep.subr.mxu0 0.0
    %721 = vmatpush1.xpose.msra.mxu0 0.0
    %722 = vmatprep.subr.mxu0 0.0
    %723 = vmatpush1.xpose.msra.mxu0 0.0
    %724 = vmatprep.subr.mxu0 0.0
    %725 = vmatpush1.xpose.msra.mxu0 0.0
    %726 = vmatprep.subr.mxu0 0.0
    %727 = vmatpush1.xpose.msra.mxu0 0.0
    %728 = vmatprep.subr.mxu0 0.0
    %729 = vmatpush1.xpose.msra.mxu0 0.0
    %730 = vmatprep.subr.mxu0 0.0
    %731 = vmatpush1.xpose.msra.mxu0 0.0
    %732 = vmatprep.subr.mxu0 0.0
    %733 = vmatpush1.xpose.msra.mxu0 0.0
    %734 = vmatprep.subr.mxu0 0.0
    %735 = vmatpush1.xpose.msra.mxu0 0.0
    %736 = vmatprep.subr.mxu0 0.0
    %737 = vmatpush1.xpose.msra.mxu0 0.0
    %738 = vmatprep.subr.mxu0 0.0
    %739 = vmatpush1.xpose.msra.mxu0 0.0
    %740 = vmatprep.mubr.f32.mxu0 0.0
    %741 = vmatmul.mubr.f32.gmra.mrb[0].mxu0 %v671
    %v742 = vpop.f32.mrb[0].mxu0
    %v743 = vadd.f32 0.0, %v742
    %v744 = vpop.f32.mrb[0].mxu0
    %745 = vdwg.mxu0
    %v746 = vmul.f32 %v667, 0.35355338
    %v747 = vmul.f32 %v743, 0.35355338
    %v748 = vadd.f32 %v746, %v347
    %v749 = vadd.f32 %v747, %v348
    %v750 = vsel %vm593, %v748, -inf
    %751 = vmax.xlane.f32.xlu0 %v750
    %v752 = vpop.xlane.xlu0 %751
    %v753 = vsel %vm593, %v749, -inf
    %754 = vmax.xlane.f32.xlu0 %v753
    %v755 = vpop.xlane.xlu0 %754
    %v756 = vsub.f32 %v748, %v752
    %v757 = vsub.f32 %v749, %v755
    %v758 = vmul.f32 %v756, 1.442695
    %v759 = vpow.pop %v758
    %v760 = vmul.f32 %v757, 1.442695
    %v761 = vpow.pop %v760
    %v762 = vsel %vm593, %v759, 0.0
    %763 = vadd.xlane.f32.xlu0 %v762
    %v764 = vpop.xlane.xlu0 %763
    %v765 = vsel %vm593, %v761, 0.0
    %766 = vadd.xlane.f32.xlu0 %v765
    %v767 = vpop.xlane.xlu0 %766
    %v768 = vrcp.pop %v764
    %v769 = vrcp.pop %v767
    %v770 = vmul.f32 %v759, %v768
    %v771 = vmul.f32 %v761, %v769
    %v773 = vsel %vm593, %v770, 0
    %775 = vmatprep.subr.mxu0 0.0
    %776 = vmatpush1.msra.mxu0 %v587
    %777 = vmatprep.subr.mxu0 0.0
    %778 = vmatpush1.msra.mxu0 0.0
    %779 = vmatprep.subr.mxu0 0.0
    %780 = vmatpush1.msra.mxu0 0.0
    %781 = vmatprep.subr.mxu0 0.0
    %782 = vmatpush1.msra.mxu0 0.0
    %783 = vmatprep.subr.mxu0 0.0
    %784 = vmatpush1.msra.mxu0 0.0
    %785 = vmatprep.subr.mxu0 0.0
    %786 = vmatpush1.msra.mxu0 0.0
    %787 = vmatprep.subr.mxu0 0.0
    %788 = vmatpush1.msra.mxu0 0.0
    %789 = vmatprep.subr.mxu0 0.0
    %790 = vmatpush1.msra.mxu0 0.0
    %791 = vmatprep.subr.mxu0 0.0
    %792 = vmatpush1.msra.mxu0 0.0
    %793 = vmatprep.subr.mxu0 0.0
    %794 = vmatpush1.msra.mxu0 0.0
    %795 = vmatprep.subr.mxu0 0.0
    %796 = vmatpush1.msra.mxu0 0.0
    %797 = vmatprep.subr.mxu0 0.0
    %798 = vmatpush1.msra.mxu0 0.0
    %799 = vmatprep.subr.mxu0 0.0
    %800 = vmatpush1.msra.mxu0 0.0
    %801 = vmatprep.subr.mxu0 0.0
    %802 = vmatpush1.msra.mxu0 0.0
    %803 = vmatprep.subr.mxu0 0.0
    %804 = vmatpush1.msra.mxu0 0.0
    %805 = vmatprep.subr.mxu0 0.0
    %806 = vmatpush1.msra.mxu0 0.0
    %807 = vmatprep.subr.mxu0 0.0
    %808 = vmatpush1.msra.mxu0 0.0
    %809 = vmatprep.subr.mxu0 0.0
    %810 = vmatpush1.msra.mxu0 0.0
    %811 = vmatprep.subr.mxu0 0.0
    %812 = vmatpush1.msra.mxu0 0.0
    %813 = vmatprep.subr.mxu0 0.0
    %814 = vmatpush1.msra.mxu0 0.0
    %815 = vmatprep.subr.mxu0 0.0
    %816 = vmatpush1.msra.mxu0 0.0
    %817 = vmatprep.subr.mxu0 0.0
    %818 = vmatpush1.msra.mxu0 0.0
    %819 = vmatprep.subr.mxu0 0.0
    %820 = vmatpush1.msra.mxu0 0.0
    %821 = vmatprep.subr.mxu0 0.0
    %822 = vmatpush1.msra.mxu0 0.0
    %823 = vmatprep.subr.mxu0 0.0
    %824 = vmatpush1.msra.mxu0 0.0
    %825 = vmatprep.subr.mxu0 0.0
    %826 = vmatpush1.msra.mxu0 0.0
    %827 = vmatprep.subr.mxu0 0.0
    %828 = vmatpush1.msra.mxu0 0.0
    %829 = vmatprep.subr.mxu0 0.0
    %830 = vmatpush1.msra.mxu0 0.0
    %831 = vmatprep.subr.mxu0 0.0
    %832 = vmatpush1.msra.mxu0 0.0
    %833 = vmatprep.subr.mxu0 0.0
    %834 = vmatpush1.msra.mxu0 0.0
    %835 = vmatprep.subr.mxu0 0.0
    %836 = vmatpush1.msra.mxu0 0.0
    %837 = vmatprep.subr.mxu0 0.0
    %838 = vmatpush1.msra.mxu0 0.0
    %839 = vmatprep.mubr.f32.mxu0 0.0
    %840 = vmatmul.mubr.f32.gmra.mrb[0].mxu0 %v773
    %v841 = vpop.f32.mrb[0].mxu0
    %v842 = vadd.f32 0.0, %v841
    %v843 = vpop.f32.mrb[0].mxu0
    %844 = vdwg.mxu0
    %v846 = vsel %vm593, %v771, 0
    %848 = vmatprep.subr.mxu0 0.0
    %849 = vmatpush1.msra.mxu0 %v590
    %850 = vmatprep.subr.mxu0 0.0
    %851 = vmatpush1.msra.mxu0 0.0
    %852 = vmatprep.subr.mxu0 0.0
    %853 = vmatpush1.msra.mxu0 0.0
    %854 = vmatprep.subr.mxu0 0.0
    %855 = vmatpush1.msra.mxu0 0.0
    %856 = vmatprep.subr.mxu0 0.0
    %857 = vmatpush1.msra.mxu0 0.0
    %858 = vmatprep.subr.mxu0 0.0
    %859 = vmatpush1.msra.mxu0 0.0
    %860 = vmatprep.subr.mxu0 0.0
    %861 = vmatpush1.msra.mxu0 0.0
    %862 = vmatprep.subr.mxu0 0.0
    %863 = vmatpush1.msra.mxu0 0.0
    %864 = vmatprep.subr.mxu0 0.0
    %865 = vmatpush1.msra.mxu0 0.0
    %866 = vmatprep.subr.mxu0 0.0
    %867 = vmatpush1.msra.mxu0 0.0
    %868 = vmatprep.subr.mxu0 0.0
    %869 = vmatpush1.msra.mxu0 0.0
    %870 = vmatprep.subr.mxu0 0.0
    %871 = vmatpush1.msra.mxu0 0.0
    %872 = vmatprep.subr.mxu0 0.0
    %873 = vmatpush1.msra.mxu0 0.0
    %874 = vmatprep.subr.mxu0 0.0
    %875 = vmatpush1.msra.mxu0 0.0
    %876 = vmatprep.subr.mxu0 0.0
    %877 = vmatpush1.msra.mxu0 0.0
    %878 = vmatprep.subr.mxu0 0.0
    %879 = vmatpush1.msra.mxu0 0.0
    %880 = vmatprep.subr.mxu0 0.0
    %881 = vmatpush1.msra.mxu0 0.0
    %882 = vmatprep.subr.mxu0 0.0
    %883 = vmatpush1.msra.mxu0 0.0
    %884 = vmatprep.subr.mxu0 0.0
    %885 = vmatpush1.msra.mxu0 0.0
    %886 = vmatprep.subr.mxu0 0.0
    %887 = vmatpush1.msra.mxu0 0.0
    %888 = vmatprep.subr.mxu0 0.0
    %889 = vmatpush1.msra.mxu0 0.0
    %890 = vmatprep.subr.mxu0 0.0
    %891 = vmatpush1.msra.mxu0 0.0
    %892 = vmatprep.subr.mxu0 0.0
    %893 = vmatpush1.msra.mxu0 0.0
    %894 = vmatprep.subr.mxu0 0.0
    %895 = vmatpush1.msra.mxu0 0.0
    %896 = vmatprep.subr.mxu0 0.0
    %897 = vmatpush1.msra.mxu0 0.0
    %898 = vmatprep.subr.mxu0 0.0
    %899 = vmatpush1.msra.mxu0 0.0
    %900 = vmatprep.subr.mxu0 0.0
    %901 = vmatpush1.msra.mxu0 0.0
    %902 = vmatprep.subr.mxu0 0.0
    %903 = vmatpush1.msra.mxu0 0.0
    %904 = vmatprep.subr.mxu0 0.0
    %905 = vmatpush1.msra.mxu0 0.0
    %906 = vmatprep.subr.mxu0 0.0
    %907 = vmatpush1.msra.mxu0 0.0
    %908 = vmatprep.subr.mxu0 0.0
    %909 = vmatpush1.msra.mxu0 0.0
    %910 = vmatprep.subr.mxu0 0.0
    %911 = vmatpush1.msra.mxu0 0.0
    %912 = vmatprep.mubr.f32.mxu0 0.0
    %913 = vmatmul.mubr.f32.gmra.mrb[0].mxu0 %v846
    %v914 = vpop.f32.mrb[0].mxu0
    %v915 = vadd.f32 0.0, %v914
    %v916 = vpop.f32.mrb[0].mxu0
    %917 = vdwg.mxu0
    %v918 = vadd.f32 %v770, 0.0
    %v919 = vadd.f32 %v771, 0.0
    %920 = vrot.lane.b32.xlu0 %v459, 120
    %v921 = vpop.permute.xlu0 %920
    %922 = vrot.lane.b32.xlu0 %v523, 120
    %v923 = vpop.permute.xlu0 %922
    %v924 = vsel %vm593, %v921, 0
    %v926 = vsel %vm593, %v923, 0
    %928 = vmatprep.subr.mxu0 0.0
    %929 = vmatpush1.xpose.msra.mxu0 %v926
    %930 = vmatprep.subr.mxu0 0.0
    %931 = vmatpush1.xpose.msra.mxu0 0.0
    %932 = vmatprep.subr.mxu0 0.0
    %933 = vmatpush1.xpose.msra.mxu0 0.0
    %934 = vmatprep.subr.mxu0 0.0
    %935 = vmatpush1.xpose.msra.mxu0 0.0
    %936 = vmatprep.subr.mxu0 0.0
    %937 = vmatpush1.xpose.msra.mxu0 0.0
    %938 = vmatprep.subr.mxu0 0.0
    %939 = vmatpush1.xpose.msra.mxu0 0.0
    %940 = vmatprep.subr.mxu0 0.0
    %941 = vmatpush1.xpose.msra.mxu0 0.0
    %942 = vmatprep.subr.mxu0 0.0
    %943 = vmatpush1.xpose.msra.mxu0 0.0
    %944 = vmatprep.subr.mxu0 0.0
    %945 = vmatpush1.xpose.msra.mxu0 0.0
    %946 = vmatprep.subr.mxu0 0.0
    %947 = vmatpush1.xpose.msra.mxu0 0.0
    %948 = vmatprep.subr.mxu0 0.0
    %949 = vmatpush1.xpose.msra.mxu0 0.0
    %950 = vmatprep.subr.mxu0 0.0
    %951 = vmatpush1.xpose.msra.mxu0 0.0
    %952 = vmatprep.subr.mxu0 0.0
    %953 = vmatpush1.xpose.msra.mxu0 0.0
    %954 = vmatprep.subr.mxu0 0.0
    %955 = vmatpush1.xpose.msra.mxu0 0.0
    %956 = vmatprep.subr.mxu0 0.0
    %957 = vmatpush1.xpose.msra.mxu0 0.0
    %958 = vmatprep.subr.mxu0 0.0
    %959 = vmatpush1.xpose.msra.mxu0 0.0
    %960 = vmatprep.subr.mxu0 0.0
    %961 = vmatpush1.xpose.msra.mxu0 0.0
    %962 = vmatprep.subr.mxu0 0.0
    %963 = vmatpush1.xpose.msra.mxu0 0.0
    %964 = vmatprep.subr.mxu0 0.0
    %965 = vmatpush1.xpose.msra.mxu0 0.0
    %966 = vmatprep.subr.mxu0 0.0
    %967 = vmatpush1.xpose.msra.mxu0 0.0
    %968 = vmatprep.subr.mxu0 0.0
    %969 = vmatpush1.xpose.msra.mxu0 0.0
    %970 = vmatprep.subr.mxu0 0.0
    %971 = vmatpush1.xpose.msra.mxu0 0.0
    %972 = vmatprep.subr.mxu0 0.0
    %973 = vmatpush1.xpose.msra.mxu0 0.0
    %974 = vmatprep.subr.mxu0 0.0
    %975 = vmatpush1.xpose.msra.mxu0 0.0
    %976 = vmatprep.subr.mxu0 0.0
    %977 = vmatpush1.xpose.msra.mxu0 0.0
    %978 = vmatprep.subr.mxu0 0.0
    %979 = vmatpush1.xpose.msra.mxu0 0.0
    %980 = vmatprep.subr.mxu0 0.0
    %981 = vmatpush1.xpose.msra.mxu0 0.0
    %982 = vmatprep.subr.mxu0 0.0
    %983 = vmatpush1.xpose.msra.mxu0 0.0
    %984 = vmatprep.subr.mxu0 0.0
    %985 = vmatpush1.xpose.msra.mxu0 0.0
    %986 = vmatprep.subr.mxu0 0.0
    %987 = vmatpush1.xpose.msra.mxu0 0.0
    %988 = vmatprep.subr.mxu0 0.0
    %989 = vmatpush1.xpose.msra.mxu0 0.0
    %990 = vmatprep.subr.mxu0 0.0
    %991 = vmatpush1.xpose.msra.mxu0 0.0
    %992 = vmatprep.mubr.f32.mxu0 0.0
    %993 = vmatmul.mubr.f32.gmra.mrb[0].mxu0 %v924
    %v994 = vpop.f32.mrb[0].mxu0
    %v995 = vadd.f32 0.0, %v994
    %v996 = vpop.f32.mrb[0].mxu0
    %997 = vdwg.mxu0
    %998 = vrot.lane.b32.xlu0 %v462, 120
    %v999 = vpop.permute.xlu0 %998
    %1000 = vrot.lane.b32.xlu0 %v526, 120
    %v1001 = vpop.permute.xlu0 %1000
    %v1002 = vsel %vm593, %v999, 0
    %v1004 = vsel %vm593, %v1001, 0
    %1006 = vmatprep.subr.mxu0 0.0
    %1007 = vmatpush1.xpose.msra.mxu0 %v1004
    %1008 = vmatprep.subr.mxu0 0.0
    %1009 = vmatpush1.xpose.msra.mxu0 0.0
    %1010 = vmatprep.subr.mxu0 0.0
    %1011 = vmatpush1.xpose.msra.mxu0 0.0
    %1012 = vmatprep.subr.mxu0 0.0
    %1013 = vmatpush1.xpose.msra.mxu0 0.0
    %1014 = vmatprep.subr.mxu0 0.0
    %1015 = vmatpush1.xpose.msra.mxu0 0.0
    %1016 = vmatprep.subr.mxu0 0.0
    %1017 = vmatpush1.xpose.msra.mxu0 0.0
    %1018 = vmatprep.subr.mxu0 0.0
    %1019 = vmatpush1.xpose.msra.mxu0 0.0
    %1020 = vmatprep.subr.mxu0 0.0
    %1021 = vmatpush1.xpose.msra.mxu0 0.0
    %1022 = vmatprep.subr.mxu0 0.0
    %1023 = vmatpush1.xpose.msra.mxu0 0.0
    %1024 = vmatprep.subr.mxu0 0.0
    %1025 = vmatpush1.xpose.msra.mxu0 0.0
    %1026 = vmatprep.subr.mxu0 0.0
    %1027 = vmatpush1.xpose.msra.mxu0 0.0
    %1028 = vmatprep.subr.mxu0 0.0
    %1029 = vmatpush1.xpose.msra.mxu0 0.0
    %1030 = vmatprep.subr.mxu0 0.0
    %1031 = vmatpush1.xpose.msra.mxu0 0.0
    %1032 = vmatprep.subr.mxu0 0.0
    %1033 = vmatpush1.xpose.msra.mxu0 0.0
    %1034 = vmatprep.subr.mxu0 0.0
    %1035 = vmatpush1.xpose.msra.mxu0 0.0
    %1036 = vmatprep.subr.mxu0 0.0
    %1037 = vmatpush1.xpose.msra.mxu0 0.0
    %1038 = vmatprep.subr.mxu0 0.0
    %1039 = vmatpush1.xpose.msra.mxu0 0.0
    %1040 = vmatprep.subr.mxu0 0.0
    %1041 = vmatpush1.xpose.msra.mxu0 0.0
    %1042 = vmatprep.subr.mxu0 0.0
    %1043 = vmatpush1.xpose.msra.mxu0 0.0
    %1044 = vmatprep.subr.mxu0 0.0
    %1045 = vmatpush1.xpose.msra.mxu0 0.0
    %1046 = vmatprep.subr.mxu0 0.0
    %1047 = vmatpush1.xpose.msra.mxu0 0.0
    %1048 = vmatprep.subr.mxu0 0.0
    %1049 = vmatpush1.xpose.msra.mxu0 0.0
    %1050 = vmatprep.subr.mxu0 0.0
    %1051 = vmatpush1.xpose.msra.mxu0 0.0
    %1052 = vmatprep.subr.mxu0 0.0
    %1053 = vmatpush1.xpose.msra.mxu0 0.0
    %1054 = vmatprep.subr.mxu0 0.0
    %1055 = vmatpush1.xpose.msra.mxu0 0.0
    %1056 = vmatprep.subr.mxu0 0.0
    %1057 = vmatpush1.xpose.msra.mxu0 0.0
    %1058 = vmatprep.subr.mxu0 0.0
    %1059 = vmatpush1.xpose.msra.mxu0 0.0
    %1060 = vmatprep.subr.mxu0 0.0
    %1061 = vmatpush1.xpose.msra.mxu0 0.0
    %1062 = vmatprep.subr.mxu0 0.0
    %1063 = vmatpush1.xpose.msra.mxu0 0.0
    %1064 = vmatprep.subr.mxu0 0.0
    %1065 = vmatpush1.xpose.msra.mxu0 0.0
    %1066 = vmatprep.subr.mxu0 0.0
    %1067 = vmatpush1.xpose.msra.mxu0 0.0
    %1068 = vmatprep.subr.mxu0 0.0
    %1069 = vmatpush1.xpose.msra.mxu0 0.0
    %1070 = vmatprep.mubr.f32.mxu0 0.0
    %1071 = vmatmul.mubr.f32.gmra.mrb[0].mxu0 %v1002
    %v1072 = vpop.f32.mrb[0].mxu0
    %v1073 = vadd.f32 0.0, %v1072
    %v1074 = vpop.f32.mrb[0].mxu0
    %1075 = vdwg.mxu0
    %v1076 = vmul.f32 %v995, 0.35355338
    %v1077 = vmul.f32 %v1073, 0.35355338
    %v1078 = vadd.f32 %v1076, %v347
    %v1079 = vadd.f32 %v1077, %v348
    %v1080 = vsel %vm593, %v1078, -inf
    %1081 = vmax.xlane.f32.xlu0 %v1080
    %v1082 = vpop.xlane.xlu0 %1081
    %v1083 = vsel %vm593, %v1079, -inf
    %1084 = vmax.xlane.f32.xlu0 %v1083
    %v1085 = vpop.xlane.xlu0 %1084
    %v1086 = vsub.f32 %v1078, %v1082
    %v1087 = vsub.f32 %v1079, %v1085
    %v1088 = vmul.f32 %v1086, 1.442695
    %v1089 = vpow.pop %v1088
    %v1090 = vmul.f32 %v1087, 1.442695
    %v1091 = vpow.pop %v1090
    %v1092 = vsel %vm593, %v1089, 0.0
    %1093 = vadd.xlane.f32.xlu0 %v1092
    %v1094 = vpop.xlane.xlu0 %1093
    %v1095 = vsel %vm593, %v1091, 0.0
    %1096 = vadd.xlane.f32.xlu0 %v1095
    %v1097 = vpop.xlane.xlu0 %1096
    %v1098 = vrcp.pop %v1094
    %v1099 = vrcp.pop %v1097
    %v1100 = vmul.f32 %v1089, %v1098
    %v1101 = vmul.f32 %v1091, %v1099
    %1103 = vrot.lane.b32.xlu0 %v587, 120
    %v1104 = vpop.permute.xlu0 %1103
    %v1107 = vsel %vm593, %v1100, 0
    %1109 = vmatprep.subr.mxu0 0.0
    %1110 = vmatpush1.msra.mxu0 %v1104
    %1111 = vmatprep.subr.mxu0 0.0
    %1112 = vmatpush1.msra.mxu0 0.0
    %1113 = vmatprep.subr.mxu0 0.0
    %1114 = vmatpush1.msra.mxu0 0.0
    %1115 = vmatprep.subr.mxu0 0.0
    %1116 = vmatpush1.msra.mxu0 0.0
    %1117 = vmatprep.subr.mxu0 0.0
    %1118 = vmatpush1.msra.mxu0 0.0
    %1119 = vmatprep.subr.mxu0 0.0
    %1120 = vmatpush1.msra.mxu0 0.0
    %1121 = vmatprep.subr.mxu0 0.0
    %1122 = vmatpush1.msra.mxu0 0.0
    %1123 = vmatprep.subr.mxu0 0.0
    %1124 = vmatpush1.msra.mxu0 0.0
    %1125 = vmatprep.subr.mxu0 0.0
    %1126 = vmatpush1.msra.mxu0 0.0
    %1127 = vmatprep.subr.mxu0 0.0
    %1128 = vmatpush1.msra.mxu0 0.0
    %1129 = vmatprep.subr.mxu0 0.0
    %1130 = vmatpush1.msra.mxu0 0.0
    %1131 = vmatprep.subr.mxu0 0.0
    %1132 = vmatpush1.msra.mxu0 0.0
    %1133 = vmatprep.subr.mxu0 0.0
    %1134 = vmatpush1.msra.mxu0 0.0
    %1135 = vmatprep.subr.mxu0 0.0
    %1136 = vmatpush1.msra.mxu0 0.0
    %1137 = vmatprep.subr.mxu0 0.0
    %1138 = vmatpush1.msra.mxu0 0.0
    %1139 = vmatprep.subr.mxu0 0.0
    %1140 = vmatpush1.msra.mxu0 0.0
    %1141 = vmatprep.subr.mxu0 0.0
    %1142 = vmatpush1.msra.mxu0 0.0
    %1143 = vmatprep.subr.mxu0 0.0
    %1144 = vmatpush1.msra.mxu0 0.0
    %1145 = vmatprep.subr.mxu0 0.0
    %1146 = vmatpush1.msra.mxu0 0.0
    %1147 = vmatprep.subr.mxu0 0.0
    %1148 = vmatpush1.msra.mxu0 0.0
    %1149 = vmatprep.subr.mxu0 0.0
    %1150 = vmatpush1.msra.mxu0 0.0
    %1151 = vmatprep.subr.mxu0 0.0
    %1152 = vmatpush1.msra.mxu0 0.0
    %1153 = vmatprep.subr.mxu0 0.0
    %1154 = vmatpush1.msra.mxu0 0.0
    %1155 = vmatprep.subr.mxu0 0.0
    %1156 = vmatpush1.msra.mxu0 0.0
    %1157 = vmatprep.subr.mxu0 0.0
    %1158 = vmatpush1.msra.mxu0 0.0
    %1159 = vmatprep.subr.mxu0 0.0
    %1160 = vmatpush1.msra.mxu0 0.0
    %1161 = vmatprep.subr.mxu0 0.0
    %1162 = vmatpush1.msra.mxu0 0.0
    %1163 = vmatprep.subr.mxu0 0.0
    %1164 = vmatpush1.msra.mxu0 0.0
    %1165 = vmatprep.subr.mxu0 0.0
    %1166 = vmatpush1.msra.mxu0 0.0
    %1167 = vmatprep.subr.mxu0 0.0
    %1168 = vmatpush1.msra.mxu0 0.0
    %1169 = vmatprep.subr.mxu0 0.0
    %1170 = vmatpush1.msra.mxu0 0.0
    %1171 = vmatprep.subr.mxu0 0.0
    %1172 = vmatpush1.msra.mxu0 0.0
    %1173 = vmatprep.mubr.f32.mxu0 0.0
    %1174 = vmatmul.mubr.f32.gmra.mrb[0].mxu0 %v1107
    %v1175 = vpop.f32.mrb[0].mxu0
    %v1176 = vadd.f32 0.0, %v1175
    %v1177 = vpop.f32.mrb[0].mxu0
    %1178 = vdwg.mxu0
    %1180 = vrot.lane.b32.xlu0 %v590, 120
    %v1181 = vpop.permute.xlu0 %1180
    %v1184 = vsel %vm593, %v1101, 0
    %1186 = vmatprep.subr.mxu0 0.0
    %1187 = vmatpush1.msra.mxu0 %v1181
    %1188 = vmatprep.subr.mxu0 0.0
    %1189 = vmatpush1.msra.mxu0 0.0
    %1190 = vmatprep.subr.mxu0 0.0
    %1191 = vmatpush1.msra.mxu0 0.0
    %1192 = vmatprep.subr.mxu0 0.0
    %1193 = vmatpush1.msra.mxu0 0.0
    %1194 = vmatprep.subr.mxu0 0.0
    %1195 = vmatpush1.msra.mxu0 0.0
    %1196 = vmatprep.subr.mxu0 0.0
    %1197 = vmatpush1.msra.mxu0 0.0
    %1198 = vmatprep.subr.mxu0 0.0
    %1199 = vmatpush1.msra.mxu0 0.0
    %1200 = vmatprep.subr.mxu0 0.0
    %1201 = vmatpush1.msra.mxu0 0.0
    %1202 = vmatprep.subr.mxu0 0.0
    %1203 = vmatpush1.msra.mxu0 0.0
    %1204 = vmatprep.subr.mxu0 0.0
    %1205 = vmatpush1.msra.mxu0 0.0
    %1206 = vmatprep.subr.mxu0 0.0
    %1207 = vmatpush1.msra.mxu0 0.0
    %1208 = vmatprep.subr.mxu0 0.0
    %1209 = vmatpush1.msra.mxu0 0.0
    %1210 = vmatprep.subr.mxu0 0.0
    %1211 = vmatpush1.msra.mxu0 0.0
    %1212 = vmatprep.subr.mxu0 0.0
    %1213 = vmatpush1.msra.mxu0 0.0
    %1214 = vmatprep.subr.mxu0 0.0
    %1215 = vmatpush1.msra.mxu0 0.0
    %1216 = vmatprep.subr.mxu0 0.0
    %1217 = vmatpush1.msra.mxu0 0.0
    %1218 = vmatprep.subr.mxu0 0.0
    %1219 = vmatpush1.msra.mxu0 0.0
    %1220 = vmatprep.subr.mxu0 0.0
    %1221 = vmatpush1.msra.mxu0 0.0
    %1222 = vmatprep.subr.mxu0 0.0
    %1223 = vmatpush1.msra.mxu0 0.0
    %1224 = vmatprep.subr.mxu0 0.0
    %1225 = vmatpush1.msra.mxu0 0.0
    %1226 = vmatprep.subr.mxu0 0.0
    %1227 = vmatpush1.msra.mxu0 0.0
    %1228 = vmatprep.subr.mxu0 0.0
    %1229 = vmatpush1.msra.mxu0 0.0
    %1230 = vmatprep.subr.mxu0 0.0
    %1231 = vmatpush1.msra.mxu0 0.0
    %1232 = vmatprep.subr.mxu0 0.0
    %1233 = vmatpush1.msra.mxu0 0.0
    %1234 = vmatprep.subr.mxu0 0.0
    %1235 = vmatpush1.msra.mxu0 0.0
    %1236 = vmatprep.subr.mxu0 0.0
    %1237 = vmatpush1.msra.mxu0 0.0
    %1238 = vmatprep.subr.mxu0 0.0
    %1239 = vmatpush1.msra.mxu0 0.0
    %1240 = vmatprep.subr.mxu0 0.0
    %1241 = vmatpush1.msra.mxu0 0.0
    %1242 = vmatprep.subr.mxu0 0.0
    %1243 = vmatpush1.msra.mxu0 0.0
    %1244 = vmatprep.subr.mxu0 0.0
    %1245 = vmatpush1.msra.mxu0 0.0
    %1246 = vmatprep.subr.mxu0 0.0
    %1247 = vmatpush1.msra.mxu0 0.0
    %1248 = vmatprep.subr.mxu0 0.0
    %1249 = vmatpush1.msra.mxu0 0.0
    %1250 = vmatprep.mubr.f32.mxu0 0.0
    %1251 = vmatmul.mubr.f32.gmra.mrb[0].mxu0 %v1184
    %v1252 = vpop.f32.mrb[0].mxu0
    %v1253 = vadd.f32 0.0, %v1252
    %v1254 = vpop.f32.mrb[0].mxu0
    %1255 = vdwg.mxu0
    %v1256 = vadd.f32 %v918, %v1100
    %v1257 = vadd.f32 %v919, %v1101
    %1258 = vrot.lane.b32.xlu0 %v459, 112
    %v1259 = vpop.permute.xlu0 %1258
    %1260 = vrot.lane.b32.xlu0 %v523, 112
    %v1261 = vpop.permute.xlu0 %1260
    %v1262 = vsel %vm593, %v1259, 0
    %v1264 = vsel %vm593, %v1261, 0
    %1266 = vmatprep.subr.mxu0 0.0
    %1267 = vmatpush1.xpose.msra.mxu0 %v1264
    %1268 = vmatprep.subr.mxu0 0.0
    %1269 = vmatpush1.xpose.msra.mxu0 0.0
    %1270 = vmatprep.subr.mxu0 0.0
    %1271 = vmatpush1.xpose.msra.mxu0 0.0
    %1272 = vmatprep.subr.mxu0 0.0
    %1273 = vmatpush1.xpose.msra.mxu0 0.0
    %1274 = vmatprep.subr.mxu0 0.0
    %1275 = vmatpush1.xpose.msra.mxu0 0.0
    %1276 = vmatprep.subr.mxu0 0.0
    %1277 = vmatpush1.xpose.msra.mxu0 0.0
    %1278 = vmatprep.subr.mxu0 0.0
    %1279 = vmatpush1.xpose.msra.mxu0 0.0
    %1280 = vmatprep.subr.mxu0 0.0
    %1281 = vmatpush1.xpose.msra.mxu0 0.0
    %1282 = vmatprep.subr.mxu0 0.0
    %1283 = vmatpush1.xpose.msra.mxu0 0.0
    %1284 = vmatprep.subr.mxu0 0.0
    %1285 = vmatpush1.xpose.msra.mxu0 0.0
    %1286 = vmatprep.subr.mxu0 0.0
    %1287 = vmatpush1.xpose.msra.mxu0 0.0
    %1288 = vmatprep.subr.mxu0 0.0
    %1289 = vmatpush1.xpose.msra.mxu0 0.0
    %1290 = vmatprep.subr.mxu0 0.0
    %1291 = vmatpush1.xpose.msra.mxu0 0.0
    %1292 = vmatprep.subr.mxu0 0.0
    %1293 = vmatpush1.xpose.msra.mxu0 0.0
    %1294 = vmatprep.subr.mxu0 0.0
    %1295 = vmatpush1.xpose.msra.mxu0 0.0
    %1296 = vmatprep.subr.mxu0 0.0
    %1297 = vmatpush1.xpose.msra.mxu0 0.0
    %1298 = vmatprep.subr.mxu0 0.0
    %1299 = vmatpush1.xpose.msra.mxu0 0.0
    %1300 = vmatprep.subr.mxu0 0.0
    %1301 = vmatpush1.xpose.msra.mxu0 0.0
    %1302 = vmatprep.subr.mxu0 0.0
    %1303 = vmatpush1.xpose.msra.mxu0 0.0
    %1304 = vmatprep.subr.mxu0 0.0
    %1305 = vmatpush1.xpose.msra.mxu0 0.0
    %1306 = vmatprep.subr.mxu0 0.0
    %1307 = vmatpush1.xpose.msra.mxu0 0.0
    %1308 = vmatprep.subr.mxu0 0.0
    %1309 = vmatpush1.xpose.msra.mxu0 0.0
    %1310 = vmatprep.subr.mxu0 0.0
    %1311 = vmatpush1.xpose.msra.mxu0 0.0
    %1312 = vmatprep.subr.mxu0 0.0
    %1313 = vmatpush1.xpose.msra.mxu0 0.0
    %1314 = vmatprep.subr.mxu0 0.0
    %1315 = vmatpush1.xpose.msra.mxu0 0.0
    %1316 = vmatprep.subr.mxu0 0.0
    %1317 = vmatpush1.xpose.msra.mxu0 0.0
    %1318 = vmatprep.subr.mxu0 0.0
    %1319 = vmatpush1.xpose.msra.mxu0 0.0
    %1320 = vmatprep.subr.mxu0 0.0
    %1321 = vmatpush1.xpose.msra.mxu0 0.0
    %1322 = vmatprep.subr.mxu0 0.0
    %1323 = vmatpush1.xpose.msra.mxu0 0.0
    %1324 = vmatprep.subr.mxu0 0.0
    %1325 = vmatpush1.xpose.msra.mxu0 0.0
    %1326 = vmatprep.subr.mxu0 0.0
    %1327 = vmatpush1.xpose.msra.mxu0 0.0
    %1328 = vmatprep.subr.mxu0 0.0
    %1329 = vmatpush1.xpose.msra.mxu0 0.0
    %1330 = vmatprep.mubr.f32.mxu0 0.0
    %1331 = vmatmul.mubr.f32.gmra.mrb[0].mxu0 %v1262
    %v1332 = vpop.f32.mrb[0].mxu0
    %v1333 = vadd.f32 0.0, %v1332
    %v1334 = vpop.f32.mrb[0].mxu0
    %1335 = vdwg.mxu0
    %1336 = vrot.lane.b32.xlu0 %v462, 112
    %v1337 = vpop.permute.xlu0 %1336
    %1338 = vrot.lane.b32.xlu0 %v526, 112
    %v1339 = vpop.permute.xlu0 %1338
    %v1340 = vsel %vm593, %v1337, 0
    %v1342 = vsel %vm593, %v1339, 0
    %1344 = vmatprep.subr.mxu0 0.0
    %1345 = vmatpush1.xpose.msra.mxu0 %v1342
    %1346 = vmatprep.subr.mxu0 0.0
    %1347 = vmatpush1.xpose.msra.mxu0 0.0
    %1348 = vmatprep.subr.mxu0 0.0
    %1349 = vmatpush1.xpose.msra.mxu0 0.0
    %1350 = vmatprep.subr.mxu0 0.0
    %1351 = vmatpush1.xpose.msra.mxu0 0.0
    %1352 = vmatprep.subr.mxu0 0.0
    %1353 = vmatpush1.xpose.msra.mxu0 0.0
    %1354 = vmatprep.subr.mxu0 0.0
    %1355 = vmatpush1.xpose.msra.mxu0 0.0
    %1356 = vmatprep.subr.mxu0 0.0
    %1357 = vmatpush1.xpose.msra.mxu0 0.0
    %1358 = vmatprep.subr.mxu0 0.0
    %1359 = vmatpush1.xpose.msra.mxu0 0.0
    %1360 = vmatprep.subr.mxu0 0.0
    %1361 = vmatpush1.xpose.msra.mxu0 0.0
    %1362 = vmatprep.subr.mxu0 0.0
    %1363 = vmatpush1.xpose.msra.mxu0 0.0
    %1364 = vmatprep.subr.mxu0 0.0
    %1365 = vmatpush1.xpose.msra.mxu0 0.0
    %1366 = vmatprep.subr.mxu0 0.0
    %1367 = vmatpush1.xpose.msra.mxu0 0.0
    %1368 = vmatprep.subr.mxu0 0.0
    %1369 = vmatpush1.xpose.msra.mxu0 0.0
    %1370 = vmatprep.subr.mxu0 0.0
    %1371 = vmatpush1.xpose.msra.mxu0 0.0
    %1372 = vmatprep.subr.mxu0 0.0
    %1373 = vmatpush1.xpose.msra.mxu0 0.0
    %1374 = vmatprep.subr.mxu0 0.0
    %1375 = vmatpush1.xpose.msra.mxu0 0.0
    %1376 = vmatprep.subr.mxu0 0.0
    %1377 = vmatpush1.xpose.msra.mxu0 0.0
    %1378 = vmatprep.subr.mxu0 0.0
    %1379 = vmatpush1.xpose.msra.mxu0 0.0
    %1380 = vmatprep.subr.mxu0 0.0
    %1381 = vmatpush1.xpose.msra.mxu0 0.0
    %1382 = vmatprep.subr.mxu0 0.0
    %1383 = vmatpush1.xpose.msra.mxu0 0.0
    %1384 = vmatprep.subr.mxu0 0.0
    %1385 = vmatpush1.xpose.msra.mxu0 0.0
    %1386 = vmatprep.subr.mxu0 0.0
    %1387 = vmatpush1.xpose.msra.mxu0 0.0
    %1388 = vmatprep.subr.mxu0 0.0
    %1389 = vmatpush1.xpose.msra.mxu0 0.0
    %1390 = vmatprep.subr.mxu0 0.0
    %1391 = vmatpush1.xpose.msra.mxu0 0.0
    %1392 = vmatprep.subr.mxu0 0.0
    %1393 = vmatpush1.xpose.msra.mxu0 0.0
    %1394 = vmatprep.subr.mxu0 0.0
    %1395 = vmatpush1.xpose.msra.mxu0 0.0
    %1396 = vmatprep.subr.mxu0 0.0
    %1397 = vmatpush1.xpose.msra.mxu0 0.0
    %1398 = vmatprep.subr.mxu0 0.0
    %1399 = vmatpush1.xpose.msra.mxu0 0.0
    %1400 = vmatprep.subr.mxu0 0.0
    %1401 = vmatpush1.xpose.msra.mxu0 0.0
    %1402 = vmatprep.subr.mxu0 0.0
    %1403 = vmatpush1.xpose.msra.mxu0 0.0
    %1404 = vmatprep.subr.mxu0 0.0
    %1405 = vmatpush1.xpose.msra.mxu0 0.0
    %1406 = vmatprep.subr.mxu0 0.0
    %1407 = vmatpush1.xpose.msra.mxu0 0.0
    %1408 = vmatprep.mubr.f32.mxu0 0.0
    %1409 = vmatmul.mubr.f32.gmra.mrb[0].mxu0 %v1340
    %v1410 = vpop.f32.mrb[0].mxu0
    %v1411 = vadd.f32 0.0, %v1410
    %v1412 = vpop.f32.mrb[0].mxu0
    %1413 = vdwg.mxu0
    %v1414 = vmul.f32 %v1333, 0.35355338
    %v1415 = vmul.f32 %v1411, 0.35355338
    %v1416 = vadd.f32 %v1414, %v347
    %v1417 = vadd.f32 %v1415, %v348
    %v1418 = vsel %vm593, %v1416, -inf
    %1419 = vmax.xlane.f32.xlu0 %v1418
    %v1420 = vpop.xlane.xlu0 %1419
    %v1421 = vsel %vm593, %v1417, -inf
    %1422 = vmax.xlane.f32.xlu0 %v1421
    %v1423 = vpop.xlane.xlu0 %1422
    %v1424 = vsub.f32 %v1416, %v1420
    %v1425 = vsub.f32 %v1417, %v1423
    %v1426 = vmul.f32 %v1424, 1.442695
    %v1427 = vpow.pop %v1426
    %v1428 = vmul.f32 %v1425, 1.442695
    %v1429 = vpow.pop %v1428
    %v1430 = vsel %vm593, %v1427, 0.0
    %1431 = vadd.xlane.f32.xlu0 %v1430
    %v1432 = vpop.xlane.xlu0 %1431
    %v1433 = vsel %vm593, %v1429, 0.0
    %1434 = vadd.xlane.f32.xlu0 %v1433
    %v1435 = vpop.xlane.xlu0 %1434
    %v1436 = vrcp.pop %v1432
    %v1437 = vrcp.pop %v1435
    %v1438 = vmul.f32 %v1427, %v1436
    %v1439 = vmul.f32 %v1429, %v1437
    %1440 = vrot.lane.b32.xlu0 %v587, 112
    %v1441 = vpop.permute.xlu0 %1440
    %v1444 = vsel %vm593, %v1438, 0
    %1446 = vmatprep.subr.mxu0 0.0
    %1447 = vmatpush1.msra.mxu0 %v1441
    %1448 = vmatprep.subr.mxu0 0.0
    %1449 = vmatpush1.msra.mxu0 0.0
    %1450 = vmatprep.subr.mxu0 0.0
    %1451 = vmatpush1.msra.mxu0 0.0
    %1452 = vmatprep.subr.mxu0 0.0
    %1453 = vmatpush1.msra.mxu0 0.0
    %1454 = vmatprep.subr.mxu0 0.0
    %1455 = vmatpush1.msra.mxu0 0.0
    %1456 = vmatprep.subr.mxu0 0.0
    %1457 = vmatpush1.msra.mxu0 0.0
    %1458 = vmatprep.subr.mxu0 0.0
    %1459 = vmatpush1.msra.mxu0 0.0
    %1460 = vmatprep.subr.mxu0 0.0
    %1461 = vmatpush1.msra.mxu0 0.0
    %1462 = vmatprep.subr.mxu0 0.0
    %1463 = vmatpush1.msra.mxu0 0.0
    %1464 = vmatprep.subr.mxu0 0.0
    %1465 = vmatpush1.msra.mxu0 0.0
    %1466 = vmatprep.subr.mxu0 0.0
    %1467 = vmatpush1.msra.mxu0 0.0
    %1468 = vmatprep.subr.mxu0 0.0
    %1469 = vmatpush1.msra.mxu0 0.0
    %1470 = vmatprep.subr.mxu0 0.0
    %1471 = vmatpush1.msra.mxu0 0.0
    %1472 = vmatprep.subr.mxu0 0.0
    %1473 = vmatpush1.msra.mxu0 0.0
    %1474 = vmatprep.subr.mxu0 0.0
    %1475 = vmatpush1.msra.mxu0 0.0
    %1476 = vmatprep.subr.mxu0 0.0
    %1477 = vmatpush1.msra.mxu0 0.0
    %1478 = vmatprep.subr.mxu0 0.0
    %1479 = vmatpush1.msra.mxu0 0.0
    %1480 = vmatprep.subr.mxu0 0.0
    %1481 = vmatpush1.msra.mxu0 0.0
    %1482 = vmatprep.subr.mxu0 0.0
    %1483 = vmatpush1.msra.mxu0 0.0
    %1484 = vmatprep.subr.mxu0 0.0
    %1485 = vmatpush1.msra.mxu0 0.0
    %1486 = vmatprep.subr.mxu0 0.0
    %1487 = vmatpush1.msra.mxu0 0.0
    %1488 = vmatprep.subr.mxu0 0.0
    %1489 = vmatpush1.msra.mxu0 0.0
    %1490 = vmatprep.subr.mxu0 0.0
    %1491 = vmatpush1.msra.mxu0 0.0
    %1492 = vmatprep.subr.mxu0 0.0
    %1493 = vmatpush1.msra.mxu0 0.0
    %1494 = vmatprep.subr.mxu0 0.0
    %1495 = vmatpush1.msra.mxu0 0.0
    %1496 = vmatprep.subr.mxu0 0.0
    %1497 = vmatpush1.msra.mxu0 0.0
    %1498 = vmatprep.subr.mxu0 0.0
    %1499 = vmatpush1.msra.mxu0 0.0
    %1500 = vmatprep.subr.mxu0 0.0
    %1501 = vmatpush1.msra.mxu0 0.0
    %1502 = vmatprep.subr.mxu0 0.0
    %1503 = vmatpush1.msra.mxu0 0.0
    %1504 = vmatprep.subr.mxu0 0.0
    %1505 = vmatpush1.msra.mxu0 0.0
    %1506 = vmatprep.subr.mxu0 0.0
    %1507 = vmatpush1.msra.mxu0 0.0
    %1508 = vmatprep.subr.mxu0 0.0
    %1509 = vmatpush1.msra.mxu0 0.0
    %1510 = vmatprep.mubr.f32.mxu0 0.0
    %1511 = vmatmul.mubr.f32.gmra.mrb[0].mxu0 %v1444
    %v1512 = vpop.f32.mrb[0].mxu0
    %v1513 = vadd.f32 0.0, %v1512
    %v1514 = vpop.f32.mrb[0].mxu0
    %1515 = vdwg.mxu0
    %1516 = vrot.lane.b32.xlu0 %v590, 112
    %v1517 = vpop.permute.xlu0 %1516
    %v1520 = vsel %vm593, %v1439, 0
    %1522 = vmatprep.subr.mxu0 0.0
    %1523 = vmatpush1.msra.mxu0 %v1517
    %1524 = vmatprep.subr.mxu0 0.0
    %1525 = vmatpush1.msra.mxu0 0.0
    %1526 = vmatprep.subr.mxu0 0.0
    %1527 = vmatpush1.msra.mxu0 0.0
    %1528 = vmatprep.subr.mxu0 0.0
    %1529 = vmatpush1.msra.mxu0 0.0
    %1530 = vmatprep.subr.mxu0 0.0
    %1531 = vmatpush1.msra.mxu0 0.0
    %1532 = vmatprep.subr.mxu0 0.0
    %1533 = vmatpush1.msra.mxu0 0.0
    %1534 = vmatprep.subr.mxu0 0.0
    %1535 = vmatpush1.msra.mxu0 0.0
    %1536 = vmatprep.subr.mxu0 0.0
    %1537 = vmatpush1.msra.mxu0 0.0
    %1538 = vmatprep.subr.mxu0 0.0
    %1539 = vmatpush1.msra.mxu0 0.0
    %1540 = vmatprep.subr.mxu0 0.0
    %1541 = vmatpush1.msra.mxu0 0.0
    %1542 = vmatprep.subr.mxu0 0.0
    %1543 = vmatpush1.msra.mxu0 0.0
    %1544 = vmatprep.subr.mxu0 0.0
    %1545 = vmatpush1.msra.mxu0 0.0
    %1546 = vmatprep.subr.mxu0 0.0
    %1547 = vmatpush1.msra.mxu0 0.0
    %1548 = vmatprep.subr.mxu0 0.0
    %1549 = vmatpush1.msra.mxu0 0.0
    %1550 = vmatprep.subr.mxu0 0.0
    %1551 = vmatpush1.msra.mxu0 0.0
    %1552 = vmatprep.subr.mxu0 0.0
    %1553 = vmatpush1.msra.mxu0 0.0
    %1554 = vmatprep.subr.mxu0 0.0
    %1555 = vmatpush1.msra.mxu0 0.0
    %1556 = vmatprep.subr.mxu0 0.0
    %1557 = vmatpush1.msra.mxu0 0.0
    %1558 = vmatprep.subr.mxu0 0.0
    %1559 = vmatpush1.msra.mxu0 0.0
    %1560 = vmatprep.subr.mxu0 0.0
    %1561 = vmatpush1.msra.mxu0 0.0
    %1562 = vmatprep.subr.mxu0 0.0
    %1563 = vmatpush1.msra.mxu0 0.0
    %1564 = vmatprep.subr.mxu0 0.0
    %1565 = vmatpush1.msra.mxu0 0.0
    %1566 = vmatprep.subr.mxu0 0.0
    %1567 = vmatpush1.msra.mxu0 0.0
    %1568 = vmatprep.subr.mxu0 0.0
    %1569 = vmatpush1.msra.mxu0 0.0
    %1570 = vmatprep.subr.mxu0 0.0
    %1571 = vmatpush1.msra.mxu0 0.0
    %1572 = vmatprep.subr.mxu0 0.0
    %1573 = vmatpush1.msra.mxu0 0.0
    %1574 = vmatprep.subr.mxu0 0.0
    %1575 = vmatpush1.msra.mxu0 0.0
    %1576 = vmatprep.subr.mxu0 0.0
    %1577 = vmatpush1.msra.mxu0 0.0
    %1578 = vmatprep.subr.mxu0 0.0
    %1579 = vmatpush1.msra.mxu0 0.0
    %1580 = vmatprep.subr.mxu0 0.0
    %1581 = vmatpush1.msra.mxu0 0.0
    %1582 = vmatprep.subr.mxu0 0.0
    %1583 = vmatpush1.msra.mxu0 0.0
    %1584 = vmatprep.subr.mxu0 0.0
    %1585 = vmatpush1.msra.mxu0 0.0
    %1586 = vmatprep.mubr.f32.mxu0 0.0
    %1587 = vmatmul.mubr.f32.gmra.mrb[0].mxu0 %v1520
    %v1588 = vpop.f32.mrb[0].mxu0
    %v1589 = vadd.f32 0.0, %v1588
    %v1590 = vpop.f32.mrb[0].mxu0
    %1591 = vdwg.mxu0
    %v1592 = vadd.f32 %v1256, %v1438
    %v1593 = vadd.f32 %v1257, %v1439
    %1594 = vrot.lane.b32.xlu0 %v459, 104
    %v1595 = vpop.permute.xlu0 %1594
    %1596 = vrot.lane.b32.xlu0 %v523, 104
    %v1597 = vpop.permute.xlu0 %1596
    %v1598 = vsel %vm593, %v1595, 0
    %v1600 = vsel %vm593, %v1597, 0
    %1602 = vmatprep.subr.mxu0 0.0
    %1603 = vmatpush1.xpose.msra.mxu0 %v1600
    %1604 = vmatprep.subr.mxu0 0.0
    %1605 = vmatpush1.xpose.msra.mxu0 0.0
    %1606 = vmatprep.subr.mxu0 0.0
    %1607 = vmatpush1.xpose.msra.mxu0 0.0
    %1608 = vmatprep.subr.mxu0 0.0
    %1609 = vmatpush1.xpose.msra.mxu0 0.0
    %1610 = vmatprep.subr.mxu0 0.0
    %1611 = vmatpush1.xpose.msra.mxu0 0.0
    %1612 = vmatprep.subr.mxu0 0.0
    %1613 = vmatpush1.xpose.msra.mxu0 0.0
    %1614 = vmatprep.subr.mxu0 0.0
    %1615 = vmatpush1.xpose.msra.mxu0 0.0
    %1616 = vmatprep.subr.mxu0 0.0
    %1617 = vmatpush1.xpose.msra.mxu0 0.0
    %1618 = vmatprep.subr.mxu0 0.0
    %1619 = vmatpush1.xpose.msra.mxu0 0.0
    %1620 = vmatprep.subr.mxu0 0.0
    %1621 = vmatpush1.xpose.msra.mxu0 0.0
    %1622 = vmatprep.subr.mxu0 0.0
    %1623 = vmatpush1.xpose.msra.mxu0 0.0
    %1624 = vmatprep.subr.mxu0 0.0
    %1625 = vmatpush1.xpose.msra.mxu0 0.0
    %1626 = vmatprep.subr.mxu0 0.0
    %1627 = vmatpush1.xpose.msra.mxu0 0.0
    %1628 = vmatprep.subr.mxu0 0.0
    %1629 = vmatpush1.xpose.msra.mxu0 0.0
    %1630 = vmatprep.subr.mxu0 0.0
    %1631 = vmatpush1.xpose.msra.mxu0 0.0
    %1632 = vmatprep.subr.mxu0 0.0
    %1633 = vmatpush1.xpose.msra.mxu0 0.0
    %1634 = vmatprep.subr.mxu0 0.0
    %1635 = vmatpush1.xpose.msra.mxu0 0.0
    %1636 = vmatprep.subr.mxu0 0.0
    %1637 = vmatpush1.xpose.msra.mxu0 0.0
    %1638 = vmatprep.subr.mxu0 0.0
    %1639 = vmatpush1.xpose.msra.mxu0 0.0
    %1640 = vmatprep.subr.mxu0 0.0
    %1641 = vmatpush1.xpose.msra.mxu0 0.0
    %1642 = vmatprep.subr.mxu0 0.0
    %1643 = vmatpush1.xpose.msra.mxu0 0.0
    %1644 = vmatprep.subr.mxu0 0.0
    %1645 = vmatpush1.xpose.msra.mxu0 0.0
    %1646 = vmatprep.subr.mxu0 0.0
    %1647 = vmatpush1.xpose.msra.mxu0 0.0
    %1648 = vmatprep.subr.mxu0 0.0
    %1649 = vmatpush1.xpose.msra.mxu0 0.0
    %1650 = vmatprep.subr.mxu0 0.0
    %1651 = vmatpush1.xpose.msra.mxu0 0.0
    %1652 = vmatprep.subr.mxu0 0.0
    %1653 = vmatpush1.xpose.msra.mxu0 0.0
    %1654 = vmatprep.subr.mxu0 0.0
    %1655 = vmatpush1.xpose.msra.mxu0 0.0
    %1656 = vmatprep.subr.mxu0 0.0
    %1657 = vmatpush1.xpose.msra.mxu0 0.0
    %1658 = vmatprep.subr.mxu0 0.0
    %1659 = vmatpush1.xpose.msra.mxu0 0.0
    %1660 = vmatprep.subr.mxu0 0.0
    %1661 = vmatpush1.xpose.msra.mxu0 0.0
    %1662 = vmatprep.subr.mxu0 0.0
    %1663 = vmatpush1.xpose.msra.mxu0 0.0
    %1664 = vmatprep.subr.mxu0 0.0
    %1665 = vmatpush1.xpose.msra.mxu0 0.0
    %1666 = vmatprep.mubr.f32.mxu0 0.0
    %1667 = vmatmul.mubr.f32.gmra.mrb[0].mxu0 %v1598
    %v1668 = vpop.f32.mrb[0].mxu0
    %v1669 = vadd.f32 0.0, %v1668
    %v1670 = vpop.f32.mrb[0].mxu0
    %1671 = vdwg.mxu0
    %1672 = vrot.lane.b32.xlu0 %v462, 104
    %v1673 = vpop.permute.xlu0 %1672
    %1674 = vrot.lane.b32.xlu0 %v526, 104
    %v1675 = vpop.permute.xlu0 %1674
    %v1676 = vsel %vm593, %v1673, 0
    %v1678 = vsel %vm593, %v1675, 0
    %1680 = vmatprep.subr.mxu0 0.0
    %1681 = vmatpush1.xpose.msra.mxu0 %v1678
    %1682 = vmatprep.subr.mxu0 0.0
    %1683 = vmatpush1.xpose.msra.mxu0 0.0
    %1684 = vmatprep.subr.mxu0 0.0
    %1685 = vmatpush1.xpose.msra.mxu0 0.0
    %1686 = vmatprep.subr.mxu0 0.0
    %1687 = vmatpush1.xpose.msra.mxu0 0.0
    %1688 = vmatprep.subr.mxu0 0.0
    %1689 = vmatpush1.xpose.msra.mxu0 0.0
    %1690 = vmatprep.subr.mxu0 0.0
    %1691 = vmatpush1.xpose.msra.mxu0 0.0
    %1692 = vmatprep.subr.mxu0 0.0
    %1693 = vmatpush1.xpose.msra.mxu0 0.0
    %1694 = vmatprep.subr.mxu0 0.0
    %1695 = vmatpush1.xpose.msra.mxu0 0.0
    %1696 = vmatprep.subr.mxu0 0.0
    %1697 = vmatpush1.xpose.msra.mxu0 0.0
    %1698 = vmatprep.subr.mxu0 0.0
    %1699 = vmatpush1.xpose.msra.mxu0 0.0
    %1700 = vmatprep.subr.mxu0 0.0
    %1701 = vmatpush1.xpose.msra.mxu0 0.0
    %1702 = vmatprep.subr.mxu0 0.0
    %1703 = vmatpush1.xpose.msra.mxu0 0.0
    %1704 = vmatprep.subr.mxu0 0.0
    %1705 = vmatpush1.xpose.msra.mxu0 0.0
    %1706 = vmatprep.subr.mxu0 0.0
    %1707 = vmatpush1.xpose.msra.mxu0 0.0
    %1708 = vmatprep.subr.mxu0 0.0
    %1709 = vmatpush1.xpose.msra.mxu0 0.0
    %1710 = vmatprep.subr.mxu0 0.0
    %1711 = vmatpush1.xpose.msra.mxu0 0.0
    %1712 = vmatprep.subr.mxu0 0.0
    %1713 = vmatpush1.xpose.msra.mxu0 0.0
    %1714 = vmatprep.subr.mxu0 0.0
    %1715 = vmatpush1.xpose.msra.mxu0 0.0
    %1716 = vmatprep.subr.mxu0 0.0
    %1717 = vmatpush1.xpose.msra.mxu0 0.0
    %1718 = vmatprep.subr.mxu0 0.0
    %1719 = vmatpush1.xpose.msra.mxu0 0.0
    %1720 = vmatprep.subr.mxu0 0.0
    %1721 = vmatpush1.xpose.msra.mxu0 0.0
    %1722 = vmatprep.subr.mxu0 0.0
    %1723 = vmatpush1.xpose.msra.mxu0 0.0
    %1724 = vmatprep.subr.mxu0 0.0
    %1725 = vmatpush1.xpose.msra.mxu0 0.0
    %1726 = vmatprep.subr.mxu0 0.0
    %1727 = vmatpush1.xpose.msra.mxu0 0.0
    %1728 = vmatprep.subr.mxu0 0.0
    %1729 = vmatpush1.xpose.msra.mxu0 0.0
    %1730 = vmatprep.subr.mxu0 0.0
    %1731 = vmatpush1.xpose.msra.mxu0 0.0
    %1732 = vmatprep.subr.mxu0 0.0
    %1733 = vmatpush1.xpose.msra.mxu0 0.0
    %1734 = vmatprep.subr.mxu0 0.0
    %1735 = vmatpush1.xpose.msra.mxu0 0.0
    %1736 = vmatprep.subr.mxu0 0.0
    %1737 = vmatpush1.xpose.msra.mxu0 0.0
    %1738 = vmatprep.subr.mxu0 0.0
    %1739 = vmatpush1.xpose.msra.mxu0 0.0
    %1740 = vmatprep.subr.mxu0 0.0
    %1741 = vmatpush1.xpose.msra.mxu0 0.0
    %1742 = vmatprep.subr.mxu0 0.0
    %1743 = vmatpush1.xpose.msra.mxu0 0.0
    %1744 = vmatprep.mubr.f32.mxu0 0.0
    %1745 = vmatmul.mubr.f32.gmra.mrb[0].mxu0 %v1676
    %v1746 = vpop.f32.mrb[0].mxu0
    %v1747 = vadd.f32 0.0, %v1746
    %v1748 = vpop.f32.mrb[0].mxu0
    %1749 = vdwg.mxu0
    %v1750 = vmul.f32 %v1669, 0.35355338
    %v1751 = vmul.f32 %v1747, 0.35355338
    %v1752 = vadd.f32 %v1750, %v347
    %v1753 = vadd.f32 %v1751, %v348
    %v1754 = vsel %vm593, %v1752, -inf
    %1755 = vmax.xlane.f32.xlu0 %v1754
    %v1756 = vpop.xlane.xlu0 %1755
    %v1757 = vsel %vm593, %v1753, -inf
    %1758 = vmax.xlane.f32.xlu0 %v1757
    %v1759 = vpop.xlane.xlu0 %1758
    %v1760 = vsub.f32 %v1752, %v1756
    %v1761 = vsub.f32 %v1753, %v1759
    %v1762 = vmul.f32 %v1760, 1.442695
    %v1763 = vpow.pop %v1762
    %v1764 = vmul.f32 %v1761, 1.442695
    %v1765 = vpow.pop %v1764
    %v1766 = vsel %vm593, %v1763, 0.0
    %1767 = vadd.xlane.f32.xlu0 %v1766
    %v1768 = vpop.xlane.xlu0 %1767
    %v1769 = vsel %vm593, %v1765, 0.0
    %1770 = vadd.xlane.f32.xlu0 %v1769
    %v1771 = vpop.xlane.xlu0 %1770
    %v1772 = vrcp.pop %v1768
    %v1773 = vrcp.pop %v1771
    %v1774 = vmul.f32 %v1763, %v1772
    %v1775 = vmul.f32 %v1765, %v1773
    %1776 = vrot.lane.b32.xlu0 %v587, 104
    %v1777 = vpop.permute.xlu0 %1776
    %v1780 = vsel %vm593, %v1774, 0
    %1782 = vmatprep.subr.mxu0 0.0
    %1783 = vmatpush1.msra.mxu0 %v1777
    %1784 = vmatprep.subr.mxu0 0.0
    %1785 = vmatpush1.msra.mxu0 0.0
    %1786 = vmatprep.subr.mxu0 0.0
    %1787 = vmatpush1.msra.mxu0 0.0
    %1788 = vmatprep.subr.mxu0 0.0
    %1789 = vmatpush1.msra.mxu0 0.0
    %1790 = vmatprep.subr.mxu0 0.0
    %1791 = vmatpush1.msra.mxu0 0.0
    %1792 = vmatprep.subr.mxu0 0.0
    %1793 = vmatpush1.msra.mxu0 0.0
    %1794 = vmatprep.subr.mxu0 0.0
    %1795 = vmatpush1.msra.mxu0 0.0
    %1796 = vmatprep.subr.mxu0 0.0
    %1797 = vmatpush1.msra.mxu0 0.0
    %1798 = vmatprep.subr.mxu0 0.0
    %1799 = vmatpush1.msra.mxu0 0.0
    %1800 = vmatprep.subr.mxu0 0.0
    %1801 = vmatpush1.msra.mxu0 0.0
    %1802 = vmatprep.subr.mxu0 0.0
    %1803 = vmatpush1.msra.mxu0 0.0
    %1804 = vmatprep.subr.mxu0 0.0
    %1805 = vmatpush1.msra.mxu0 0.0
    %1806 = vmatprep.subr.mxu0 0.0
    %1807 = vmatpush1.msra.mxu0 0.0
    %1808 = vmatprep.subr.mxu0 0.0
    %1809 = vmatpush1.msra.mxu0 0.0
    %1810 = vmatprep.subr.mxu0 0.0
    %1811 = vmatpush1.msra.mxu0 0.0
    %1812 = vmatprep.subr.mxu0 0.0
    %1813 = vmatpush1.msra.mxu0 0.0
    %1814 = vmatprep.subr.mxu0 0.0
    %1815 = vmatpush1.msra.mxu0 0.0
    %1816 = vmatprep.subr.mxu0 0.0
    %1817 = vmatpush1.msra.mxu0 0.0
    %1818 = vmatprep.subr.mxu0 0.0
    %1819 = vmatpush1.msra.mxu0 0.0
    %1820 = vmatprep.subr.mxu0 0.0
    %1821 = vmatpush1.msra.mxu0 0.0
    %1822 = vmatprep.subr.mxu0 0.0
    %1823 = vmatpush1.msra.mxu0 0.0
    %1824 = vmatprep.subr.mxu0 0.0
    %1825 = vmatpush1.msra.mxu0 0.0
    %1826 = vmatprep.subr.mxu0 0.0
    %1827 = vmatpush1.msra.mxu0 0.0
    %1828 = vmatprep.subr.mxu0 0.0
    %1829 = vmatpush1.msra.mxu0 0.0
    %1830 = vmatprep.subr.mxu0 0.0
    %1831 = vmatpush1.msra.mxu0 0.0
    %1832 = vmatprep.subr.mxu0 0.0
    %1833 = vmatpush1.msra.mxu0 0.0
    %1834 = vmatprep.subr.mxu0 0.0
    %1835 = vmatpush1.msra.mxu0 0.0
    %1836 = vmatprep.subr.mxu0 0.0
    %1837 = vmatpush1.msra.mxu0 0.0
    %1838 = vmatprep.subr.mxu0 0.0
    %1839 = vmatpush1.msra.mxu0 0.0
    %1840 = vmatprep.subr.mxu0 0.0
    %1841 = vmatpush1.msra.mxu0 0.0
    %1842 = vmatprep.subr.mxu0 0.0
    %1843 = vmatpush1.msra.mxu0 0.0
    %1844 = vmatprep.subr.mxu0 0.0
    %1845 = vmatpush1.msra.mxu0 0.0
    %1846 = vmatprep.mubr.f32.mxu0 0.0
    %1847 = vmatmul.mubr.f32.gmra.mrb[0].mxu0 %v1780
    %v1848 = vpop.f32.mrb[0].mxu0
    %v1849 = vadd.f32 0.0, %v1848
    %v1850 = vpop.f32.mrb[0].mxu0
    %1851 = vdwg.mxu0
    %1852 = vrot.lane.b32.xlu0 %v590, 104
    %v1853 = vpop.permute.xlu0 %1852
    %v1856 = vsel %vm593, %v1775, 0
    %1858 = vmatprep.subr.mxu0 0.0
    %1859 = vmatpush1.msra.mxu0 %v1853
    %1860 = vmatprep.subr.mxu0 0.0
    %1861 = vmatpush1.msra.mxu0 0.0
    %1862 = vmatprep.subr.mxu0 0.0
    %1863 = vmatpush1.msra.mxu0 0.0
    %1864 = vmatprep.subr.mxu0 0.0
    %1865 = vmatpush1.msra.mxu0 0.0
    %1866 = vmatprep.subr.mxu0 0.0
    %1867 = vmatpush1.msra.mxu0 0.0
    %1868 = vmatprep.subr.mxu0 0.0
    %1869 = vmatpush1.msra.mxu0 0.0
    %1870 = vmatprep.subr.mxu0 0.0
    %1871 = vmatpush1.msra.mxu0 0.0
    %1872 = vmatprep.subr.mxu0 0.0
    %1873 = vmatpush1.msra.mxu0 0.0
    %1874 = vmatprep.subr.mxu0 0.0
    %1875 = vmatpush1.msra.mxu0 0.0
    %1876 = vmatprep.subr.mxu0 0.0
    %1877 = vmatpush1.msra.mxu0 0.0
    %1878 = vmatprep.subr.mxu0 0.0
    %1879 = vmatpush1.msra.mxu0 0.0
    %1880 = vmatprep.subr.mxu0 0.0
    %1881 = vmatpush1.msra.mxu0 0.0
    %1882 = vmatprep.subr.mxu0 0.0
    %1883 = vmatpush1.msra.mxu0 0.0
    %1884 = vmatprep.subr.mxu0 0.0
    %1885 = vmatpush1.msra.mxu0 0.0
    %1886 = vmatprep.subr.mxu0 0.0
    %1887 = vmatpush1.msra.mxu0 0.0
    %1888 = vmatprep.subr.mxu0 0.0
    %1889 = vmatpush1.msra.mxu0 0.0
    %1890 = vmatprep.subr.mxu0 0.0
    %1891 = vmatpush1.msra.mxu0 0.0
    %1892 = vmatprep.subr.mxu0 0.0
    %1893 = vmatpush1.msra.mxu0 0.0
    %1894 = vmatprep.subr.mxu0 0.0
    %1895 = vmatpush1.msra.mxu0 0.0
    %1896 = vmatprep.subr.mxu0 0.0
    %1897 = vmatpush1.msra.mxu0 0.0
    %1898 = vmatprep.subr.mxu0 0.0
    %1899 = vmatpush1.msra.mxu0 0.0
    %1900 = vmatprep.subr.mxu0 0.0
    %1901 = vmatpush1.msra.mxu0 0.0
    %1902 = vmatprep.subr.mxu0 0.0
    %1903 = vmatpush1.msra.mxu0 0.0
    %1904 = vmatprep.subr.mxu0 0.0
    %1905 = vmatpush1.msra.mxu0 0.0
    %1906 = vmatprep.subr.mxu0 0.0
    %1907 = vmatpush1.msra.mxu0 0.0
    %1908 = vmatprep.subr.mxu0 0.0
    %1909 = vmatpush1.msra.mxu0 0.0
    %1910 = vmatprep.subr.mxu0 0.0
    %1911 = vmatpush1.msra.mxu0 0.0
    %1912 = vmatprep.subr.mxu0 0.0
    %1913 = vmatpush1.msra.mxu0 0.0
    %1914 = vmatprep.subr.mxu0 0.0
    %1915 = vmatpush1.msra.mxu0 0.0
    %1916 = vmatprep.subr.mxu0 0.0
    %1917 = vmatpush1.msra.mxu0 0.0
    %1918 = vmatprep.subr.mxu0 0.0
    %1919 = vmatpush1.msra.mxu0 0.0
    %1920 = vmatprep.subr.mxu0 0.0
    %1921 = vmatpush1.msra.mxu0 0.0
    %1922 = vmatprep.mubr.f32.mxu0 0.0
    %1923 = vmatmul.mubr.f32.gmra.mrb[0].mxu0 %v1856
    %v1924 = vpop.f32.mrb[0].mxu0
    %v1925 = vadd.f32 0.0, %v1924
    %v1926 = vpop.f32.mrb[0].mxu0
    %1927 = vdwg.mxu0
    %v1928 = vadd.f32 %v1592, %v1774
    %v1929 = vadd.f32 %v1593, %v1775
    %1932 = vrot.lane.b32.xlu0 %v1176, 8
    %v1933 = vpop.permute.xlu0 %1932
    %1934 = vrot.lane.b32.xlu0 %v1253, 8
    %v1935 = vpop.permute.xlu0 %1934
    %1940 = vrot.lane.b32.xlu0 %v1513, 16
    %v1941 = vpop.permute.xlu0 %1940
    %1942 = vrot.lane.b32.xlu0 %v1589, 16
    %v1943 = vpop.permute.xlu0 %1942
    %1948 = vrot.lane.b32.xlu0 %v1849, 24
    %v1949 = vpop.permute.xlu0 %1948
    %1950 = vrot.lane.b32.xlu0 %v1925, 24
    %v1951 = vpop.permute.xlu0 %1950
    %v1954 = vsel %vm593, %v842, %v1933
    %v1955 = vsel %vm593, %v915, %v1935
    %vm1956 = vcmask 130048
    %v1957 = vsel %vm1956, %v1954, %v1941
    %v1958 = vsel %vm1956, %v1955, %v1943
    %vm1959 = vcmask 195584
    %v1960 = vsel %vm1959, %v1957, %v1949
    %v1961 = vsel %vm1959, %v1958, %v1951
    %v1962 = vmul.f32 %v1928, 0.25
    %v1963 = vmul.f32 %v1929, 0.25
    %v1964 = vpack.c.bf16 %v1961, %v1960
    %v1965 = vld [vmem:[%s25] sm:$0xf]
    %v1966 = vld [vmem:[%s25 + $0x4] sm:$0xf]
    %v1967 = vld [vmem:[%s25 + $0x8] sm:$0xf]
    %v1968 = vld [vmem:[%s25 + $0xc] sm:$0xf]
    %v1969 = vld [vmem:[#allocation19] sm:$0x1]
    %v1971 = vlaneseq
    %v1972 = vshrl.u32 %v1971, 7
    %v1973 = vsub.s32 0, %v1972
    %v1974 = vrot.slane %v1969, %v1973
    %v1980 = vunpack.c.l.b16 %v1965
    %v1981 = vunpack.c.l.b16 %v1966
    %v1982 = vunpack.c.l.b16 %v1967
    %v1983 = vunpack.c.l.b16 %v1968
    %v1984 = vpack.c.b16 %v1981, %v1980
    %v1985 = vpack.c.b16 %v1983, %v1982
    %v1989 = vsel %vm353, %v1964, 0
    %1991 = vmatprep.subr.bf16.mxu0 0
    %1992 = vmatpush1.bf16.msra.mxu0 %v1984
    %1993 = vmatprep.subr.bf16.mxu0 0
    %1994 = vmatpush1.bf16.msra.mxu0 %v1985
    %1995 = vmatprep.subr.bf16.mxu0 0
    %1996 = vmatpush1.bf16.msra.mxu0 0
    %1997 = vmatprep.subr.bf16.mxu0 0
    %1998 = vmatpush1.bf16.msra.mxu0 0
    %1999 = vmatprep.subr.bf16.mxu0 0
    %2000 = vmatpush1.bf16.msra.mxu0 0
    %2001 = vmatprep.subr.bf16.mxu0 0
    %2002 = vmatpush1.bf16.msra.mxu0 0
    %2003 = vmatprep.subr.bf16.mxu0 0
    %2004 = vmatpush1.bf16.msra.mxu0 0
    %2005 = vmatprep.subr.bf16.mxu0 0
    %2006 = vmatpush1.bf16.msra.mxu0 0
    %2007 = vmatprep.subr.bf16.mxu0 0
    %2008 = vmatpush1.bf16.msra.mxu0 0
    %2009 = vmatprep.subr.bf16.mxu0 0
    %2010 = vmatpush1.bf16.msra.mxu0 0
    %2011 = vmatprep.subr.bf16.mxu0 0
    %2012 = vmatpush1.bf16.msra.mxu0 0
    %2013 = vmatprep.subr.bf16.mxu0 0
    %2014 = vmatpush1.bf16.msra.mxu0 0
    %2015 = vmatprep.subr.bf16.mxu0 0
    %2016 = vmatpush1.bf16.msra.mxu0 0
    %2017 = vmatprep.subr.bf16.mxu0 0
    %2018 = vmatpush1.bf16.msra.mxu0 0
    %2019 = vmatprep.subr.bf16.mxu0 0
    %2020 = vmatpush1.bf16.msra.mxu0 0
    %2021 = vmatprep.subr.bf16.mxu0 0
    %2022 = vmatpush1.bf16.msra.mxu0 0
    %2023 = vmatprep.mubr.bf16.mxu0 0
    %2024 = vmatmul.mubr.bf16.gmra.mrb[0].mxu0 %v1989
    %v2025 = vpop.f32.mrb[0].mxu0
    %v2026 = vadd.f32 %v1974, %v2025
    %v2027 = vpop.f32.mrb[0].mxu0
    %v2028 = vpop.f32.mrb[0].mxu0
    %v2029 = vadd.f32 %v1974, %v2028
    %v2030 = vpop.f32.mrb[0].mxu0
    %2031 = vdwg.mxu0
    %v2032 = vadd.f32 %v321, %v2026
    %v2033 = vadd.f32 %v322, %v2029
    %v2034 = vld [vmem:[#allocation20] sm:$0x1]
    %v2035 = vld [vmem:[#allocation22] sm:$0x1]
    %v2036 = vsel %vm353, %v2032, 0.0
    %2037 = vadd.xlane.f32.xlu0 %v2036
    %v2038 = vpop.xlane.xlu0 %2037
    %v2039 = vsel %vm353, %v2033, 0.0
    %2040 = vadd.xlane.f32.xlu0 %v2039
    %v2041 = vpop.xlane.xlu0 %2040
    %v2042 = vmul.f32 %v2038, %v360
    %v2043 = vmul.f32 %v2041, %v360
    %v2044 = vsub.f32 %v2032, %v2042
    %v2045 = vsub.f32 %v2033, %v2043
    %v2046 = vmul.f32 %v2044, %v2044
    %v2047 = vmul.f32 %v2045, %v2045
    %v2048 = vsel %vm353, %v2046, 0.0
    %2049 = vadd.xlane.f32.xlu0 %v2048
    %v2050 = vpop.xlane.xlu0 %2049
    %v2051 = vsel %vm353, %v2047, 0.0
    %2052 = vadd.xlane.f32.xlu0 %v2051
    %v2053 = vpop.xlane.xlu0 %2052
    %v2054 = vmul.f32 %v2050, %v360
    %v2055 = vmul.f32 %v2053, %v360
    %v2056 = vadd.f32 %v2054, 1e-05
    %v2057 = vadd.f32 %v2055, 1e-05
    %v2058 = vrsqrt.pop %v2056
    %v2059 = vrsqrt.pop %v2057
    %v2060 = vmul.f32 %v2044, %v2058
    %v2061 = vmul.f32 %v2045, %v2059
    %v2063 = vlaneseq
    %v2064 = vshrl.u32 %v2063, 7
    %v2065 = vsub.s32 0, %v2064
    %v2066 = vrot.slane %v2034, %v2065
    %v2068 = vmul.f32 %v2060, %v2066
    %v2069 = vmul.f32 %v2061, %v2066
    %v2071 = vlaneseq
    %v2072 = vshrl.u32 %v2071, 7
    %v2073 = vsub.s32 0, %v2072
    %v2074 = vrot.slane %v2035, %v2073
    %v2076 = vadd.f32 %v2068, %v2074
    %v2077 = vadd.f32 %v2069, %v2074
    %v2078 = vpack.c.bf16 %v2077, %v2076
    %v2079 = vpack.c.bf16 %v324, %v323
    %v2080 = vpack.c.bf16 %v326, %v325
    %v2081 = vld [vmem:[%s33] sm:$0xf]
    %v2082 = vld [vmem:[%s33 + $0x4] sm:$0xf]
    %v2083 = vld [vmem:[%s33 + $0x8] sm:$0xf]
    %v2084 = vld [vmem:[%s33 + $0xc] sm:$0xf]
    %v2085 = vld [vmem:[%s39] sm:$0x1]
    %v2087 = vlaneseq
    %v2088 = vshrl.u32 %v2087, 7
    %v2089 = vsub.s32 0, %v2088
    %v2090 = vrot.slane %v2085, %v2089
    %v2096 = vunpack.c.l.b16 %v2081
    %v2097 = vunpack.c.l.b16 %v2082
    %v2098 = vunpack.c.l.b16 %v2083
    %v2099 = vunpack.c.l.b16 %v2084
    %v2100 = vpack.c.b16 %v2097, %v2096
    %v2101 = vpack.c.b16 %v2099, %v2098
    %v2105 = vsel %vm353, %v2078, 0
    %2107 = vmatprep.subr.bf16.mxu0 0
    %2108 = vmatpush1.bf16.msra.mxu0 %v2100
    %2109 = vmatprep.subr.bf16.mxu0 0
    %2110 = vmatpush1.bf16.msra.mxu0 %v2101
    %2111 = vmatprep.subr.bf16.mxu0 0
    %2112 = vmatpush1.bf16.msra.mxu0 0
    %2113 = vmatprep.subr.bf16.mxu0 0
    %2114 = vmatpush1.bf16.msra.mxu0 0
    %2115 = vmatprep.subr.bf16.mxu0 0
    %2116 = vmatpush1.bf16.msra.mxu0 0
    %2117 = vmatprep.subr.bf16.mxu0 0
    %2118 = vmatpush1.bf16.msra.mxu0 0
    %2119 = vmatprep.subr.bf16.mxu0 0
    %2120 = vmatpush1.bf16.msra.mxu0 0
    %2121 = vmatprep.subr.bf16.mxu0 0
    %2122 = vmatpush1.bf16.msra.mxu0 0
    %2123 = vmatprep.subr.bf16.mxu0 0
    %2124 = vmatpush1.bf16.msra.mxu0 0
    %2125 = vmatprep.subr.bf16.mxu0 0
    %2126 = vmatpush1.bf16.msra.mxu0 0
    %2127 = vmatprep.subr.bf16.mxu0 0
    %2128 = vmatpush1.bf16.msra.mxu0 0
    %2129 = vmatprep.subr.bf16.mxu0 0
    %2130 = vmatpush1.bf16.msra.mxu0 0
    %2131 = vmatprep.subr.bf16.mxu0 0
    %2132 = vmatpush1.bf16.msra.mxu0 0
    %2133 = vmatprep.subr.bf16.mxu0 0
    %2134 = vmatpush1.bf16.msra.mxu0 0
    %2135 = vmatprep.subr.bf16.mxu0 0
    %2136 = vmatpush1.bf16.msra.mxu0 0
    %2137 = vmatprep.subr.bf16.mxu0 0
    %2138 = vmatpush1.bf16.msra.mxu0 0
    %2139 = vmatprep.mubr.bf16.mxu0 0
    %2140 = vmatmul.mubr.bf16.gmra.mrb[0].mxu0 %v2105
    %v2141 = vpop.f32.mrb[0].mxu0
    %v2142 = vadd.f32 %v2090, %v2141
    %v2143 = vpop.f32.mrb[0].mxu0
    %v2144 = vpop.f32.mrb[0].mxu0
    %v2145 = vadd.f32 %v2090, %v2144
    %v2146 = vpop.f32.mrb[0].mxu0
    %2147 = vdwg.mxu0
    %v2148 = vld [vmem:[%s35] sm:$0xf]
    %v2149 = vld [vmem:[%s35 + $0x4] sm:$0xf]
    %v2150 = vld [vmem:[%s35 + $0x8] sm:$0xf]
    %v2151 = vld [vmem:[%s35 + $0xc] sm:$0xf]
    %v2152 = vld [vmem:[%s41] sm:$0x1]
    %v2154 = vlaneseq
    %v2155 = vshrl.u32 %v2154, 7
    %v2156 = vsub.s32 0, %v2155
    %v2157 = vrot.slane %v2152, %v2156
    %v2163 = vunpack.c.l.b16 %v2148
    %v2164 = vunpack.c.l.b16 %v2149
    %v2165 = vunpack.c.l.b16 %v2150
    %v2166 = vunpack.c.l.b16 %v2151
    %v2167 = vpack.c.b16 %v2164, %v2163
    %v2168 = vpack.c.b16 %v2166, %v2165
    %v2172 = vsel %vm353, %v2079, 0
    %v2175 = vsel %vm353, %v2080, 0
    %2177 = vmatprep.subr.bf16.mxu0 0
    %2178 = vmatpush1.bf16.msra.mxu0 %v2167
    %2179 = vmatprep.subr.bf16.mxu0 0
    %2180 = vmatpush1.bf16.msra.mxu0 %v2168
    %2181 = vmatprep.subr.bf16.mxu0 0
    %2182 = vmatpush1.bf16.msra.mxu0 0
    %2183 = vmatprep.subr.bf16.mxu0 0
    %2184 = vmatpush1.bf16.msra.mxu0 0
    %2185 = vmatprep.subr.bf16.mxu0 0
    %2186 = vmatpush1.bf16.msra.mxu0 0
    %2187 = vmatprep.subr.bf16.mxu0 0
    %2188 = vmatpush1.bf16.msra.mxu0 0
    %2189 = vmatprep.subr.bf16.mxu0 0
    %2190 = vmatpush1.bf16.msra.mxu0 0
    %2191 = vmatprep.subr.bf16.mxu0 0
    %2192 = vmatpush1.bf16.msra.mxu0 0
    %2193 = vmatprep.subr.bf16.mxu0 0
    %2194 = vmatpush1.bf16.msra.mxu0 0
    %2195 = vmatprep.subr.bf16.mxu0 0
    %2196 = vmatpush1.bf16.msra.mxu0 0
    %2197 = vmatprep.subr.bf16.mxu0 0
    %2198 = vmatpush1.bf16.msra.mxu0 0
    %2199 = vmatprep.subr.bf16.mxu0 0
    %2200 = vmatpush1.bf16.msra.mxu0 0
    %2201 = vmatprep.subr.bf16.mxu0 0
    %2202 = vmatpush1.bf16.msra.mxu0 0
    %2203 = vmatprep.subr.bf16.mxu0 0
    %2204 = vmatpush1.bf16.msra.mxu0 0
    %2205 = vmatprep.subr.bf16.mxu0 0
    %2206 = vmatpush1.bf16.msra.mxu0 0
    %2207 = vmatprep.subr.bf16.mxu0 0
    %2208 = vmatpush1.bf16.msra.mxu0 0
    %2209 = vmatprep.mubr.bf16.mxu0 0
    %2210 = vmatmul.mubr.bf16.gmra.mrb[0].mxu0 %v2172
    %v2211 = vpop.f32.mrb[0].mxu0
    %v2212 = vadd.f32 %v2157, %v2211
    %v2213 = vpop.f32.mrb[0].mxu0
    %v2214 = vpop.f32.mrb[0].mxu0
    %v2215 = vadd.f32 %v2157, %v2214
    %v2216 = vpop.f32.mrb[0].mxu0
    %2217 = vmatprep.mubr.bf16.mxu0 0
    %2218 = vmatmul.mubr.bf16.gmra.mrb[0].mxu0 %v2175
    %v2219 = vpop.f32.mrb[0].mxu0
    %v2220 = vadd.f32 %v2157, %v2219
    %v2221 = vpop.f32.mrb[0].mxu0
    %v2222 = vpop.f32.mrb[0].mxu0
    %v2223 = vadd.f32 %v2157, %v2222
    %v2224 = vpop.f32.mrb[0].mxu0
    %2225 = vdwg.mxu0
    %v2226 = vld [vmem:[#allocation23] sm:$0xf]
    %v2227 = vld [vmem:[#allocation23 + $0x4] sm:$0xf]
    %v2228 = vld [vmem:[#allocation23 + $0x8] sm:$0xf]
    %v2229 = vld [vmem:[#allocation23 + $0xc] sm:$0xf]
    %v2230 = vld [vmem:[%s43] sm:$0x1]
    %v2232 = vlaneseq
    %v2233 = vshrl.u32 %v2232, 7
    %v2234 = vsub.s32 0, %v2233
    %v2235 = vrot.slane %v2230, %v2234
    %v2241 = vunpack.c.l.b16 %v2226
    %v2242 = vunpack.c.l.b16 %v2227
    %v2243 = vunpack.c.l.b16 %v2228
    %v2244 = vunpack.c.l.b16 %v2229
    %v2245 = vpack.c.b16 %v2242, %v2241
    %v2246 = vpack.c.b16 %v2244, %v2243
    %2249 = vmatprep.subr.bf16.mxu0 0
    %2250 = vmatpush1.bf16.msra.mxu0 %v2245
    %2251 = vmatprep.subr.bf16.mxu0 0
    %2252 = vmatpush1.bf16.msra.mxu0 %v2246
    %2253 = vmatprep.subr.bf16.mxu0 0
    %2254 = vmatpush1.bf16.msra.mxu0 0
    %2255 = vmatprep.subr.bf16.mxu0 0
    %2256 = vmatpush1.bf16.msra.mxu0 0
    %2257 = vmatprep.subr.bf16.mxu0 0
    %2258 = vmatpush1.bf16.msra.mxu0 0
    %2259 = vmatprep.subr.bf16.mxu0 0
    %2260 = vmatpush1.bf16.msra.mxu0 0
    %2261 = vmatprep.subr.bf16.mxu0 0
    %2262 = vmatpush1.bf16.msra.mxu0 0
    %2263 = vmatprep.subr.bf16.mxu0 0
    %2264 = vmatpush1.bf16.msra.mxu0 0
    %2265 = vmatprep.subr.bf16.mxu0 0
    %2266 = vmatpush1.bf16.msra.mxu0 0
    %2267 = vmatprep.subr.bf16.mxu0 0
    %2268 = vmatpush1.bf16.msra.mxu0 0
    %2269 = vmatprep.subr.bf16.mxu0 0
    %2270 = vmatpush1.bf16.msra.mxu0 0
    %2271 = vmatprep.subr.bf16.mxu0 0
    %2272 = vmatpush1.bf16.msra.mxu0 0
    %2273 = vmatprep.subr.bf16.mxu0 0
    %2274 = vmatpush1.bf16.msra.mxu0 0
    %2275 = vmatprep.subr.bf16.mxu0 0
    %2276 = vmatpush1.bf16.msra.mxu0 0
    %2277 = vmatprep.subr.bf16.mxu0 0
    %2278 = vmatpush1.bf16.msra.mxu0 0
    %2279 = vmatprep.subr.bf16.mxu0 0
    %2280 = vmatpush1.bf16.msra.mxu0 0
    %2281 = vmatprep.mubr.bf16.mxu0 0
    %2282 = vmatmul.mubr.bf16.gmra.mrb[0].mxu0 %v2172
    %v2283 = vpop.f32.mrb[0].mxu0
    %v2284 = vadd.f32 %v2235, %v2283
    %v2285 = vpop.f32.mrb[0].mxu0
    %v2286 = vpop.f32.mrb[0].mxu0
    %v2287 = vadd.f32 %v2235, %v2286
    %v2288 = vpop.f32.mrb[0].mxu0
    %2289 = vmatprep.mubr.bf16.mxu0 0
    %2290 = vmatmul.mubr.bf16.gmra.mrb[0].mxu0 %v2175
    %v2291 = vpop.f32.mrb[0].mxu0
    %v2292 = vadd.f32 %v2235, %v2291
    %v2293 = vpop.f32.mrb[0].mxu0
    %v2294 = vpop.f32.mrb[0].mxu0
    %v2295 = vadd.f32 %v2235, %v2294
    %v2296 = vpop.f32.mrb[0].mxu0
    %2297 = vdwg.mxu0
    %v2299 = vsel %vm593, %v2142, 0
    %v2302 = vsel %vm593, %v2212, 0
    %v2305 = vsel %vm593, %v2215, 0
    %2307 = vmatprep.subr.mxu0 0.0
    %2308 = vmatpush1.xpose.msra.mxu0 %v2302
    %2309 = vmatprep.subr.mxu0 0.0
    %2310 = vmatpush1.xpose.msra.mxu0 %v2305
    %2311 = vmatprep.subr.mxu0 0.0
    %2312 = vmatpush1.xpose.msra.mxu0 0.0
    %2313 = vmatprep.subr.mxu0 0.0
    %2314 = vmatpush1.xpose.msra.mxu0 0.0
    %2315 = vmatprep.subr.mxu0 0.0
    %2316 = vmatpush1.xpose.msra.mxu0 0.0
    %2317 = vmatprep.subr.mxu0 0.0
    %2318 = vmatpush1.xpose.msra.mxu0 0.0
    %2319 = vmatprep.subr.mxu0 0.0
    %2320 = vmatpush1.xpose.msra.mxu0 0.0
    %2321 = vmatprep.subr.mxu0 0.0
    %2322 = vmatpush1.xpose.msra.mxu0 0.0
    %2323 = vmatprep.subr.mxu0 0.0
    %2324 = vmatpush1.xpose.msra.mxu0 0.0
    %2325 = vmatprep.subr.mxu0 0.0
    %2326 = vmatpush1.xpose.msra.mxu0 0.0
    %2327 = vmatprep.subr.mxu0 0.0
    %2328 = vmatpush1.xpose.msra.mxu0 0.0
    %2329 = vmatprep.subr.mxu0 0.0
    %2330 = vmatpush1.xpose.msra.mxu0 0.0
    %2331 = vmatprep.subr.mxu0 0.0
    %2332 = vmatpush1.xpose.msra.mxu0 0.0
    %2333 = vmatprep.subr.mxu0 0.0
    %2334 = vmatpush1.xpose.msra.mxu0 0.0
    %2335 = vmatprep.subr.mxu0 0.0
    %2336 = vmatpush1.xpose.msra.mxu0 0.0
    %2337 = vmatprep.subr.mxu0 0.0
    %2338 = vmatpush1.xpose.msra.mxu0 0.0
    %2339 = vmatprep.subr.mxu0 0.0
    %2340 = vmatpush1.xpose.msra.mxu0 0.0
    %2341 = vmatprep.subr.mxu0 0.0
    %2342 = vmatpush1.xpose.msra.mxu0 0.0
    %2343 = vmatprep.subr.mxu0 0.0
    %2344 = vmatpush1.xpose.msra.mxu0 0.0
    %2345 = vmatprep.subr.mxu0 0.0
    %2346 = vmatpush1.xpose.msra.mxu0 0.0
    %2347 = vmatprep.subr.mxu0 0.0
    %2348 = vmatpush1.xpose.msra.mxu0 0.0
    %2349 = vmatprep.subr.mxu0 0.0
    %2350 = vmatpush1.xpose.msra.mxu0 0.0
    %2351 = vmatprep.subr.mxu0 0.0
    %2352 = vmatpush1.xpose.msra.mxu0 0.0
    %2353 = vmatprep.subr.mxu0 0.0
    %2354 = vmatpush1.xpose.msra.mxu0 0.0
    %2355 = vmatprep.subr.mxu0 0.0
    %2356 = vmatpush1.xpose.msra.mxu0 0.0
    %2357 = vmatprep.subr.mxu0 0.0
    %2358 = vmatpush1.xpose.msra.mxu0 0.0
    %2359 = vmatprep.subr.mxu0 0.0
    %2360 = vmatpush1.xpose.msra.mxu0 0.0
    %2361 = vmatprep.subr.mxu0 0.0
    %2362 = vmatpush1.xpose.msra.mxu0 0.0
    %2363 = vmatprep.subr.mxu0 0.0
    %2364 = vmatpush1.xpose.msra.mxu0 0.0
    %2365 = vmatprep.subr.mxu0 0.0
    %2366 = vmatpush1.xpose.msra.mxu0 0.0
    %2367 = vmatprep.subr.mxu0 0.0
    %2368 = vmatpush1.xpose.msra.mxu0 0.0
    %2369 = vmatprep.subr.mxu0 0.0
    %2370 = vmatpush1.xpose.msra.mxu0 0.0
    %2371 = vmatprep.mubr.f32.mxu0 0.0
    %2372 = vmatmul.mubr.f32.gmra.mrb[0].mxu0 %v2299
    %v2373 = vpop.f32.mrb[0].mxu0
    %v2374 = vadd.f32 0.0, %v2373
    %v2375 = vpop.f32.mrb[0].mxu0
    %2376 = vdwg.mxu0
    %v2378 = vsel %vm593, %v2145, 0
    %v2381 = vsel %vm593, %v2220, 0
    %v2384 = vsel %vm593, %v2223, 0
    %2386 = vmatprep.subr.mxu0 0.0
    %2387 = vmatpush1.xpose.msra.mxu0 %v2381
    %2388 = vmatprep.subr.mxu0 0.0
    %2389 = vmatpush1.xpose.msra.mxu0 %v2384
    %2390 = vmatprep.subr.mxu0 0.0
    %2391 = vmatpush1.xpose.msra.mxu0 0.0
    %2392 = vmatprep.subr.mxu0 0.0
    %2393 = vmatpush1.xpose.msra.mxu0 0.0
    %2394 = vmatprep.subr.mxu0 0.0
    %2395 = vmatpush1.xpose.msra.mxu0 0.0
    %2396 = vmatprep.subr.mxu0 0.0
    %2397 = vmatpush1.xpose.msra.mxu0 0.0
    %2398 = vmatprep.subr.mxu0 0.0
    %2399 = vmatpush1.xpose.msra.mxu0 0.0
    %2400 = vmatprep.subr.mxu0 0.0
    %2401 = vmatpush1.xpose.msra.mxu0 0.0
    %2402 = vmatprep.subr.mxu0 0.0
    %2403 = vmatpush1.xpose.msra.mxu0 0.0
    %2404 = vmatprep.subr.mxu0 0.0
    %2405 = vmatpush1.xpose.msra.mxu0 0.0
    %2406 = vmatprep.subr.mxu0 0.0
    %2407 = vmatpush1.xpose.msra.mxu0 0.0
    %2408 = vmatprep.subr.mxu0 0.0
    %2409 = vmatpush1.xpose.msra.mxu0 0.0
    %2410 = vmatprep.subr.mxu0 0.0
    %2411 = vmatpush1.xpose.msra.mxu0 0.0
    %2412 = vmatprep.subr.mxu0 0.0
    %2413 = vmatpush1.xpose.msra.mxu0 0.0
    %2414 = vmatprep.subr.mxu0 0.0
    %2415 = vmatpush1.xpose.msra.mxu0 0.0
    %2416 = vmatprep.subr.mxu0 0.0
    %2417 = vmatpush1.xpose.msra.mxu0 0.0
    %2418 = vmatprep.subr.mxu0 0.0
    %2419 = vmatpush1.xpose.msra.mxu0 0.0
    %2420 = vmatprep.subr.mxu0 0.0
    %2421 = vmatpush1.xpose.msra.mxu0 0.0
    %2422 = vmatprep.subr.mxu0 0.0
    %2423 = vmatpush1.xpose.msra.mxu0 0.0
    %2424 = vmatprep.subr.mxu0 0.0
    %2425 = vmatpush1.xpose.msra.mxu0 0.0
    %2426 = vmatprep.subr.mxu0 0.0
    %2427 = vmatpush1.xpose.msra.mxu0 0.0
    %2428 = vmatprep.subr.mxu0 0.0
    %2429 = vmatpush1.xpose.msra.mxu0 0.0
    %2430 = vmatprep.subr.mxu0 0.0
    %2431 = vmatpush1.xpose.msra.mxu0 0.0
    %2432 = vmatprep.subr.mxu0 0.0
    %2433 = vmatpush1.xpose.msra.mxu0 0.0
    %2434 = vmatprep.subr.mxu0 0.0
    %2435 = vmatpush1.xpose.msra.mxu0 0.0
    %2436 = vmatprep.subr.mxu0 0.0
    %2437 = vmatpush1.xpose.msra.mxu0 0.0
    %2438 = vmatprep.subr.mxu0 0.0
    %2439 = vmatpush1.xpose.msra.mxu0 0.0
    %2440 = vmatprep.subr.mxu0 0.0
    %2441 = vmatpush1.xpose.msra.mxu0 0.0
    %2442 = vmatprep.subr.mxu0 0.0
    %2443 = vmatpush1.xpose.msra.mxu0 0.0
    %2444 = vmatprep.subr.mxu0 0.0
    %2445 = vmatpush1.xpose.msra.mxu0 0.0
    %2446 = vmatprep.subr.mxu0 0.0
    %2447 = vmatpush1.xpose.msra.mxu0 0.0
    %2448 = vmatprep.subr.mxu0 0.0
    %2449 = vmatpush1.xpose.msra.mxu0 0.0
    %2450 = vmatprep.mubr.f32.mxu0 0.0
    %2451 = vmatmul.mubr.f32.gmra.mrb[0].mxu0 %v2378
    %v2452 = vpop.f32.mrb[0].mxu0
    %v2453 = vadd.f32 0.0, %v2452
    %v2454 = vpop.f32.mrb[0].mxu0
    %2455 = vdwg.mxu0
    %v2456 = vmul.f32 %v2374, 0.35355338
    %v2457 = vmul.f32 %v2453, 0.35355338
    %v2460 = vlaneseq
    %v2461 = vshrl.u32 %v2460, 7
    %v2462 = vsub.s32 0, %v2461
    %v2463 = vrot.slane %v349, %v2462
    %v2464 = vlaneseq
    %v2465 = vshrl.u32 %v2464, 7
    %v2466 = vsub.s32 0, %v2465
    %v2467 = vrot.slane %v350, %v2466
    %v2470 = vadd.f32 %v2456, %v2463
    %v2471 = vadd.f32 %v2457, %v2467
    %v2472 = vsel %vm1956, %v2470, -inf
    %2473 = vmax.xlane.f32.xlu0 %v2472
    %v2474 = vpop.xlane.xlu0 %2473
    %v2475 = vsel %vm1956, %v2471, -inf
    %2476 = vmax.xlane.f32.xlu0 %v2475
    %v2477 = vpop.xlane.xlu0 %2476
    %v2478 = vsub.f32 %v2470, %v2474
    %v2479 = vsub.f32 %v2471, %v2477
    %v2480 = vmul.f32 %v2478, 1.442695
    %v2481 = vpow.pop %v2480
    %v2482 = vmul.f32 %v2479, 1.442695
    %v2483 = vpow.pop %v2482
    %v2484 = vsel %vm1956, %v2481, 0.0
    %2485 = vadd.xlane.f32.xlu0 %v2484
    %v2486 = vpop.xlane.xlu0 %2485
    %v2487 = vsel %vm1956, %v2483, 0.0
    %2488 = vadd.xlane.f32.xlu0 %v2487
    %v2489 = vpop.xlane.xlu0 %2488
    %v2490 = vrcp.pop %v2486
    %v2491 = vrcp.pop %v2489
    %v2492 = vmul.f32 %v2481, %v2490
    %v2493 = vmul.f32 %v2483, %v2491
    %v2495 = vsel %vm1956, %v2492, 0
    %2497 = vmatprep.subr.mxu0 0.0
    %2498 = vmatpush1.msra.mxu0 %v2284
    %2499 = vmatprep.subr.mxu0 0.0
    %2500 = vmatpush1.msra.mxu0 %v2287
    %2501 = vmatprep.subr.mxu0 0.0
    %2502 = vmatpush1.msra.mxu0 0.0
    %2503 = vmatprep.subr.mxu0 0.0
    %2504 = vmatpush1.msra.mxu0 0.0
    %2505 = vmatprep.subr.mxu0 0.0
    %2506 = vmatpush1.msra.mxu0 0.0
    %2507 = vmatprep.subr.mxu0 0.0
    %2508 = vmatpush1.msra.mxu0 0.0
    %2509 = vmatprep.subr.mxu0 0.0
    %2510 = vmatpush1.msra.mxu0 0.0
    %2511 = vmatprep.subr.mxu0 0.0
    %2512 = vmatpush1.msra.mxu0 0.0
    %2513 = vmatprep.subr.mxu0 0.0
    %2514 = vmatpush1.msra.mxu0 0.0
    %2515 = vmatprep.subr.mxu0 0.0
    %2516 = vmatpush1.msra.mxu0 0.0
    %2517 = vmatprep.subr.mxu0 0.0
    %2518 = vmatpush1.msra.mxu0 0.0
    %2519 = vmatprep.subr.mxu0 0.0
    %2520 = vmatpush1.msra.mxu0 0.0
    %2521 = vmatprep.subr.mxu0 0.0
    %2522 = vmatpush1.msra.mxu0 0.0
    %2523 = vmatprep.subr.mxu0 0.0
    %2524 = vmatpush1.msra.mxu0 0.0
    %2525 = vmatprep.subr.mxu0 0.0
    %2526 = vmatpush1.msra.mxu0 0.0
    %2527 = vmatprep.subr.mxu0 0.0
    %2528 = vmatpush1.msra.mxu0 0.0
    %2529 = vmatprep.subr.mxu0 0.0
    %2530 = vmatpush1.msra.mxu0 0.0
    %2531 = vmatprep.subr.mxu0 0.0
    %2532 = vmatpush1.msra.mxu0 0.0
    %2533 = vmatprep.subr.mxu0 0.0
    %2534 = vmatpush1.msra.mxu0 0.0
    %2535 = vmatprep.subr.mxu0 0.0
    %2536 = vmatpush1.msra.mxu0 0.0
    %2537 = vmatprep.subr.mxu0 0.0
    %2538 = vmatpush1.msra.mxu0 0.0
    %2539 = vmatprep.subr.mxu0 0.0
    %2540 = vmatpush1.msra.mxu0 0.0
    %2541 = vmatprep.subr.mxu0 0.0
    %2542 = vmatpush1.msra.mxu0 0.0
    %2543 = vmatprep.subr.mxu0 0.0
    %2544 = vmatpush1.msra.mxu0 0.0
    %2545 = vmatprep.subr.mxu0 0.0
    %2546 = vmatpush1.msra.mxu0 0.0
    %2547 = vmatprep.subr.mxu0 0.0
    %2548 = vmatpush1.msra.mxu0 0.0
    %2549 = vmatprep.subr.mxu0 0.0
    %2550 = vmatpush1.msra.mxu0 0.0
    %2551 = vmatprep.subr.mxu0 0.0
    %2552 = vmatpush1.msra.mxu0 0.0
    %2553 = vmatprep.subr.mxu0 0.0
    %2554 = vmatpush1.msra.mxu0 0.0
    %2555 = vmatprep.subr.mxu0 0.0
    %2556 = vmatpush1.msra.mxu0 0.0
    %2557 = vmatprep.subr.mxu0 0.0
    %2558 = vmatpush1.msra.mxu0 0.0
    %2559 = vmatprep.subr.mxu0 0.0
    %2560 = vmatpush1.msra.mxu0 0.0
    %2561 = vmatprep.mubr.f32.mxu0 0.0
    %2562 = vmatmul.mubr.f32.gmra.mrb[0].mxu0 %v2495
    %v2563 = vpop.f32.mrb[0].mxu0
    %v2564 = vadd.f32 0.0, %v2563
    %v2565 = vpop.f32.mrb[0].mxu0
    %2566 = vdwg.mxu0
    %v2568 = vsel %vm1956, %v2493, 0
    %2570 = vmatprep.subr.mxu0 0.0
    %2571 = vmatpush1.msra.mxu0 %v2292
    %2572 = vmatprep.subr.mxu0 0.0
    %2573 = vmatpush1.msra.mxu0 %v2295
    %2574 = vmatprep.subr.mxu0 0.0
    %2575 = vmatpush1.msra.mxu0 0.0
    %2576 = vmatprep.subr.mxu0 0.0
    %2577 = vmatpush1.msra.mxu0 0.0
    %2578 = vmatprep.subr.mxu0 0.0
    %2579 = vmatpush1.msra.mxu0 0.0
    %2580 = vmatprep.subr.mxu0 0.0
    %2581 = vmatpush1.msra.mxu0 0.0
    %2582 = vmatprep.subr.mxu0 0.0
    %2583 = vmatpush1.msra.mxu0 0.0
    %2584 = vmatprep.subr.mxu0 0.0
    %2585 = vmatpush1.msra.mxu0 0.0
    %2586 = vmatprep.subr.mxu0 0.0
    %2587 = vmatpush1.msra.mxu0 0.0
    %2588 = vmatprep.subr.mxu0 0.0
    %2589 = vmatpush1.msra.mxu0 0.0
    %2590 = vmatprep.subr.mxu0 0.0
    %2591 = vmatpush1.msra.mxu0 0.0
    %2592 = vmatprep.subr.mxu0 0.0
    %2593 = vmatpush1.msra.mxu0 0.0
    %2594 = vmatprep.subr.mxu0 0.0
    %2595 = vmatpush1.msra.mxu0 0.0
    %2596 = vmatprep.subr.mxu0 0.0
    %2597 = vmatpush1.msra.mxu0 0.0
    %2598 = vmatprep.subr.mxu0 0.0
    %2599 = vmatpush1.msra.mxu0 0.0
    %2600 = vmatprep.subr.mxu0 0.0
    %2601 = vmatpush1.msra.mxu0 0.0
    %2602 = vmatprep.subr.mxu0 0.0
    %2603 = vmatpush1.msra.mxu0 0.0
    %2604 = vmatprep.subr.mxu0 0.0
    %2605 = vmatpush1.msra.mxu0 0.0
    %2606 = vmatprep.subr.mxu0 0.0
    %2607 = vmatpush1.msra.mxu0 0.0
    %2608 = vmatprep.subr.mxu0 0.0
    %2609 = vmatpush1.msra.mxu0 0.0
    %2610 = vmatprep.subr.mxu0 0.0
    %2611 = vmatpush1.msra.mxu0 0.0
    %2612 = vmatprep.subr.mxu0 0.0
    %2613 = vmatpush1.msra.mxu0 0.0
    %2614 = vmatprep.subr.mxu0 0.0
    %2615 = vmatpush1.msra.mxu0 0.0
    %2616 = vmatprep.subr.mxu0 0.0
    %2617 = vmatpush1.msra.mxu0 0.0
    %2618 = vmatprep.subr.mxu0 0.0
    %2619 = vmatpush1.msra.mxu0 0.0
    %2620 = vmatprep.subr.mxu0 0.0
    %2621 = vmatpush1.msra.mxu0 0.0
    %2622 = vmatprep.subr.mxu0 0.0
    %2623 = vmatpush1.msra.mxu0 0.0
    %2624 = vmatprep.subr.mxu0 0.0
    %2625 = vmatpush1.msra.mxu0 0.0
    %2626 = vmatprep.subr.mxu0 0.0
    %2627 = vmatpush1.msra.mxu0 0.0
    %2628 = vmatprep.subr.mxu0 0.0
    %2629 = vmatpush1.msra.mxu0 0.0
    %2630 = vmatprep.subr.mxu0 0.0
    %2631 = vmatpush1.msra.mxu0 0.0
    %2632 = vmatprep.subr.mxu0 0.0
    %2633 = vmatpush1.msra.mxu0 0.0
    %2634 = vmatprep.mubr.f32.mxu0 0.0
    %2635 = vmatmul.mubr.f32.gmra.mrb[0].mxu0 %v2568
    %v2636 = vpop.f32.mrb[0].mxu0
    %v2637 = vadd.f32 0.0, %v2636
    %v2638 = vpop.f32.mrb[0].mxu0
    %2639 = vdwg.mxu0
    %v2640 = vadd.f32 %v2492, 0.0
    %v2641 = vadd.f32 %v2493, 0.0
    %2642 = vrot.lane.b32.xlu0 %v2142, 120
    %v2643 = vpop.permute.xlu0 %2642
    %2644 = vrot.lane.b32.xlu0 %v2212, 120
    %v2645 = vpop.permute.xlu0 %2644
    %2646 = vrot.lane.b32.xlu0 %v2215, 120
    %v2647 = vpop.permute.xlu0 %2646
    %v2648 = vsel %vm593, %v2643, 0
    %v2650 = vsel %vm593, %v2645, 0
    %v2652 = vsel %vm593, %v2647, 0
    %2654 = vmatprep.subr.mxu0 0.0
    %2655 = vmatpush1.xpose.msra.mxu0 %v2650
    %2656 = vmatprep.subr.mxu0 0.0
    %2657 = vmatpush1.xpose.msra.mxu0 %v2652
    %2658 = vmatprep.subr.mxu0 0.0
    %2659 = vmatpush1.xpose.msra.mxu0 0.0
    %2660 = vmatprep.subr.mxu0 0.0
    %2661 = vmatpush1.xpose.msra.mxu0 0.0
    %2662 = vmatprep.subr.mxu0 0.0
    %2663 = vmatpush1.xpose.msra.mxu0 0.0
    %2664 = vmatprep.subr.mxu0 0.0
    %2665 = vmatpush1.xpose.msra.mxu0 0.0
    %2666 = vmatprep.subr.mxu0 0.0
    %2667 = vmatpush1.xpose.msra.mxu0 0.0
    %2668 = vmatprep.subr.mxu0 0.0
    %2669 = vmatpush1.xpose.msra.mxu0 0.0
    %2670 = vmatprep.subr.mxu0 0.0
    %2671 = vmatpush1.xpose.msra.mxu0 0.0
    %2672 = vmatprep.subr.mxu0 0.0
    %2673 = vmatpush1.xpose.msra.mxu0 0.0
    %2674 = vmatprep.subr.mxu0 0.0
    %2675 = vmatpush1.xpose.msra.mxu0 0.0
    %2676 = vmatprep.subr.mxu0 0.0
    %2677 = vmatpush1.xpose.msra.mxu0 0.0
    %2678 = vmatprep.subr.mxu0 0.0
    %2679 = vmatpush1.xpose.msra.mxu0 0.0
    %2680 = vmatprep.subr.mxu0 0.0
    %2681 = vmatpush1.xpose.msra.mxu0 0.0
    %2682 = vmatprep.subr.mxu0 0.0
    %2683 = vmatpush1.xpose.msra.mxu0 0.0
    %2684 = vmatprep.subr.mxu0 0.0
    %2685 = vmatpush1.xpose.msra.mxu0 0.0
    %2686 = vmatprep.subr.mxu0 0.0
    %2687 = vmatpush1.xpose.msra.mxu0 0.0
    %2688 = vmatprep.subr.mxu0 0.0
    %2689 = vmatpush1.xpose.msra.mxu0 0.0
    %2690 = vmatprep.subr.mxu0 0.0
    %2691 = vmatpush1.xpose.msra.mxu0 0.0
    %2692 = vmatprep.subr.mxu0 0.0
    %2693 = vmatpush1.xpose.msra.mxu0 0.0
    %2694 = vmatprep.subr.mxu0 0.0
    %2695 = vmatpush1.xpose.msra.mxu0 0.0
    %2696 = vmatprep.subr.mxu0 0.0
    %2697 = vmatpush1.xpose.msra.mxu0 0.0
    %2698 = vmatprep.subr.mxu0 0.0
    %2699 = vmatpush1.xpose.msra.mxu0 0.0
    %2700 = vmatprep.subr.mxu0 0.0
    %2701 = vmatpush1.xpose.msra.mxu0 0.0
    %2702 = vmatprep.subr.mxu0 0.0
    %2703 = vmatpush1.xpose.msra.mxu0 0.0
    %2704 = vmatprep.subr.mxu0 0.0
    %2705 = vmatpush1.xpose.msra.mxu0 0.0
    %2706 = vmatprep.subr.mxu0 0.0
    %2707 = vmatpush1.xpose.msra.mxu0 0.0
    %2708 = vmatprep.subr.mxu0 0.0
    %2709 = vmatpush1.xpose.msra.mxu0 0.0
    %2710 = vmatprep.subr.mxu0 0.0
    %2711 = vmatpush1.xpose.msra.mxu0 0.0
    %2712 = vmatprep.subr.mxu0 0.0
    %2713 = vmatpush1.xpose.msra.mxu0 0.0
    %2714 = vmatprep.subr.mxu0 0.0
    %2715 = vmatpush1.xpose.msra.mxu0 0.0
    %2716 = vmatprep.subr.mxu0 0.0
    %2717 = vmatpush1.xpose.msra.mxu0 0.0
    %2718 = vmatprep.mubr.f32.mxu0 0.0
    %2719 = vmatmul.mubr.f32.gmra.mrb[0].mxu0 %v2648
    %v2720 = vpop.f32.mrb[0].mxu0
    %v2721 = vadd.f32 0.0, %v2720
    %v2722 = vpop.f32.mrb[0].mxu0
    %2723 = vdwg.mxu0
    %2724 = vrot.lane.b32.xlu0 %v2145, 120
    %v2725 = vpop.permute.xlu0 %2724
    %2726 = vrot.lane.b32.xlu0 %v2220, 120
    %v2727 = vpop.permute.xlu0 %2726
    %2728 = vrot.lane.b32.xlu0 %v2223, 120
    %v2729 = vpop.permute.xlu0 %2728
    %v2730 = vsel %vm593, %v2725, 0
    %v2732 = vsel %vm593, %v2727, 0
    %v2734 = vsel %vm593, %v2729, 0
    %2736 = vmatprep.subr.mxu0 0.0
    %2737 = vmatpush1.xpose.msra.mxu0 %v2732
    %2738 = vmatprep.subr.mxu0 0.0
    %2739 = vmatpush1.xpose.msra.mxu0 %v2734
    %2740 = vmatprep.subr.mxu0 0.0
    %2741 = vmatpush1.xpose.msra.mxu0 0.0
    %2742 = vmatprep.subr.mxu0 0.0
    %2743 = vmatpush1.xpose.msra.mxu0 0.0
    %2744 = vmatprep.subr.mxu0 0.0
    %2745 = vmatpush1.xpose.msra.mxu0 0.0
    %2746 = vmatprep.subr.mxu0 0.0
    %2747 = vmatpush1.xpose.msra.mxu0 0.0
    %2748 = vmatprep.subr.mxu0 0.0
    %2749 = vmatpush1.xpose.msra.mxu0 0.0
    %2750 = vmatprep.subr.mxu0 0.0
    %2751 = vmatpush1.xpose.msra.mxu0 0.0
    %2752 = vmatprep.subr.mxu0 0.0
    %2753 = vmatpush1.xpose.msra.mxu0 0.0
    %2754 = vmatprep.subr.mxu0 0.0
    %2755 = vmatpush1.xpose.msra.mxu0 0.0
    %2756 = vmatprep.subr.mxu0 0.0
    %2757 = vmatpush1.xpose.msra.mxu0 0.0
    %2758 = vmatprep.subr.mxu0 0.0
    %2759 = vmatpush1.xpose.msra.mxu0 0.0
    %2760 = vmatprep.subr.mxu0 0.0
    %2761 = vmatpush1.xpose.msra.mxu0 0.0
    %2762 = vmatprep.subr.mxu0 0.0
    %2763 = vmatpush1.xpose.msra.mxu0 0.0
    %2764 = vmatprep.subr.mxu0 0.0
    %2765 = vmatpush1.xpose.msra.mxu0 0.0
    %2766 = vmatprep.subr.mxu0 0.0
    %2767 = vmatpush1.xpose.msra.mxu0 0.0
    %2768 = vmatprep.subr.mxu0 0.0
    %2769 = vmatpush1.xpose.msra.mxu0 0.0
    %2770 = vmatprep.subr.mxu0 0.0
    %2771 = vmatpush1.xpose.msra.mxu0 0.0
    %2772 = vmatprep.subr.mxu0 0.0
    %2773 = vmatpush1.xpose.msra.mxu0 0.0
    %2774 = vmatprep.subr.mxu0 0.0
    %2775 = vmatpush1.xpose.msra.mxu0 0.0
    %2776 = vmatprep.subr.mxu0 0.0
    %2777 = vmatpush1.xpose.msra.mxu0 0.0
    %2778 = vmatprep.subr.mxu0 0.0
    %2779 = vmatpush1.xpose.msra.mxu0 0.0
    %2780 = vmatprep.subr.mxu0 0.0
    %2781 = vmatpush1.xpose.msra.mxu0 0.0
    %2782 = vmatprep.subr.mxu0 0.0
    %2783 = vmatpush1.xpose.msra.mxu0 0.0
    %2784 = vmatprep.subr.mxu0 0.0
    %2785 = vmatpush1.xpose.msra.mxu0 0.0
    %2786 = vmatprep.subr.mxu0 0.0
    %2787 = vmatpush1.xpose.msra.mxu0 0.0
    %2788 = vmatprep.subr.mxu0 0.0
    %2789 = vmatpush1.xpose.msra.mxu0 0.0
    %2790 = vmatprep.subr.mxu0 0.0
    %2791 = vmatpush1.xpose.msra.mxu0 0.0
    %2792 = vmatprep.subr.mxu0 0.0
    %2793 = vmatpush1.xpose.msra.mxu0 0.0
    %2794 = vmatprep.subr.mxu0 0.0
    %2795 = vmatpush1.xpose.msra.mxu0 0.0
    %2796 = vmatprep.subr.mxu0 0.0
    %2797 = vmatpush1.xpose.msra.mxu0 0.0
    %2798 = vmatprep.subr.mxu0 0.0
    %2799 = vmatpush1.xpose.msra.mxu0 0.0
    %2800 = vmatprep.mubr.f32.mxu0 0.0
    %2801 = vmatmul.mubr.f32.gmra.mrb[0].mxu0 %v2730
    %v2802 = vpop.f32.mrb[0].mxu0
    %v2803 = vadd.f32 0.0, %v2802
    %v2804 = vpop.f32.mrb[0].mxu0
    %2805 = vdwg.mxu0
    %v2806 = vmul.f32 %v2721, 0.35355338
    %v2807 = vmul.f32 %v2803, 0.35355338
    %v2808 = vadd.f32 %v2806, %v2463
    %v2809 = vadd.f32 %v2807, %v2467
    %v2810 = vsel %vm1956, %v2808, -inf
    %2811 = vmax.xlane.f32.xlu0 %v2810
    %v2812 = vpop.xlane.xlu0 %2811
    %v2813 = vsel %vm1956, %v2809, -inf
    %2814 = vmax.xlane.f32.xlu0 %v2813
    %v2815 = vpop.xlane.xlu0 %2814
    %v2816 = vsub.f32 %v2808, %v2812
    %v2817 = vsub.f32 %v2809, %v2815
    %v2818 = vmul.f32 %v2816, 1.442695
    %v2819 = vpow.pop %v2818
    %v2820 = vmul.f32 %v2817, 1.442695
    %v2821 = vpow.pop %v2820
    %v2822 = vsel %vm1956, %v2819, 0.0
    %2823 = vadd.xlane.f32.xlu0 %v2822
    %v2824 = vpop.xlane.xlu0 %2823
    %v2825 = vsel %vm1956, %v2821, 0.0
    %2826 = vadd.xlane.f32.xlu0 %v2825
    %v2827 = vpop.xlane.xlu0 %2826
    %v2828 = vrcp.pop %v2824
    %v2829 = vrcp.pop %v2827
    %v2830 = vmul.f32 %v2819, %v2828
    %v2831 = vmul.f32 %v2821, %v2829
    %2834 = vrot.lane.b32.xlu0 %v2284, 120
    %v2835 = vpop.permute.xlu0 %2834
    %2836 = vrot.lane.b32.xlu0 %v2287, 120
    %v2837 = vpop.permute.xlu0 %2836
    %v2841 = vsel %vm1956, %v2830, 0
    %2843 = vmatprep.subr.mxu0 0.0
    %2844 = vmatpush1.msra.mxu0 %v2835
    %2845 = vmatprep.subr.mxu0 0.0
    %2846 = vmatpush1.msra.mxu0 %v2837
    %2847 = vmatprep.subr.mxu0 0.0
    %2848 = vmatpush1.msra.mxu0 0.0
    %2849 = vmatprep.subr.mxu0 0.0
    %2850 = vmatpush1.msra.mxu0 0.0
    %2851 = vmatprep.subr.mxu0 0.0
    %2852 = vmatpush1.msra.mxu0 0.0
    %2853 = vmatprep.subr.mxu0 0.0
    %2854 = vmatpush1.msra.mxu0 0.0
    %2855 = vmatprep.subr.mxu0 0.0
    %2856 = vmatpush1.msra.mxu0 0.0
    %2857 = vmatprep.subr.mxu0 0.0
    %2858 = vmatpush1.msra.mxu0 0.0
    %2859 = vmatprep.subr.mxu0 0.0
    %2860 = vmatpush1.msra.mxu0 0.0
    %2861 = vmatprep.subr.mxu0 0.0
    %2862 = vmatpush1.msra.mxu0 0.0
    %2863 = vmatprep.subr.mxu0 0.0
    %2864 = vmatpush1.msra.mxu0 0.0
    %2865 = vmatprep.subr.mxu0 0.0
    %2866 = vmatpush1.msra.mxu0 0.0
    %2867 = vmatprep.subr.mxu0 0.0
    %2868 = vmatpush1.msra.mxu0 0.0
    %2869 = vmatprep.subr.mxu0 0.0
    %2870 = vmatpush1.msra.mxu0 0.0
    %2871 = vmatprep.subr.mxu0 0.0
    %2872 = vmatpush1.msra.mxu0 0.0
    %2873 = vmatprep.subr.mxu0 0.0
    %2874 = vmatpush1.msra.mxu0 0.0
    %2875 = vmatprep.subr.mxu0 0.0
    %2876 = vmatpush1.msra.mxu0 0.0
    %2877 = vmatprep.subr.mxu0 0.0
    %2878 = vmatpush1.msra.mxu0 0.0
    %2879 = vmatprep.subr.mxu0 0.0
    %2880 = vmatpush1.msra.mxu0 0.0
    %2881 = vmatprep.subr.mxu0 0.0
    %2882 = vmatpush1.msra.mxu0 0.0
    %2883 = vmatprep.subr.mxu0 0.0
    %2884 = vmatpush1.msra.mxu0 0.0
    %2885 = vmatprep.subr.mxu0 0.0
    %2886 = vmatpush1.msra.mxu0 0.0
    %2887 = vmatprep.subr.mxu0 0.0
    %2888 = vmatpush1.msra.mxu0 0.0
    %2889 = vmatprep.subr.mxu0 0.0
    %2890 = vmatpush1.msra.mxu0 0.0
    %2891 = vmatprep.subr.mxu0 0.0
    %2892 = vmatpush1.msra.mxu0 0.0
    %2893 = vmatprep.subr.mxu0 0.0
    %2894 = vmatpush1.msra.mxu0 0.0
    %2895 = vmatprep.subr.mxu0 0.0
    %2896 = vmatpush1.msra.mxu0 0.0
    %2897 = vmatprep.subr.mxu0 0.0
    %2898 = vmatpush1.msra.mxu0 0.0
    %2899 = vmatprep.subr.mxu0 0.0
    %2900 = vmatpush1.msra.mxu0 0.0
    %2901 = vmatprep.subr.mxu0 0.0
    %2902 = vmatpush1.msra.mxu0 0.0
    %2903 = vmatprep.subr.mxu0 0.0
    %2904 = vmatpush1.msra.mxu0 0.0
    %2905 = vmatprep.subr.mxu0 0.0
    %2906 = vmatpush1.msra.mxu0 0.0
    %2907 = vmatprep.mubr.f32.mxu0 0.0
    %2908 = vmatmul.mubr.f32.gmra.mrb[0].mxu0 %v2841
    %v2909 = vpop.f32.mrb[0].mxu0
    %v2910 = vadd.f32 0.0, %v2909
    %v2911 = vpop.f32.mrb[0].mxu0
    %2912 = vdwg.mxu0
    %2915 = vrot.lane.b32.xlu0 %v2292, 120
    %v2916 = vpop.permute.xlu0 %2915
    %2917 = vrot.lane.b32.xlu0 %v2295, 120
    %v2918 = vpop.permute.xlu0 %2917
    %v2922 = vsel %vm1956, %v2831, 0
    %2924 = vmatprep.subr.mxu0 0.0
    %2925 = vmatpush1.msra.mxu0 %v2916
    %2926 = vmatprep.subr.mxu0 0.0
    %2927 = vmatpush1.msra.mxu0 %v2918
    %2928 = vmatprep.subr.mxu0 0.0
    %2929 = vmatpush1.msra.mxu0 0.0
    %2930 = vmatprep.subr.mxu0 0.0
    %2931 = vmatpush1.msra.mxu0 0.0
    %2932 = vmatprep.subr.mxu0 0.0
    %2933 = vmatpush1.msra.mxu0 0.0
    %2934 = vmatprep.subr.mxu0 0.0
    %2935 = vmatpush1.msra.mxu0 0.0
    %2936 = vmatprep.subr.mxu0 0.0
    %2937 = vmatpush1.msra.mxu0 0.0
    %2938 = vmatprep.subr.mxu0 0.0
    %2939 = vmatpush1.msra.mxu0 0.0
    %2940 = vmatprep.subr.mxu0 0.0
    %2941 = vmatpush1.msra.mxu0 0.0
    %2942 = vmatprep.subr.mxu0 0.0
    %2943 = vmatpush1.msra.mxu0 0.0
    %2944 = vmatprep.subr.mxu0 0.0
    %2945 = vmatpush1.msra.mxu0 0.0
    %2946 = vmatprep.subr.mxu0 0.0
    %2947 = vmatpush1.msra.mxu0 0.0
    %2948 = vmatprep.subr.mxu0 0.0
    %2949 = vmatpush1.msra.mxu0 0.0
    %2950 = vmatprep.subr.mxu0 0.0
    %2951 = vmatpush1.msra.mxu0 0.0
    %2952 = vmatprep.subr.mxu0 0.0
    %2953 = vmatpush1.msra.mxu0 0.0
    %2954 = vmatprep.subr.mxu0 0.0
    %2955 = vmatpush1.msra.mxu0 0.0
    %2956 = vmatprep.subr.mxu0 0.0
    %2957 = vmatpush1.msra.mxu0 0.0
    %2958 = vmatprep.subr.mxu0 0.0
    %2959 = vmatpush1.msra.mxu0 0.0
    %2960 = vmatprep.subr.mxu0 0.0
    %2961 = vmatpush1.msra.mxu0 0.0
    %2962 = vmatprep.subr.mxu0 0.0
    %2963 = vmatpush1.msra.mxu0 0.0
    %2964 = vmatprep.subr.mxu0 0.0
    %2965 = vmatpush1.msra.mxu0 0.0
    %2966 = vmatprep.subr.mxu0 0.0
    %2967 = vmatpush1.msra.mxu0 0.0
    %2968 = vmatprep.subr.mxu0 0.0
    %2969 = vmatpush1.msra.mxu0 0.0
    %2970 = vmatprep.subr.mxu0 0.0
    %2971 = vmatpush1.msra.mxu0 0.0
    %2972 = vmatprep.subr.mxu0 0.0
    %2973 = vmatpush1.msra.mxu0 0.0
    %2974 = vmatprep.subr.mxu0 0.0
    %2975 = vmatpush1.msra.mxu0 0.0
    %2976 = vmatprep.subr.mxu0 0.0
    %2977 = vmatpush1.msra.mxu0 0.0
    %2978 = vmatprep.subr.mxu0 0.0
    %2979 = vmatpush1.msra.mxu0 0.0
    %2980 = vmatprep.subr.mxu0 0.0
    %2981 = vmatpush1.msra.mxu0 0.0
    %2982 = vmatprep.subr.mxu0 0.0
    %2983 = vmatpush1.msra.mxu0 0.0
    %2984 = vmatprep.subr.mxu0 0.0
    %2985 = vmatpush1.msra.mxu0 0.0
    %2986 = vmatprep.subr.mxu0 0.0
    %2987 = vmatpush1.msra.mxu0 0.0
    %2988 = vmatprep.mubr.f32.mxu0 0.0
    %2989 = vmatmul.mubr.f32.gmra.mrb[0].mxu0 %v2922
    %v2990 = vpop.f32.mrb[0].mxu0
    %v2991 = vadd.f32 0.0, %v2990
    %v2992 = vpop.f32.mrb[0].mxu0
    %2993 = vdwg.mxu0
    %v2994 = vadd.f32 %v2640, %v2830
    %v2995 = vadd.f32 %v2641, %v2831
    %2996 = vrot.lane.b32.xlu0 %v2142, 112
    %v2997 = vpop.permute.xlu0 %2996
    %2998 = vrot.lane.b32.xlu0 %v2212, 112
    %v2999 = vpop.permute.xlu0 %2998
    %3000 = vrot.lane.b32.xlu0 %v2215, 112
    %v3001 = vpop.permute.xlu0 %3000
    %v3002 = vsel %vm593, %v2997, 0
    %v3004 = vsel %vm593, %v2999, 0
    %v3006 = vsel %vm593, %v3001, 0
    %3008 = vmatprep.subr.mxu0 0.0
    %3009 = vmatpush1.xpose.msra.mxu0 %v3004
    %3010 = vmatprep.subr.mxu0 0.0
    %3011 = vmatpush1.xpose.msra.mxu0 %v3006
    %3012 = vmatprep.subr.mxu0 0.0
    %3013 = vmatpush1.xpose.msra.mxu0 0.0
    %3014 = vmatprep.subr.mxu0 0.0
    %3015 = vmatpush1.xpose.msra.mxu0 0.0
    %3016 = vmatprep.subr.mxu0 0.0
    %3017 = vmatpush1.xpose.msra.mxu0 0.0
    %3018 = vmatprep.subr.mxu0 0.0
    %3019 = vmatpush1.xpose.msra.mxu0 0.0
    %3020 = vmatprep.subr.mxu0 0.0
    %3021 = vmatpush1.xpose.msra.mxu0 0.0
    %3022 = vmatprep.subr.mxu0 0.0
    %3023 = vmatpush1.xpose.msra.mxu0 0.0
    %3024 = vmatprep.subr.mxu0 0.0
    %3025 = vmatpush1.xpose.msra.mxu0 0.0
    %3026 = vmatprep.subr.mxu0 0.0
    %3027 = vmatpush1.xpose.msra.mxu0 0.0
    %3028 = vmatprep.subr.mxu0 0.0
    %3029 = vmatpush1.xpose.msra.mxu0 0.0
    %3030 = vmatprep.subr.mxu0 0.0
    %3031 = vmatpush1.xpose.msra.mxu0 0.0
    %3032 = vmatprep.subr.mxu0 0.0
    %3033 = vmatpush1.xpose.msra.mxu0 0.0
    %3034 = vmatprep.subr.mxu0 0.0
    %3035 = vmatpush1.xpose.msra.mxu0 0.0
    %3036 = vmatprep.subr.mxu0 0.0
    %3037 = vmatpush1.xpose.msra.mxu0 0.0
    %3038 = vmatprep.subr.mxu0 0.0
    %3039 = vmatpush1.xpose.msra.mxu0 0.0
    %3040 = vmatprep.subr.mxu0 0.0
    %3041 = vmatpush1.xpose.msra.mxu0 0.0
    %3042 = vmatprep.subr.mxu0 0.0
    %3043 = vmatpush1.xpose.msra.mxu0 0.0
    %3044 = vmatprep.subr.mxu0 0.0
    %3045 = vmatpush1.xpose.msra.mxu0 0.0
    %3046 = vmatprep.subr.mxu0 0.0
    %3047 = vmatpush1.xpose.msra.mxu0 0.0
    %3048 = vmatprep.subr.mxu0 0.0
    %3049 = vmatpush1.xpose.msra.mxu0 0.0
    %3050 = vmatprep.subr.mxu0 0.0
    %3051 = vmatpush1.xpose.msra.mxu0 0.0
    %3052 = vmatprep.subr.mxu0 0.0
    %3053 = vmatpush1.xpose.msra.mxu0 0.0
    %3054 = vmatprep.subr.mxu0 0.0
    %3055 = vmatpush1.xpose.msra.mxu0 0.0
    %3056 = vmatprep.subr.mxu0 0.0
    %3057 = vmatpush1.xpose.msra.mxu0 0.0
    %3058 = vmatprep.subr.mxu0 0.0
    %3059 = vmatpush1.xpose.msra.mxu0 0.0
    %3060 = vmatprep.subr.mxu0 0.0
    %3061 = vmatpush1.xpose.msra.mxu0 0.0
    %3062 = vmatprep.subr.mxu0 0.0
    %3063 = vmatpush1.xpose.msra.mxu0 0.0
    %3064 = vmatprep.subr.mxu0 0.0
    %3065 = vmatpush1.xpose.msra.mxu0 0.0
    %3066 = vmatprep.subr.mxu0 0.0
    %3067 = vmatpush1.xpose.msra.mxu0 0.0
    %3068 = vmatprep.subr.mxu0 0.0
    %3069 = vmatpush1.xpose.msra.mxu0 0.0
    %3070 = vmatprep.subr.mxu0 0.0
    %3071 = vmatpush1.xpose.msra.mxu0 0.0
    %3072 = vmatprep.mubr.f32.mxu0 0.0
    %3073 = vmatmul.mubr.f32.gmra.mrb[0].mxu0 %v3002
    %v3074 = vpop.f32.mrb[0].mxu0
    %v3075 = vadd.f32 0.0, %v3074
    %v3076 = vpop.f32.mrb[0].mxu0
    %3077 = vdwg.mxu0
    %3078 = vrot.lane.b32.xlu0 %v2145, 112
    %v3079 = vpop.permute.xlu0 %3078
    %3080 = vrot.lane.b32.xlu0 %v2220, 112
    %v3081 = vpop.permute.xlu0 %3080
    %3082 = vrot.lane.b32.xlu0 %v2223, 112
    %v3083 = vpop.permute.xlu0 %3082
    %v3084 = vsel %vm593, %v3079, 0
    %v3086 = vsel %vm593, %v3081, 0
    %v3088 = vsel %vm593, %v3083, 0
    %3090 = vmatprep.subr.mxu0 0.0
    %3091 = vmatpush1.xpose.msra.mxu0 %v3086
    %3092 = vmatprep.subr.mxu0 0.0
    %3093 = vmatpush1.xpose.msra.mxu0 %v3088
    %3094 = vmatprep.subr.mxu0 0.0
    %3095 = vmatpush1.xpose.msra.mxu0 0.0
    %3096 = vmatprep.subr.mxu0 0.0
    %3097 = vmatpush1.xpose.msra.mxu0 0.0
    %3098 = vmatprep.subr.mxu0 0.0
    %3099 = vmatpush1.xpose.msra.mxu0 0.0
    %3100 = vmatprep.subr.mxu0 0.0
    %3101 = vmatpush1.xpose.msra.mxu0 0.0
    %3102 = vmatprep.subr.mxu0 0.0
    %3103 = vmatpush1.xpose.msra.mxu0 0.0
    %3104 = vmatprep.subr.mxu0 0.0
    %3105 = vmatpush1.xpose.msra.mxu0 0.0
    %3106 = vmatprep.subr.mxu0 0.0
    %3107 = vmatpush1.xpose.msra.mxu0 0.0
    %3108 = vmatprep.subr.mxu0 0.0
    %3109 = vmatpush1.xpose.msra.mxu0 0.0
    %3110 = vmatprep.subr.mxu0 0.0
    %3111 = vmatpush1.xpose.msra.mxu0 0.0
    %3112 = vmatprep.subr.mxu0 0.0
    %3113 = vmatpush1.xpose.msra.mxu0 0.0
    %3114 = vmatprep.subr.mxu0 0.0
    %3115 = vmatpush1.xpose.msra.mxu0 0.0
    %3116 = vmatprep.subr.mxu0 0.0
    %3117 = vmatpush1.xpose.msra.mxu0 0.0
    %3118 = vmatprep.subr.mxu0 0.0
    %3119 = vmatpush1.xpose.msra.mxu0 0.0
    %3120 = vmatprep.subr.mxu0 0.0
    %3121 = vmatpush1.xpose.msra.mxu0 0.0
    %3122 = vmatprep.subr.mxu0 0.0
    %3123 = vmatpush1.xpose.msra.mxu0 0.0
    %3124 = vmatprep.subr.mxu0 0.0
    %3125 = vmatpush1.xpose.msra.mxu0 0.0
    %3126 = vmatprep.subr.mxu0 0.0
    %3127 = vmatpush1.xpose.msra.mxu0 0.0
    %3128 = vmatprep.subr.mxu0 0.0
    %3129 = vmatpush1.xpose.msra.mxu0 0.0
    %3130 = vmatprep.subr.mxu0 0.0
    %3131 = vmatpush1.xpose.msra.mxu0 0.0
    %3132 = vmatprep.subr.mxu0 0.0
    %3133 = vmatpush1.xpose.msra.mxu0 0.0
    %3134 = vmatprep.subr.mxu0 0.0
    %3135 = vmatpush1.xpose.msra.mxu0 0.0
    %3136 = vmatprep.subr.mxu0 0.0
    %3137 = vmatpush1.xpose.msra.mxu0 0.0
    %3138 = vmatprep.subr.mxu0 0.0
    %3139 = vmatpush1.xpose.msra.mxu0 0.0
    %3140 = vmatprep.subr.mxu0 0.0
    %3141 = vmatpush1.xpose.msra.mxu0 0.0
    %3142 = vmatprep.subr.mxu0 0.0
    %3143 = vmatpush1.xpose.msra.mxu0 0.0
    %3144 = vmatprep.subr.mxu0 0.0
    %3145 = vmatpush1.xpose.msra.mxu0 0.0
    %3146 = vmatprep.subr.mxu0 0.0
    %3147 = vmatpush1.xpose.msra.mxu0 0.0
    %3148 = vmatprep.subr.mxu0 0.0
    %3149 = vmatpush1.xpose.msra.mxu0 0.0
    %3150 = vmatprep.subr.mxu0 0.0
    %3151 = vmatpush1.xpose.msra.mxu0 0.0
    %3152 = vmatprep.subr.mxu0 0.0
    %3153 = vmatpush1.xpose.msra.mxu0 0.0
    %3154 = vmatprep.mubr.f32.mxu0 0.0
    %3155 = vmatmul.mubr.f32.gmra.mrb[0].mxu0 %v3084
    %v3156 = vpop.f32.mrb[0].mxu0
    %v3157 = vadd.f32 0.0, %v3156
    %v3158 = vpop.f32.mrb[0].mxu0
    %3159 = vdwg.mxu0
    %v3160 = vmul.f32 %v3075, 0.35355338
    %v3161 = vmul.f32 %v3157, 0.35355338
    %v3162 = vadd.f32 %v3160, %v2463
    %v3163 = vadd.f32 %v3161, %v2467
    %v3164 = vsel %vm1956, %v3162, -inf
    %3165 = vmax.xlane.f32.xlu0 %v3164
    %v3166 = vpop.xlane.xlu0 %3165
    %v3167 = vsel %vm1956, %v3163, -inf
    %3168 = vmax.xlane.f32.xlu0 %v3167
    %v3169 = vpop.xlane.xlu0 %3168
    %v3170 = vsub.f32 %v3162, %v3166
    %v3171 = vsub.f32 %v3163, %v3169
    %v3172 = vmul.f32 %v3170, 1.442695
    %v3173 = vpow.pop %v3172
    %v3174 = vmul.f32 %v3171, 1.442695
    %v3175 = vpow.pop %v3174
    %v3176 = vsel %vm1956, %v3173, 0.0
    %3177 = vadd.xlane.f32.xlu0 %v3176
    %v3178 = vpop.xlane.xlu0 %3177
    %v3179 = vsel %vm1956, %v3175, 0.0
    %3180 = vadd.xlane.f32.xlu0 %v3179
    %v3181 = vpop.xlane.xlu0 %3180
    %v3182 = vrcp.pop %v3178
    %v3183 = vrcp.pop %v3181
    %v3184 = vmul.f32 %v3173, %v3182
    %v3185 = vmul.f32 %v3175, %v3183
    %3186 = vrot.lane.b32.xlu0 %v2284, 112
    %v3187 = vpop.permute.xlu0 %3186
    %3188 = vrot.lane.b32.xlu0 %v2287, 112
    %v3189 = vpop.permute.xlu0 %3188
    %v3193 = vsel %vm1956, %v3184, 0
    %3195 = vmatprep.subr.mxu0 0.0
    %3196 = vmatpush1.msra.mxu0 %v3187
    %3197 = vmatprep.subr.mxu0 0.0
    %3198 = vmatpush1.msra.mxu0 %v3189
    %3199 = vmatprep.subr.mxu0 0.0
    %3200 = vmatpush1.msra.mxu0 0.0
    %3201 = vmatprep.subr.mxu0 0.0
    %3202 = vmatpush1.msra.mxu0 0.0
    %3203 = vmatprep.subr.mxu0 0.0
    %3204 = vmatpush1.msra.mxu0 0.0
    %3205 = vmatprep.subr.mxu0 0.0
    %3206 = vmatpush1.msra.mxu0 0.0
    %3207 = vmatprep.subr.mxu0 0.0
    %3208 = vmatpush1.msra.mxu0 0.0
    %3209 = vmatprep.subr.mxu0 0.0
    %3210 = vmatpush1.msra.mxu0 0.0
    %3211 = vmatprep.subr.mxu0 0.0
    %3212 = vmatpush1.msra.mxu0 0.0
    %3213 = vmatprep.subr.mxu0 0.0
    %3214 = vmatpush1.msra.mxu0 0.0
    %3215 = vmatprep.subr.mxu0 0.0
    %3216 = vmatpush1.msra.mxu0 0.0
    %3217 = vmatprep.subr.mxu0 0.0
    %3218 = vmatpush1.msra.mxu0 0.0
    %3219 = vmatprep.subr.mxu0 0.0
    %3220 = vmatpush1.msra.mxu0 0.0
    %3221 = vmatprep.subr.mxu0 0.0
    %3222 = vmatpush1.msra.mxu0 0.0
    %3223 = vmatprep.subr.mxu0 0.0
    %3224 = vmatpush1.msra.mxu0 0.0
    %3225 = vmatprep.subr.mxu0 0.0
    %3226 = vmatpush1.msra.mxu0 0.0
    %3227 = vmatprep.subr.mxu0 0.0
    %3228 = vmatpush1.msra.mxu0 0.0
    %3229 = vmatprep.subr.mxu0 0.0
    %3230 = vmatpush1.msra.mxu0 0.0
    %3231 = vmatprep.subr.mxu0 0.0
    %3232 = vmatpush1.msra.mxu0 0.0
    %3233 = vmatprep.subr.mxu0 0.0
    %3234 = vmatpush1.msra.mxu0 0.0
    %3235 = vmatprep.subr.mxu0 0.0
    %3236 = vmatpush1.msra.mxu0 0.0
    %3237 = vmatprep.subr.mxu0 0.0
    %3238 = vmatpush1.msra.mxu0 0.0
    %3239 = vmatprep.subr.mxu0 0.0
    %3240 = vmatpush1.msra.mxu0 0.0
    %3241 = vmatprep.subr.mxu0 0.0
    %3242 = vmatpush1.msra.mxu0 0.0
    %3243 = vmatprep.subr.mxu0 0.0
    %3244 = vmatpush1.msra.mxu0 0.0
    %3245 = vmatprep.subr.mxu0 0.0
    %3246 = vmatpush1.msra.mxu0 0.0
    %3247 = vmatprep.subr.mxu0 0.0
    %3248 = vmatpush1.msra.mxu0 0.0
    %3249 = vmatprep.subr.mxu0 0.0
    %3250 = vmatpush1.msra.mxu0 0.0
    %3251 = vmatprep.subr.mxu0 0.0
    %3252 = vmatpush1.msra.mxu0 0.0
    %3253 = vmatprep.subr.mxu0 0.0
    %3254 = vmatpush1.msra.mxu0 0.0
    %3255 = vmatprep.subr.mxu0 0.0
    %3256 = vmatpush1.msra.mxu0 0.0
    %3257 = vmatprep.subr.mxu0 0.0
    %3258 = vmatpush1.msra.mxu0 0.0
    %3259 = vmatprep.mubr.f32.mxu0 0.0
    %3260 = vmatmul.mubr.f32.gmra.mrb[0].mxu0 %v3193
    %v3261 = vpop.f32.mrb[0].mxu0
    %v3262 = vadd.f32 0.0, %v3261
    %v3263 = vpop.f32.mrb[0].mxu0
    %3264 = vdwg.mxu0
    %3265 = vrot.lane.b32.xlu0 %v2292, 112
    %v3266 = vpop.permute.xlu0 %3265
    %3267 = vrot.lane.b32.xlu0 %v2295, 112
    %v3268 = vpop.permute.xlu0 %3267
    %v3272 = vsel %vm1956, %v3185, 0
    %3274 = vmatprep.subr.mxu0 0.0
    %3275 = vmatpush1.msra.mxu0 %v3266
    %3276 = vmatprep.subr.mxu0 0.0
    %3277 = vmatpush1.msra.mxu0 %v3268
    %3278 = vmatprep.subr.mxu0 0.0
    %3279 = vmatpush1.msra.mxu0 0.0
    %3280 = vmatprep.subr.mxu0 0.0
    %3281 = vmatpush1.msra.mxu0 0.0
    %3282 = vmatprep.subr.mxu0 0.0
    %3283 = vmatpush1.msra.mxu0 0.0
    %3284 = vmatprep.subr.mxu0 0.0
    %3285 = vmatpush1.msra.mxu0 0.0
    %3286 = vmatprep.subr.mxu0 0.0
    %3287 = vmatpush1.msra.mxu0 0.0
    %3288 = vmatprep.subr.mxu0 0.0
    %3289 = vmatpush1.msra.mxu0 0.0
    %3290 = vmatprep.subr.mxu0 0.0
    %3291 = vmatpush1.msra.mxu0 0.0
    %3292 = vmatprep.subr.mxu0 0.0
    %3293 = vmatpush1.msra.mxu0 0.0
    %3294 = vmatprep.subr.mxu0 0.0
    %3295 = vmatpush1.msra.mxu0 0.0
    %3296 = vmatprep.subr.mxu0 0.0
    %3297 = vmatpush1.msra.mxu0 0.0
    %3298 = vmatprep.subr.mxu0 0.0
    %3299 = vmatpush1.msra.mxu0 0.0
    %3300 = vmatprep.subr.mxu0 0.0
    %3301 = vmatpush1.msra.mxu0 0.0
    %3302 = vmatprep.subr.mxu0 0.0
    %3303 = vmatpush1.msra.mxu0 0.0
    %3304 = vmatprep.subr.mxu0 0.0
    %3305 = vmatpush1.msra.mxu0 0.0
    %3306 = vmatprep.subr.mxu0 0.0
    %3307 = vmatpush1.msra.mxu0 0.0
    %3308 = vmatprep.subr.mxu0 0.0
    %3309 = vmatpush1.msra.mxu0 0.0
    %3310 = vmatprep.subr.mxu0 0.0
    %3311 = vmatpush1.msra.mxu0 0.0
    %3312 = vmatprep.subr.mxu0 0.0
    %3313 = vmatpush1.msra.mxu0 0.0
    %3314 = vmatprep.subr.mxu0 0.0
    %3315 = vmatpush1.msra.mxu0 0.0
    %3316 = vmatprep.subr.mxu0 0.0
    %3317 = vmatpush1.msra.mxu0 0.0
    %3318 = vmatprep.subr.mxu0 0.0
    %3319 = vmatpush1.msra.mxu0 0.0
    %3320 = vmatprep.subr.mxu0 0.0
    %3321 = vmatpush1.msra.mxu0 0.0
    %3322 = vmatprep.subr.mxu0 0.0
    %3323 = vmatpush1.msra.mxu0 0.0
    %3324 = vmatprep.subr.mxu0 0.0
    %3325 = vmatpush1.msra.mxu0 0.0
    %3326 = vmatprep.subr.mxu0 0.0
    %3327 = vmatpush1.msra.mxu0 0.0
    %3328 = vmatprep.subr.mxu0 0.0
    %3329 = vmatpush1.msra.mxu0 0.0
    %3330 = vmatprep.subr.mxu0 0.0
    %3331 = vmatpush1.msra.mxu0 0.0
    %3332 = vmatprep.subr.mxu0 0.0
    %3333 = vmatpush1.msra.mxu0 0.0
    %3334 = vmatprep.subr.mxu0 0.0
    %3335 = vmatpush1.msra.mxu0 0.0
    %3336 = vmatprep.subr.mxu0 0.0
    %3337 = vmatpush1.msra.mxu0 0.0
    %3338 = vmatprep.mubr.f32.mxu0 0.0
    %3339 = vmatmul.mubr.f32.gmra.mrb[0].mxu0 %v3272
    %v3340 = vpop.f32.mrb[0].mxu0
    %v3341 = vadd.f32 0.0, %v3340
    %v3342 = vpop.f32.mrb[0].mxu0
    %3343 = vdwg.mxu0
    %v3344 = vadd.f32 %v2994, %v3184
    %v3345 = vadd.f32 %v2995, %v3185
    %3346 = vrot.lane.b32.xlu0 %v2142, 104
    %v3347 = vpop.permute.xlu0 %3346
    %3348 = vrot.lane.b32.xlu0 %v2212, 104
    %v3349 = vpop.permute.xlu0 %3348
    %3350 = vrot.lane.b32.xlu0 %v2215, 104
    %v3351 = vpop.permute.xlu0 %3350
    %v3352 = vsel %vm593, %v3347, 0
    %v3354 = vsel %vm593, %v3349, 0
    %v3356 = vsel %vm593, %v3351, 0
    %3358 = vmatprep.subr.mxu0 0.0
    %3359 = vmatpush1.xpose.msra.mxu0 %v3354
    %3360 = vmatprep.subr.mxu0 0.0
    %3361 = vmatpush1.xpose.msra.mxu0 %v3356
    %3362 = vmatprep.subr.mxu0 0.0
    %3363 = vmatpush1.xpose.msra.mxu0 0.0
    %3364 = vmatprep.subr.mxu0 0.0
    %3365 = vmatpush1.xpose.msra.mxu0 0.0
    %3366 = vmatprep.subr.mxu0 0.0
    %3367 = vmatpush1.xpose.msra.mxu0 0.0
    %3368 = vmatprep.subr.mxu0 0.0
    %3369 = vmatpush1.xpose.msra.mxu0 0.0
    %3370 = vmatprep.subr.mxu0 0.0
    %3371 = vmatpush1.xpose.msra.mxu0 0.0
    %3372 = vmatprep.subr.mxu0 0.0
    %3373 = vmatpush1.xpose.msra.mxu0 0.0
    %3374 = vmatprep.subr.mxu0 0.0
    %3375 = vmatpush1.xpose.msra.mxu0 0.0
    %3376 = vmatprep.subr.mxu0 0.0
    %3377 = vmatpush1.xpose.msra.mxu0 0.0
    %3378 = vmatprep.subr.mxu0 0.0
    %3379 = vmatpush1.xpose.msra.mxu0 0.0
    %3380 = vmatprep.subr.mxu0 0.0
    %3381 = vmatpush1.xpose.msra.mxu0 0.0
    %3382 = vmatprep.subr.mxu0 0.0
    %3383 = vmatpush1.xpose.msra.mxu0 0.0
    %3384 = vmatprep.subr.mxu0 0.0
    %3385 = vmatpush1.xpose.msra.mxu0 0.0
    %3386 = vmatprep.subr.mxu0 0.0
    %3387 = vmatpush1.xpose.msra.mxu0 0.0
    %3388 = vmatprep.subr.mxu0 0.0
    %3389 = vmatpush1.xpose.msra.mxu0 0.0
    %3390 = vmatprep.subr.mxu0 0.0
    %3391 = vmatpush1.xpose.msra.mxu0 0.0
    %3392 = vmatprep.subr.mxu0 0.0
    %3393 = vmatpush1.xpose.msra.mxu0 0.0
    %3394 = vmatprep.subr.mxu0 0.0
    %3395 = vmatpush1.xpose.msra.mxu0 0.0
    %3396 = vmatprep.subr.mxu0 0.0
    %3397 = vmatpush1.xpose.msra.mxu0 0.0
    %3398 = vmatprep.subr.mxu0 0.0
    %3399 = vmatpush1.xpose.msra.mxu0 0.0
    %3400 = vmatprep.subr.mxu0 0.0
    %3401 = vmatpush1.xpose.msra.mxu0 0.0
    %3402 = vmatprep.subr.mxu0 0.0
    %3403 = vmatpush1.xpose.msra.mxu0 0.0
    %3404 = vmatprep.subr.mxu0 0.0
    %3405 = vmatpush1.xpose.msra.mxu0 0.0
    %3406 = vmatprep.subr.mxu0 0.0
    %3407 = vmatpush1.xpose.msra.mxu0 0.0
    %3408 = vmatprep.subr.mxu0 0.0
    %3409 = vmatpush1.xpose.msra.mxu0 0.0
    %3410 = vmatprep.subr.mxu0 0.0
    %3411 = vmatpush1.xpose.msra.mxu0 0.0
    %3412 = vmatprep.subr.mxu0 0.0
    %3413 = vmatpush1.xpose.msra.mxu0 0.0
    %3414 = vmatprep.subr.mxu0 0.0
    %3415 = vmatpush1.xpose.msra.mxu0 0.0
    %3416 = vmatprep.subr.mxu0 0.0
    %3417 = vmatpush1.xpose.msra.mxu0 0.0
    %3418 = vmatprep.subr.mxu0 0.0
    %3419 = vmatpush1.xpose.msra.mxu0 0.0
    %3420 = vmatprep.subr.mxu0 0.0
    %3421 = vmatpush1.xpose.msra.mxu0 0.0
    %3422 = vmatprep.mubr.f32.mxu0 0.0
    %3423 = vmatmul.mubr.f32.gmra.mrb[0].mxu0 %v3352
    %v3424 = vpop.f32.mrb[0].mxu0
    %v3425 = vadd.f32 0.0, %v3424
    %v3426 = vpop.f32.mrb[0].mxu0
    %3427 = vdwg.mxu0
    %3428 = vrot.lane.b32.xlu0 %v2145, 104
    %v3429 = vpop.permute.xlu0 %3428
    %3430 = vrot.lane.b32.xlu0 %v2220, 104
    %v3431 = vpop.permute.xlu0 %3430
    %3432 = vrot.lane.b32.xlu0 %v2223, 104
    %v3433 = vpop.permute.xlu0 %3432
    %v3434 = vsel %vm593, %v3429, 0
    %v3436 = vsel %vm593, %v3431, 0
    %v3438 = vsel %vm593, %v3433, 0
    %3440 = vmatprep.subr.mxu0 0.0
    %3441 = vmatpush1.xpose.msra.mxu0 %v3436
    %3442 = vmatprep.subr.mxu0 0.0
    %3443 = vmatpush1.xpose.msra.mxu0 %v3438
    %3444 = vmatprep.subr.mxu0 0.0
    %3445 = vmatpush1.xpose.msra.mxu0 0.0
    %3446 = vmatprep.subr.mxu0 0.0
    %3447 = vmatpush1.xpose.msra.mxu0 0.0
    %3448 = vmatprep.subr.mxu0 0.0
    %3449 = vmatpush1.xpose.msra.mxu0 0.0
    %3450 = vmatprep.subr.mxu0 0.0
    %3451 = vmatpush1.xpose.msra.mxu0 0.0
    %3452 = vmatprep.subr.mxu0 0.0
    %3453 = vmatpush1.xpose.msra.mxu0 0.0
    %3454 = vmatprep.subr.mxu0 0.0
    %3455 = vmatpush1.xpose.msra.mxu0 0.0
    %3456 = vmatprep.subr.mxu0 0.0
    %3457 = vmatpush1.xpose.msra.mxu0 0.0
    %3458 = vmatprep.subr.mxu0 0.0
    %3459 = vmatpush1.xpose.msra.mxu0 0.0
    %3460 = vmatprep.subr.mxu0 0.0
    %3461 = vmatpush1.xpose.msra.mxu0 0.0
    %3462 = vmatprep.subr.mxu0 0.0
    %3463 = vmatpush1.xpose.msra.mxu0 0.0
    %3464 = vmatprep.subr.mxu0 0.0
    %3465 = vmatpush1.xpose.msra.mxu0 0.0
    %3466 = vmatprep.subr.mxu0 0.0
    %3467 = vmatpush1.xpose.msra.mxu0 0.0
    %3468 = vmatprep.subr.mxu0 0.0
    %3469 = vmatpush1.xpose.msra.mxu0 0.0
    %3470 = vmatprep.subr.mxu0 0.0
    %3471 = vmatpush1.xpose.msra.mxu0 0.0
    %3472 = vmatprep.subr.mxu0 0.0
    %3473 = vmatpush1.xpose.msra.mxu0 0.0
    %3474 = vmatprep.subr.mxu0 0.0
    %3475 = vmatpush1.xpose.msra.mxu0 0.0
    %3476 = vmatprep.subr.mxu0 0.0
    %3477 = vmatpush1.xpose.msra.mxu0 0.0
    %3478 = vmatprep.subr.mxu0 0.0
    %3479 = vmatpush1.xpose.msra.mxu0 0.0
    %3480 = vmatprep.subr.mxu0 0.0
    %3481 = vmatpush1.xpose.msra.mxu0 0.0
    %3482 = vmatprep.subr.mxu0 0.0
    %3483 = vmatpush1.xpose.msra.mxu0 0.0
    %3484 = vmatprep.subr.mxu0 0.0
    %3485 = vmatpush1.xpose.msra.mxu0 0.0
    %3486 = vmatprep.subr.mxu0 0.0
    %3487 = vmatpush1.xpose.msra.mxu0 0.0
    %3488 = vmatprep.subr.mxu0 0.0
    %3489 = vmatpush1.xpose.msra.mxu0 0.0
    %3490 = vmatprep.subr.mxu0 0.0
    %3491 = vmatpush1.xpose.msra.mxu0 0.0
    %3492 = vmatprep.subr.mxu0 0.0
    %3493 = vmatpush1.xpose.msra.mxu0 0.0
    %3494 = vmatprep.subr.mxu0 0.0
    %3495 = vmatpush1.xpose.msra.mxu0 0.0
    %3496 = vmatprep.subr.mxu0 0.0
    %3497 = vmatpush1.xpose.msra.mxu0 0.0
    %3498 = vmatprep.subr.mxu0 0.0
    %3499 = vmatpush1.xpose.msra.mxu0 0.0
    %3500 = vmatprep.subr.mxu0 0.0
    %3501 = vmatpush1.xpose.msra.mxu0 0.0
    %3502 = vmatprep.subr.mxu0 0.0
    %3503 = vmatpush1.xpose.msra.mxu0 0.0
    %3504 = vmatprep.mubr.f32.mxu0 0.0
    %3505 = vmatmul.mubr.f32.gmra.mrb[0].mxu0 %v3434
    %v3506 = vpop.f32.mrb[0].mxu0
    %v3507 = vadd.f32 0.0, %v3506
    %v3508 = vpop.f32.mrb[0].mxu0
    %3509 = vdwg.mxu0
    %v3510 = vmul.f32 %v3425, 0.35355338
    %v3511 = vmul.f32 %v3507, 0.35355338
    %v3512 = vadd.f32 %v3510, %v2463
    %v3513 = vadd.f32 %v3511, %v2467
    %v3514 = vsel %vm1956, %v3512, -inf
    %3515 = vmax.xlane.f32.xlu0 %v3514
    %v3516 = vpop.xlane.xlu0 %3515
    %v3517 = vsel %vm1956, %v3513, -inf
    %3518 = vmax.xlane.f32.xlu0 %v3517
    %v3519 = vpop.xlane.xlu0 %3518
    %v3520 = vsub.f32 %v3512, %v3516
    %v3521 = vsub.f32 %v3513, %v3519
    %v3522 = vmul.f32 %v3520, 1.442695
    %v3523 = vpow.pop %v3522
    %v3524 = vmul.f32 %v3521, 1.442695
    %v3525 = vpow.pop %v3524
    %v3526 = vsel %vm1956, %v3523, 0.0
    %3527 = vadd.xlane.f32.xlu0 %v3526
    %v3528 = vpop.xlane.xlu0 %3527
    %v3529 = vsel %vm1956, %v3525, 0.0
    %3530 = vadd.xlane.f32.xlu0 %v3529
    %v3531 = vpop.xlane.xlu0 %3530
    %v3532 = vrcp.pop %v3528
    %v3533 = vrcp.pop %v3531
    %v3534 = vmul.f32 %v3523, %v3532
    %v3535 = vmul.f32 %v3525, %v3533
    %3536 = vrot.lane.b32.xlu0 %v2284, 104
    %v3537 = vpop.permute.xlu0 %3536
    %3538 = vrot.lane.b32.xlu0 %v2287, 104
    %v3539 = vpop.permute.xlu0 %3538
    %v3543 = vsel %vm1956, %v3534, 0
    %3545 = vmatprep.subr.mxu0 0.0
    %3546 = vmatpush1.msra.mxu0 %v3537
    %3547 = vmatprep.subr.mxu0 0.0
    %3548 = vmatpush1.msra.mxu0 %v3539
    %3549 = vmatprep.subr.mxu0 0.0
    %3550 = vmatpush1.msra.mxu0 0.0
    %3551 = vmatprep.subr.mxu0 0.0
    %3552 = vmatpush1.msra.mxu0 0.0
    %3553 = vmatprep.subr.mxu0 0.0
    %3554 = vmatpush1.msra.mxu0 0.0
    %3555 = vmatprep.subr.mxu0 0.0
    %3556 = vmatpush1.msra.mxu0 0.0
    %3557 = vmatprep.subr.mxu0 0.0
    %3558 = vmatpush1.msra.mxu0 0.0
    %3559 = vmatprep.subr.mxu0 0.0
    %3560 = vmatpush1.msra.mxu0 0.0
    %3561 = vmatprep.subr.mxu0 0.0
    %3562 = vmatpush1.msra.mxu0 0.0
    %3563 = vmatprep.subr.mxu0 0.0
    %3564 = vmatpush1.msra.mxu0 0.0
    %3565 = vmatprep.subr.mxu0 0.0
    %3566 = vmatpush1.msra.mxu0 0.0
    %3567 = vmatprep.subr.mxu0 0.0
    %3568 = vmatpush1.msra.mxu0 0.0
    %3569 = vmatprep.subr.mxu0 0.0
    %3570 = vmatpush1.msra.mxu0 0.0
    %3571 = vmatprep.subr.mxu0 0.0
    %3572 = vmatpush1.msra.mxu0 0.0
    %3573 = vmatprep.subr.mxu0 0.0
    %3574 = vmatpush1.msra.mxu0 0.0
    %3575 = vmatprep.subr.mxu0 0.0
    %3576 = vmatpush1.msra.mxu0 0.0
    %3577 = vmatprep.subr.mxu0 0.0
    %3578 = vmatpush1.msra.mxu0 0.0
    %3579 = vmatprep.subr.mxu0 0.0
    %3580 = vmatpush1.msra.mxu0 0.0
    %3581 = vmatprep.subr.mxu0 0.0
    %3582 = vmatpush1.msra.mxu0 0.0
    %3583 = vmatprep.subr.mxu0 0.0
    %3584 = vmatpush1.msra.mxu0 0.0
    %3585 = vmatprep.subr.mxu0 0.0
    %3586 = vmatpush1.msra.mxu0 0.0
    %3587 = vmatprep.subr.mxu0 0.0
    %3588 = vmatpush1.msra.mxu0 0.0
    %3589 = vmatprep.subr.mxu0 0.0
    %3590 = vmatpush1.msra.mxu0 0.0
    %3591 = vmatprep.subr.mxu0 0.0
    %3592 = vmatpush1.msra.mxu0 0.0
    %3593 = vmatprep.subr.mxu0 0.0
    %3594 = vmatpush1.msra.mxu0 0.0
    %3595 = vmatprep.subr.mxu0 0.0
    %3596 = vmatpush1.msra.mxu0 0.0
    %3597 = vmatprep.subr.mxu0 0.0
    %3598 = vmatpush1.msra.mxu0 0.0
    %3599 = vmatprep.subr.mxu0 0.0
    %3600 = vmatpush1.msra.mxu0 0.0
    %3601 = vmatprep.subr.mxu0 0.0
    %3602 = vmatpush1.msra.mxu0 0.0
    %3603 = vmatprep.subr.mxu0 0.0
    %3604 = vmatpush1.msra.mxu0 0.0
    %3605 = vmatprep.subr.mxu0 0.0
    %3606 = vmatpush1.msra.mxu0 0.0
    %3607 = vmatprep.subr.mxu0 0.0
    %3608 = vmatpush1.msra.mxu0 0.0
    %3609 = vmatprep.mubr.f32.mxu0 0.0
    %3610 = vmatmul.mubr.f32.gmra.mrb[0].mxu0 %v3543
    %v3611 = vpop.f32.mrb[0].mxu0
    %v3612 = vadd.f32 0.0, %v3611
    %v3613 = vpop.f32.mrb[0].mxu0
    %3614 = vdwg.mxu0
    %3615 = vrot.lane.b32.xlu0 %v2292, 104
    %v3616 = vpop.permute.xlu0 %3615
    %3617 = vrot.lane.b32.xlu0 %v2295, 104
    %v3618 = vpop.permute.xlu0 %3617
    %v3622 = vsel %vm1956, %v3535, 0
    %3624 = vmatprep.subr.mxu0 0.0
    %3625 = vmatpush1.msra.mxu0 %v3616
    %3626 = vmatprep.subr.mxu0 0.0
    %3627 = vmatpush1.msra.mxu0 %v3618
    %3628 = vmatprep.subr.mxu0 0.0
    %3629 = vmatpush1.msra.mxu0 0.0
    %3630 = vmatprep.subr.mxu0 0.0
    %3631 = vmatpush1.msra.mxu0 0.0
    %3632 = vmatprep.subr.mxu0 0.0
    %3633 = vmatpush1.msra.mxu0 0.0
    %3634 = vmatprep.subr.mxu0 0.0
    %3635 = vmatpush1.msra.mxu0 0.0
    %3636 = vmatprep.subr.mxu0 0.0
    %3637 = vmatpush1.msra.mxu0 0.0
    %3638 = vmatprep.subr.mxu0 0.0
    %3639 = vmatpush1.msra.mxu0 0.0
    %3640 = vmatprep.subr.mxu0 0.0
    %3641 = vmatpush1.msra.mxu0 0.0
    %3642 = vmatprep.subr.mxu0 0.0
    %3643 = vmatpush1.msra.mxu0 0.0
    %3644 = vmatprep.subr.mxu0 0.0
    %3645 = vmatpush1.msra.mxu0 0.0
    %3646 = vmatprep.subr.mxu0 0.0
    %3647 = vmatpush1.msra.mxu0 0.0
    %3648 = vmatprep.subr.mxu0 0.0
    %3649 = vmatpush1.msra.mxu0 0.0
    %3650 = vmatprep.subr.mxu0 0.0
    %3651 = vmatpush1.msra.mxu0 0.0
    %3652 = vmatprep.subr.mxu0 0.0
    %3653 = vmatpush1.msra.mxu0 0.0
    %3654 = vmatprep.subr.mxu0 0.0
    %3655 = vmatpush1.msra.mxu0 0.0
    %3656 = vmatprep.subr.mxu0 0.0
    %3657 = vmatpush1.msra.mxu0 0.0
    %3658 = vmatprep.subr.mxu0 0.0
    %3659 = vmatpush1.msra.mxu0 0.0
    %3660 = vmatprep.subr.mxu0 0.0
    %3661 = vmatpush1.msra.mxu0 0.0
    %3662 = vmatprep.subr.mxu0 0.0
    %3663 = vmatpush1.msra.mxu0 0.0
    %3664 = vmatprep.subr.mxu0 0.0
    %3665 = vmatpush1.msra.mxu0 0.0
    %3666 = vmatprep.subr.mxu0 0.0
    %3667 = vmatpush1.msra.mxu0 0.0
    %3668 = vmatprep.subr.mxu0 0.0
    %3669 = vmatpush1.msra.mxu0 0.0
    %3670 = vmatprep.subr.mxu0 0.0
    %3671 = vmatpush1.msra.mxu0 0.0
    %3672 = vmatprep.subr.mxu0 0.0
    %3673 = vmatpush1.msra.mxu0 0.0
    %3674 = vmatprep.subr.mxu0 0.0
    %3675 = vmatpush1.msra.mxu0 0.0
    %3676 = vmatprep.subr.mxu0 0.0
    %3677 = vmatpush1.msra.mxu0 0.0
    %3678 = vmatprep.subr.mxu0 0.0
    %3679 = vmatpush1.msra.mxu0 0.0
    %3680 = vmatprep.subr.mxu0 0.0
    %3681 = vmatpush1.msra.mxu0 0.0
    %3682 = vmatprep.subr.mxu0 0.0
    %3683 = vmatpush1.msra.mxu0 0.0
    %3684 = vmatprep.subr.mxu0 0.0
    %3685 = vmatpush1.msra.mxu0 0.0
    %3686 = vmatprep.subr.mxu0 0.0
    %3687 = vmatpush1.msra.mxu0 0.0
    %3688 = vmatprep.mubr.f32.mxu0 0.0
    %3689 = vmatmul.mubr.f32.gmra.mrb[0].mxu0 %v3622
    %v3690 = vpop.f32.mrb[0].mxu0
    %v3691 = vadd.f32 0.0, %v3690
    %v3692 = vpop.f32.mrb[0].mxu0
    %3693 = vdwg.mxu0
    %v3694 = vadd.f32 %v3344, %v3534
    %v3695 = vadd.f32 %v3345, %v3535
    %3698 = vrot.lane.b32.xlu0 %v2910, 8
    %v3699 = vpop.permute.xlu0 %3698
    %3700 = vrot.lane.b32.xlu0 %v2991, 8
    %v3701 = vpop.permute.xlu0 %3700
    %3706 = vrot.lane.b32.xlu0 %v3262, 16
    %v3707 = vpop.permute.xlu0 %3706
    %3708 = vrot.lane.b32.xlu0 %v3341, 16
    %v3709 = vpop.permute.xlu0 %3708
    %3714 = vrot.lane.b32.xlu0 %v3612, 24
    %v3715 = vpop.permute.xlu0 %3714
    %3716 = vrot.lane.b32.xlu0 %v3691, 24
    %v3717 = vpop.permute.xlu0 %3716
    %v3720 = vsel %vm593, %v2564, %v3699
    %v3721 = vsel %vm593, %v2637, %v3701
    %v3722 = vsel %vm1956, %v3720, %v3707
    %v3723 = vsel %vm1956, %v3721, %v3709
    %v3724 = vsel %vm1959, %v3722, %v3715
    %v3725 = vsel %vm1959, %v3723, %v3717
    %v3726 = vmul.f32 %v3694, 0.25
    %v3727 = vmul.f32 %v3695, 0.25
    %v3728 = vpack.c.bf16 %v3725, %v3724
    %v3729 = vld [vmem:[%s45] sm:$0xf]
    %v3730 = vld [vmem:[%s45 + $0x4] sm:$0xf]
    %v3731 = vld [vmem:[%s45 + $0x8] sm:$0xf]
    %v3732 = vld [vmem:[%s45 + $0xc] sm:$0xf]
    %v3733 = vld [vmem:[%s47] sm:$0x1]
    %v3735 = vlaneseq
    %v3736 = vshrl.u32 %v3735, 7
    %v3737 = vsub.s32 0, %v3736
    %v3738 = vrot.slane %v3733, %v3737
    %v3744 = vunpack.c.l.b16 %v3729
    %v3745 = vunpack.c.l.b16 %v3730
    %v3746 = vunpack.c.l.b16 %v3731
    %v3747 = vunpack.c.l.b16 %v3732
    %v3748 = vpack.c.b16 %v3745, %v3744
    %v3749 = vpack.c.b16 %v3747, %v3746
    %v3753 = vsel %vm353, %v3728, 0
    %3755 = vmatprep.subr.bf16.mxu0 0
    %3756 = vmatpush1.bf16.msra.mxu0 %v3748
    %3757 = vmatprep.subr.bf16.mxu0 0
    %3758 = vmatpush1.bf16.msra.mxu0 %v3749
    %3759 = vmatprep.subr.bf16.mxu0 0
    %3760 = vmatpush1.bf16.msra.mxu0 0
    %3761 = vmatprep.subr.bf16.mxu0 0
    %3762 = vmatpush1.bf16.msra.mxu0 0
    %3763 = vmatprep.subr.bf16.mxu0 0
    %3764 = vmatpush1.bf16.msra.mxu0 0
    %3765 = vmatprep.subr.bf16.mxu0 0
    %3766 = vmatpush1.bf16.msra.mxu0 0
    %3767 = vmatprep.subr.bf16.mxu0 0
    %3768 = vmatpush1.bf16.msra.mxu0 0
    %3769 = vmatprep.subr.bf16.mxu0 0
    %3770 = vmatpush1.bf16.msra.mxu0 0
    %3771 = vmatprep.subr.bf16.mxu0 0
    %3772 = vmatpush1.bf16.msra.mxu0 0
    %3773 = vmatprep.subr.bf16.mxu0 0
    %3774 = vmatpush1.bf16.msra.mxu0 0
    %3775 = vmatprep.subr.bf16.mxu0 0
    %3776 = vmatpush1.bf16.msra.mxu0 0
    %3777 = vmatprep.subr.bf16.mxu0 0
    %3778 = vmatpush1.bf16.msra.mxu0 0
    %3779 = vmatprep.subr.bf16.mxu0 0
    %3780 = vmatpush1.bf16.msra.mxu0 0
    %3781 = vmatprep.subr.bf16.mxu0 0
    %3782 = vmatpush1.bf16.msra.mxu0 0
    %3783 = vmatprep.subr.bf16.mxu0 0
    %3784 = vmatpush1.bf16.msra.mxu0 0
    %3785 = vmatprep.subr.bf16.mxu0 0
    %3786 = vmatpush1.bf16.msra.mxu0 0
    %3787 = vmatprep.mubr.bf16.mxu0 0
    %3788 = vmatmul.mubr.bf16.gmra.mrb[0].mxu0 %v3753
    %v3789 = vpop.f32.mrb[0].mxu0
    %v3790 = vadd.f32 %v3738, %v3789
    %v3791 = vpop.f32.mrb[0].mxu0
    %v3792 = vpop.f32.mrb[0].mxu0
    %v3793 = vadd.f32 %v3738, %v3792
    %v3794 = vpop.f32.mrb[0].mxu0
    %3795 = vdwg.mxu0
    %v3796 = vadd.f32 %v2076, %v3790
    %v3797 = vadd.f32 %v2077, %v3793
    %v3798 = vpack.c.bf16 %v3797, %v3796
    %v3799 = vld [vmem:[#allocation25] sm:$0xf]
    %v3800 = vld [vmem:[#allocation25 + $0x4] sm:$0xf]
    %v3801 = vld [vmem:[#allocation25 + $0x8] sm:$0xf]
    %v3802 = vld [vmem:[#allocation25 + $0xc] sm:$0xf]
    %v3803 = vld [vmem:[%s51] sm:$0x1]
    %v3805 = vlaneseq
    %v3806 = vshrl.u32 %v3805, 7
    %v3807 = vsub.s32 0, %v3806
    %v3808 = vrot.slane %v3803, %v3807
    %v3814 = vunpack.c.l.b16 %v3799
    %v3815 = vunpack.c.l.b16 %v3800
    %v3816 = vunpack.c.l.b16 %v3801
    %v3817 = vunpack.c.l.b16 %v3802
    %v3818 = vpack.c.b16 %v3815, %v3814
    %v3819 = vpack.c.b16 %v3817, %v3816
    %v3823 = vsel %vm353, %v3798, 0
    %3825 = vmatprep.subr.bf16.mxu0 0
    %3826 = vmatpush1.bf16.msra.mxu0 %v3818
    %3827 = vmatprep.subr.bf16.mxu0 0
    %3828 = vmatpush1.bf16.msra.mxu0 %v3819
    %3829 = vmatprep.subr.bf16.mxu0 0
    %3830 = vmatpush1.bf16.msra.mxu0 0
    %3831 = vmatprep.subr.bf16.mxu0 0
    %3832 = vmatpush1.bf16.msra.mxu0 0
    %3833 = vmatprep.subr.bf16.mxu0 0
    %3834 = vmatpush1.bf16.msra.mxu0 0
    %3835 = vmatprep.subr.bf16.mxu0 0
    %3836 = vmatpush1.bf16.msra.mxu0 0
    %3837 = vmatprep.subr.bf16.mxu0 0
    %3838 = vmatpush1.bf16.msra.mxu0 0
    %3839 = vmatprep.subr.bf16.mxu0 0
    %3840 = vmatpush1.bf16.msra.mxu0 0
    %3841 = vmatprep.subr.bf16.mxu0 0
    %3842 = vmatpush1.bf16.msra.mxu0 0
    %3843 = vmatprep.subr.bf16.mxu0 0
    %3844 = vmatpush1.bf16.msra.mxu0 0
    %3845 = vmatprep.subr.bf16.mxu0 0
    %3846 = vmatpush1.bf16.msra.mxu0 0
    %3847 = vmatprep.subr.bf16.mxu0 0
    %3848 = vmatpush1.bf16.msra.mxu0 0
    %3849 = vmatprep.subr.bf16.mxu0 0
    %3850 = vmatpush1.bf16.msra.mxu0 0
    %3851 = vmatprep.subr.bf16.mxu0 0
    %3852 = vmatpush1.bf16.msra.mxu0 0
    %3853 = vmatprep.subr.bf16.mxu0 0
    %3854 = vmatpush1.bf16.msra.mxu0 0
    %3855 = vmatprep.subr.bf16.mxu0 0
    %3856 = vmatpush1.bf16.msra.mxu0 0
    %3857 = vmatprep.mubr.bf16.mxu0 0
    %3858 = vmatmul.mubr.bf16.gmra.mrb[0].mxu0 %v3823
    %v3859 = vpop.f32.mrb[0].mxu0
    %v3860 = vadd.f32 %v3808, %v3859
    %v3861 = vpop.f32.mrb[0].mxu0
    %v3862 = vpop.f32.mrb[0].mxu0
    %v3863 = vadd.f32 %v3808, %v3862
    %v3864 = vpop.f32.mrb[0].mxu0
    %3865 = vdwg.mxu0
    %v3866 = vmul.f32 %v3860, 0.5
    %v3867 = vmul.f32 %v3863, 0.5
    %v3868 = vmul.f32 %v3860, 0.70710677
    %v3869 = vmul.f32 %v3863, 0.70710677
    %vm3870 = vcmp.ge.f32.partialorder %v3868, 0.0
    %vm3871 = vcmp.ge.f32.partialorder %v3869, 0.0
    %v3872 = vsel %vm3870, 1.0, -1.0
    %v3873 = vsel %vm3871, 1.0, -1.0
    %v3874 = vand.u32 2147483647, %v3868
    %v3875 = vand.u32 2147483647, %v3869
    %v3876 = vmul.f32 %v3874, 0.3275911
    %v3877 = vmul.f32 %v3875, 0.3275911
    %v3878 = vadd.f32 %v3876, 1.0
    %v3879 = vadd.f32 %v3877, 1.0
    %v3880 = vrcp.pop %v3878
    %v3881 = vmul.f32 1.0, %v3880
    %v3882 = vrcp.pop %v3879
    %v3883 = vmul.f32 1.0, %v3882
    %v3884 = vmul.f32 %v3881, 1.0614054
    %v3885 = vmul.f32 %v3883, 1.0614054
    %v3886 = vadd.f32 %v3884, -1.4531521
    %v3887 = vadd.f32 %v3885, -1.4531521
    %v3888 = vmul.f32 %v3886, %v3881
    %v3889 = vmul.f32 %v3887, %v3883
    %v3890 = vadd.f32 %v3888, 1.4214138
    %v3891 = vadd.f32 %v3889, 1.4214138
    %v3892 = vmul.f32 %v3890, %v3881
    %v3893 = vmul.f32 %v3891, %v3883
    %v3894 = vadd.f32 %v3892, -0.28449672
    %v3895 = vadd.f32 %v3893, -0.28449672
    %v3896 = vmul.f32 %v3894, %v3881
    %v3897 = vmul.f32 %v3895, %v3883
    %v3898 = vadd.f32 %v3896, 0.2548296
    %v3899 = vadd.f32 %v3897, 0.2548296
    %v3900 = vmul.f32 %v3898, %v3881
    %v3901 = vmul.f32 %v3899, %v3883
    %v3902 = vsub.f32 0.0, %v3874
    %v3903 = vsub.f32 0.0, %v3875
    %v3904 = vmul.f32 %v3902, %v3874
    %v3905 = vmul.f32 %v3903, %v3875
    %v3906 = vmul.f32 %v3904, 1.442695
    %v3907 = vpow.pop %v3906
    %v3908 = vmul.f32 %v3905, 1.442695
    %v3909 = vpow.pop %v3908
    %v3910 = vmul.f32 %v3900, %v3907
    %v3911 = vmul.f32 %v3901, %v3909
    %v3912 = vsub.f32 1.0, %v3910
    %v3913 = vsub.f32 1.0, %v3911
    %v3914 = vmul.f32 %v3872, %v3912
    %v3915 = vmul.f32 %v3873, %v3913
    %v3916 = vadd.f32 %v3914, 1.0
    %v3917 = vadd.f32 %v3915, 1.0
    %v3918 = vmul.f32 %v3866, %v3916
    %v3919 = vmul.f32 %v3867, %v3917
    %v3920 = vpack.c.bf16 %v3919, %v3918
    %v3921 = vld [vmem:[%s53] sm:$0xf]
    %v3922 = vld [vmem:[%s53 + $0x4] sm:$0xf]
    %v3923 = vld [vmem:[%s53 + $0x8] sm:$0xf]
    %v3924 = vld [vmem:[%s53 + $0xc] sm:$0xf]
    %v3925 = vld [vmem:[%s53 + $0x10] sm:$0xf]
    %v3926 = vld [vmem:[%s53 + $0x14] sm:$0xf]
    %v3927 = vld [vmem:[%s53 + $0x18] sm:$0xf]
    %v3928 = vld [vmem:[%s53 + $0x1c] sm:$0xf]
    %v3929 = vld [vmem:[%s55] sm:$0x1]
    %v3931 = vlaneseq
    %v3932 = vshrl.u32 %v3931, 7
    %v3933 = vsub.s32 0, %v3932
    %v3934 = vrot.slane %v3929, %v3933
    %v3944 = vunpack.c.l.b16 %v3921
    %v3945 = vunpack.c.l.b16 %v3922
    %v3946 = vunpack.c.l.b16 %v3923
    %v3947 = vunpack.c.l.b16 %v3924
    %v3948 = vunpack.c.l.b16 %v3925
    %v3949 = vunpack.c.l.b16 %v3926
    %v3950 = vunpack.c.l.b16 %v3927
    %v3951 = vunpack.c.l.b16 %v3928
    %v3952 = vpack.c.b16 %v3945, %v3944
    %v3953 = vpack.c.b16 %v3947, %v3946
    %v3954 = vpack.c.b16 %v3949, %v3948
    %v3955 = vpack.c.b16 %v3951, %v3950
    %vm3960 = vcmask 523264
    %v3962 = vsel %vm3960, %v3920, 0
    %3964 = vmatprep.subr.bf16.mxu0 0
    %3965 = vmatpush1.bf16.msra.mxu0 %v3952
    %3966 = vmatprep.subr.bf16.mxu0 0
    %3967 = vmatpush1.bf16.msra.mxu0 %v3953
    %3968 = vmatprep.subr.bf16.mxu0 0
    %3969 = vmatpush1.bf16.msra.mxu0 %v3954
    %3970 = vmatprep.subr.bf16.mxu0 0
    %3971 = vmatpush1.bf16.msra.mxu0 %v3955
    %3972 = vmatprep.subr.bf16.mxu0 0
    %3973 = vmatpush1.bf16.msra.mxu0 0
    %3974 = vmatprep.subr.bf16.mxu0 0
    %3975 = vmatpush1.bf16.msra.mxu0 0
    %3976 = vmatprep.subr.bf16.mxu0 0
    %3977 = vmatpush1.bf16.msra.mxu0 0
    %3978 = vmatprep.subr.bf16.mxu0 0
    %3979 = vmatpush1.bf16.msra.mxu0 0
    %3980 = vmatprep.subr.bf16.mxu0 0
    %3981 = vmatpush1.bf16.msra.mxu0 0
    %3982 = vmatprep.subr.bf16.mxu0 0
    %3983 = vmatpush1.bf16.msra.mxu0 0
    %3984 = vmatprep.subr.bf16.mxu0 0
    %3985 = vmatpush1.bf16.msra.mxu0 0
    %3986 = vmatprep.subr.bf16.mxu0 0
    %3987 = vmatpush1.bf16.msra.mxu0 0
    %3988 = vmatprep.subr.bf16.mxu0 0
    %3989 = vmatpush1.bf16.msra.mxu0 0
    %3990 = vmatprep.subr.bf16.mxu0 0
    %3991 = vmatpush1.bf16.msra.mxu0 0
    %3992 = vmatprep.subr.bf16.mxu0 0
    %3993 = vmatpush1.bf16.msra.mxu0 0
    %3994 = vmatprep.subr.bf16.mxu0 0
    %3995 = vmatpush1.bf16.msra.mxu0 0
    %3996 = vmatprep.mubr.bf16.mxu0 0
    %3997 = vmatmul.mubr.bf16.gmra.mrb[0].mxu0 %v3962
    %v3998 = vpop.f32.mrb[0].mxu0
    %v3999 = vadd.f32 %v3934, %v3998
    %v4000 = vpop.f32.mrb[0].mxu0
    %v4001 = vpop.f32.mrb[0].mxu0
    %v4002 = vadd.f32 %v3934, %v4001
    %v4003 = vpop.f32.mrb[0].mxu0
    %4004 = vdwg.mxu0
    %v4005 = vadd.f32 %v3796, %v3999
    %v4006 = vadd.f32 %v3797, %v4002
    %v4007 = vld [vmem:[%s57] sm:$0x1]
    %v4008 = vld [vmem:[%s59] sm:$0x1]
    %v4009 = vsel %vm353, %v4005, 0.0
    %4010 = vadd.xlane.f32.xlu0 %v4009
    %v4011 = vpop.xlane.xlu0 %4010
    %v4012 = vsel %vm353, %v4006, 0.0
    %4013 = vadd.xlane.f32.xlu0 %v4012
    %v4014 = vpop.xlane.xlu0 %4013
    %v4015 = vmul.f32 %v4011, %v360
    %v4016 = vmul.f32 %v4014, %v360
    %v4017 = vsub.f32 %v4005, %v4015
    %v4018 = vsub.f32 %v4006, %v4016
    %v4019 = vmul.f32 %v4017, %v4017
    %v4020 = vmul.f32 %v4018, %v4018
    %v4021 = vsel %vm353, %v4019, 0.0
    %4022 = vadd.xlane.f32.xlu0 %v4021
    %v4023 = vpop.xlane.xlu0 %4022
    %v4024 = vsel %vm353, %v4020, 0.0
    %4025 = vadd.xlane.f32.xlu0 %v4024
    %v4026 = vpop.xlane.xlu0 %4025
    %v4027 = vmul.f32 %v4023, %v360
    %v4028 = vmul.f32 %v4026, %v360
    %v4029 = vadd.f32 %v4027, 1e-05
    %v4030 = vadd.f32 %v4028, 1e-05
    %v4031 = vrsqrt.pop %v4029
    %v4032 = vrsqrt.pop %v4030
    %v4033 = vmul.f32 %v4017, %v4031
    %v4034 = vmul.f32 %v4018, %v4032
    %v4036 = vlaneseq
    %v4037 = vshrl.u32 %v4036, 7
    %v4038 = vsub.s32 0, %v4037
    %v4039 = vrot.slane %v4007, %v4038
    %v4041 = vmul.f32 %v4033, %v4039
    %v4042 = vmul.f32 %v4034, %v4039
    %v4044 = vlaneseq
    %v4045 = vshrl.u32 %v4044, 7
    %v4046 = vsub.s32 0, %v4045
    %v4047 = vrot.slane %v4008, %v4046
    %v4049 = vadd.f32 %v4041, %v4047
    %v4050 = vadd.f32 %v4042, %v4047
    %4051 = vst.msk [vmem:[#allocation26] sm:$0xff] %vm353, %v4049
    %4052 = vst.msk [vmem:[#allocation26 + $0x8] sm:$0xff] %vm353, %v4050
    %4053 = vst.msk [vmem:[#allocation27] sm:$0xff] %vm593, %v1962
    %4054 = vst.msk [vmem:[#allocation27 + $0x8] sm:$0xff] %vm593, %v1963
    %4055 = vst.msk [vmem:[#allocation29] sm:$0xff] %vm1956, %v3726
    %4056 = vst.msk [vmem:[#allocation29 + $0x8] sm:$0xff] %vm1956, %v3727
    // Predicated region
    $region182: #{tpu_custom_call.1} parent=1 // pred_check
      _
    $region183: #{tpu_custom_call.1} parent=1 // pred_check_branch
      %4058 = sbr.rel (0) target = $region185
    $region184: #{tpu_custom_call.1} parent=1 // pred_region
      %s4060 = ssub.s32 256, 256
      %4061 = vsyncadd [#allocation4], %s4060
      %s4062 = sshll.u32 [#allocation26], 4
      %s4063 = int_to_ptr.vmem [resolvable:$true] %s4062
      %4068 = dma.vmem_to_hbm [thread:$0]  %s4063, 256, %s61, [#allocation4], 128, 128, 8
    $region185: #{tpu_custom_call.1} parent=1 // pred_fallthru
      _
    // Predicated region
    $region186: #{tpu_custom_call.1} parent=1 // pred_check
      _
    $region187: #{tpu_custom_call.1} parent=1 // pred_check_branch
      %4070 = sbr.rel (0) target = $region189
    $region188: #{tpu_custom_call.1} parent=1 // pred_region
      %s4072 = ssub.s32 256, 256
      %4073 = vsyncadd [#allocation28], %s4072
      %s4074 = sshll.u32 [#allocation27], 4
      %s4075 = int_to_ptr.vmem [resolvable:$true] %s4074
      %4080 = dma.vmem_to_hbm [thread:$0]  %s4075, 256, %s63, [#allocation28], 128, 128, 8
    $region189: #{tpu_custom_call.1} parent=1 // pred_fallthru
      _
    // Predicated region
    $region190: #{tpu_custom_call.1} parent=1 // pred_check
      _
    $region191: #{tpu_custom_call.1} parent=1 // pred_check_branch
      %4082 = sbr.rel (0) target = $region193
    $region192: #{tpu_custom_call.1} parent=1 // pred_region
      %s4084 = ssub.s32 256, 256
      %4085 = vsyncadd [#allocation28], %s4084
      %s4086 = sshll.u32 [#allocation29], 4
      %s4087 = int_to_ptr.vmem [resolvable:$true] %s4086
      %4092 = dma.vmem_to_hbm [thread:$0]  %s4087, 256, %s65, [#allocation28], 128, 128, 8
    $region193: #{tpu_custom_call.1} parent=1 // pred_fallthru
      _
    // Predicated region
    $region194: #{tpu_custom_call.1} parent=1 // pred_check
      _
    $region195: #{tpu_custom_call.1} parent=1 // pred_check_branch
      %4094 = sbr.rel (0) target = $region197
    $region196: #{tpu_custom_call.1} parent=1 // pred_region
      %4095 = dma.done [#allocation4], 256
    $region197: #{tpu_custom_call.1} parent=1 // pred_fallthru
      _
    // Predicated region
    $region198: #{tpu_custom_call.1} parent=1 // pred_check
      _
    $region199: #{tpu_custom_call.1} parent=1 // pred_check_branch
      %4097 = sbr.rel (0) target = $region201
    $region200: #{tpu_custom_call.1} parent=1 // pred_region
      %4098 = dma.done [#allocation28], 256
    $region201: #{tpu_custom_call.1} parent=1 // pred_fallthru
      _
    // Predicated region
    $region202: #{tpu_custom_call.1} parent=1 // pred_check
      _
    $region203: #{tpu_custom_call.1} parent=1 // pred_check_branch
      %4100 = sbr.rel (0) target = $region205
    $region204: #{tpu_custom_call.1} parent=1 // pred_region
      %4101 = dma.done [#allocation28], 256
    $region205: #{tpu_custom_call.1} parent=1 // pred_fallthru
      _
    %4102 = vsyncpa [#allocation3], 1
    %4103 = vsyncpa [#allocation6], 1
    %4104 = vsyncpa [#allocation9], 1
    %4105 = vsyncpa [#allocation12], 1
    %4106 = vsyncpa [#allocation15], 1
    %4107 = vsyncpa [#allocation18], 1
    %4108 = vsyncpa [#allocation21], 1
    %4109 = vsyncpa [#allocation24], 1
    %4110 = vsyncpa [#allocation4], 1
    %4111 = vsyncpa [#allocation28], 1

</llo_original>
